<compile_context>
chip_gen: v6e
topology: v6e:2x2x1
jax: 0.10.0
libtpu: 0.0.40
codegen_flags: <defaults>
</compile_context>

<pallas_src>
import functools

import jax
import jax.numpy as jnp
from jax import lax
from jax.experimental import pallas as pl
from jax.experimental.pallas import tpu as pltpu


# ------------------------------- config -------------------------------------

class Config:
    image_size = 32
    patch_size = 16
    in_channels = 3
    hidden = 32          # scaled down from 768
    num_heads = 2        # scaled down from 12
    head_dim = hidden // num_heads
    mlp_dim = 64         # scaled down from 3072
    num_layers = 2       # scaled down from 12
    num_classes = 171    # same as the replaced head in OnlyVIT
    n_patches = (image_size // patch_size) ** 2
    seq_len = n_patches + 1
    seq_pad = 8                                        # sublane-aligned seq
    nc_pad = ((num_classes + 127) // 128) * 128        # lane-dense head width


# --------------------------- fused Pallas kernel -----------------------------

def _vit_fused_kernel(
    patches_ref, conv_w_ref, vecs_ref, in_w_ref, out_w_ref,
    fc1_w_ref, fc2_w_ref, head_w_ref, logits_ref, *, cfg, batch):
    B = batch
    N, S, Sp = cfg.n_patches, cfg.seq_len, cfg.seq_pad
    E, H, Dh, L, M = (cfg.hidden, cfg.num_heads, cfg.head_dim,
                      cfg.num_layers, cfg.mlp_dim)
    E3 = 3 * E

    def mm(a, b):
        return jnp.dot(a, b, preferred_element_type=jnp.float32)

    def ln(x, g, b, eps=1e-6):
        # biased variance + eps=1e-6, matching torchvision ViT LayerNorm.
        mean = jnp.mean(x, axis=-1, keepdims=True)
        xc = x - mean
        var = jnp.mean(xc * xc, axis=-1, keepdims=True)
        return xc * lax.rsqrt(var + eps) * g + b

    def gelu_exact(x):
        # torch.nn.GELU default (exact erf); erf via Abramowitz-Stegun 7.1.26
        # (|err| <= 1.5e-7) using only mul/add/exp/div -> robust Mosaic lowering.
        z = x * 0.7071067811865476
        az = jnp.abs(z)
        t = 1.0 / (1.0 + 0.3275911 * az)
        poly = ((((1.061405429 * t - 1.453152027) * t + 1.421413741) * t
                 - 0.284496736) * t + 0.254829592) * t
        e = 1.0 - poly * jnp.exp(-az * az)
        erf = jnp.where(z >= 0.0, e, -e)
        return 0.5 * x * (1.0 + erf)

    # --- small-vector constants, packed into one (16 + 8L, 256) VMEM slab ----
    conv_b = vecs_ref[0:1, 0:E]
    cls = vecs_ref[1:2, 0:E]
    lnf_g = vecs_ref[2:3, 0:E]
    lnf_b = vecs_ref[3:4, 0:E]
    head_b = vecs_ref[4:5, :]                            # (1, nc_pad)
    pos = vecs_ref[8:8 + Sp, 0:E]                        # (Sp, E), pad rows = 0

    # --- patch embedding (conv_proj as matmul) + [cls] + pos emb, in vregs ---
    tok = mm(patches_ref[...], conv_w_ref[...]) + conv_b          # (B*N, E)
    cls_row = cls + pos[0:1, :]                                   # (1, E)
    pad_rows = jnp.zeros((Sp - 1 - N, E), jnp.float32)
    parts = []
    for b in range(B):
        parts.append(cls_row)
        parts.append(tok[b * N:(b + 1) * N, :] + pos[1:1 + N, :])
        parts.append(pad_rows)
    x = jnp.concatenate(parts, axis=0)                            # (B*Sp, E)

    # Pad key columns get -1e30 before softmax (exp underflows to exactly 0),
    # so pad rows/columns never influence real tokens.
    kidx = lax.broadcasted_iota(jnp.int32, (1, 1, Sp), 2)
    neg_mask = jnp.where(kidx < S, 0.0, -1e30).astype(jnp.float32)
    scale = 1.0 / (float(Dh) ** 0.5)

    # --- transformer encoder blocks (statically unrolled over layers) --------
    for l in range(L):
        base = 16 + 8 * l
        ln1_g = vecs_ref[base + 0:base + 1, 0:E]
        ln1_b = vecs_ref[base + 1:base + 2, 0:E]
        in_b = vecs_ref[base + 2:base + 3, 0:E3]
        out_b = vecs_ref[base + 3:base + 4, 0:E]
        ln2_g = vecs_ref[base + 4:base + 5, 0:E]
        ln2_b = vecs_ref[base + 5:base + 6, 0:E]
        fc1_b = vecs_ref[base + 6:base + 7, 0:M]
        fc2_b = vecs_ref[base + 7:base + 8, 0:E]

        # self-attention branch, batched over all (batch, head) pairs
        h = ln(x, ln1_g, ln1_b)
        qkv = mm(h, in_w_ref[l]) + in_b                           # (B*Sp, 3E)
        qkv3 = qkv.reshape(B, Sp, E3)                             # layout-trivial
        q = jnp.concatenate(
            [qkv3[:, :, hd * Dh:(hd + 1) * Dh] for hd in range(H)], axis=0)
        k = jnp.concatenate(
            [qkv3[:, :, E + hd * Dh:E + (hd + 1) * Dh] for hd in range(H)], axis=0)
        v = jnp.concatenate(
            [qkv3[:, :, 2 * E + hd * Dh:2 * E + (hd + 1) * Dh] for hd in range(H)],
            axis=0)
        # q/k/v: (H*B, Sp, Dh), leading index = head * B + batch
        s = lax.dot_general(q, k, (((2,), (2,)), ((0,), (0,))),
                            preferred_element_type=jnp.float32) * scale + neg_mask
        s = s - jnp.max(s, axis=-1, keepdims=True)
        p = jnp.exp(s)
        p = p * pl.reciprocal(jnp.sum(p, axis=-1, keepdims=True), approx=True)
        o = lax.dot_general(p, v, (((2,), (1,)), ((0,), (0,))),
                            preferred_element_type=jnp.float32)  # (H*B, Sp, Dh)
        attn = jnp.concatenate(
            [o[hd * B:(hd + 1) * B] for hd in range(H)], axis=-1)  # (B, Sp, E)
        attn = attn.reshape(B * Sp, E)
        x = x + mm(attn, out_w_ref[l]) + out_b                    # residual

        # MLP branch (exact-erf GELU)
        h2 = ln(x, ln2_g, ln2_b)
        y = gelu_exact(mm(h2, fc1_w_ref[l]) + fc1_b)
        x = x + mm(y, fc2_w_ref[l]) + fc2_b                       # residual

    # --- final LN (row-wise, so only cls rows needed) + head, one store ------
    cls_x = jnp.concatenate(
        [x[b * Sp:b * Sp + 1, :] for b in range(B)], axis=0)      # (B, E)
    cls_x = ln(cls_x, lnf_g, lnf_b)
    logits_ref[...] = mm(cls_x, head_w_ref[...]) + head_b         # (B, nc_pad)


# ------------------------------ JAX wrapper ----------------------------------

_VMEM = pl.BlockSpec(memory_space=pltpu.MemorySpace.VMEM)


def patchify(img, cfg):
    """NCHW image -> (B, n_patches, C*p*p), same flattening order as Conv2d
    (kernel=stride=patch) followed by reshape+permute in torchvision."""
    B, C, Hh, Ww = img.shape
    p = cfg.patch_size
    x = img.reshape(B, C, Hh // p, p, Ww // p, p)
    x = x.transpose(0, 2, 4, 1, 3, 5)                 # (B, gh, gw, C, p, p)
    return x.reshape(B, (Hh // p) * (Ww // p), C * p * p)


def only_vit_forward(img, packed, cfg):
    B = img.shape[0]
    patches = patchify(img, cfg).reshape(B * cfg.n_patches, -1)
    kernel = functools.partial(_vit_fused_kernel, cfg=cfg, batch=B)
    logits_pad = pl.pallas_call(
        kernel,
        out_shape=jax.ShapeDtypeStruct((B, cfg.nc_pad), jnp.float32),
        in_specs=[_VMEM] * 8,
        out_specs=_VMEM,
    )(patches, packed["conv_w"], packed["vecs"], packed["in_w"],
      packed["out_w"], packed["fc1_w"], packed["fc2_w"], packed["head_w"])
    return logits_pad[:, :cfg.num_classes]


# ------------------------------ parameters -----------------------------------

def init_params(key, cfg):
    def nrm(k, shape, scale=0.02):
        return scale * jax.random.normal(k, shape, dtype=jnp.float32)

    keys = jax.random.split(key, 7)
    cpp = cfg.in_channels * cfg.patch_size * cfg.patch_size
    L, E, E3, M = cfg.num_layers, cfg.hidden, 3 * cfg.hidden, cfg.mlp_dim
    return {
        "conv_w": nrm(keys[0], (cpp, E)),              # conv_proj as (C*p*p, E)
        "conv_b": jnp.zeros((E,), jnp.float32),
        "class_token": jnp.zeros((E,), jnp.float32),
        "pos_embedding": nrm(keys[1], (cfg.seq_len, E)),
        "ln1_g": jnp.ones((L, E), jnp.float32),
        "ln1_b": jnp.zeros((L, E), jnp.float32),
        "in_proj_w": nrm(keys[2], (L, E, E3)),         # Q|K|V packed columns
        "in_proj_b": jnp.zeros((L, E3), jnp.float32),
        "out_proj_w": nrm(keys[3], (L, E, E)),
        "out_proj_b": jnp.zeros((L, E), jnp.float32),
        "ln2_g": jnp.ones((L, E), jnp.float32),
        "ln2_b": jnp.zeros((L, E), jnp.float32),
        "fc1_w": nrm(keys[4], (L, E, M)),
        "fc1_b": jnp.zeros((L, M), jnp.float32),
        "fc2_w": nrm(keys[5], (L, M, E)),
        "fc2_b": jnp.zeros((L, E), jnp.float32),
        "ln_g": jnp.ones((E,), jnp.float32),
        "ln_b": jnp.zeros((E,), jnp.float32),
        "head_w": nrm(keys[6], (E, cfg.num_classes)),
        "head_b": jnp.zeros((cfg.num_classes,), jnp.float32),
    }


def pack_params(p, cfg):
    """One-time layout massaging (hoisted out of the forward path): pad the
    head to nc_pad lanes and pack every small vector into one (16+8L, nc_pad)
    slab so the kernel takes 8 operands instead of 21."""
    E, E3, M, L = cfg.hidden, 3 * cfg.hidden, cfg.mlp_dim, cfg.num_layers
    W = cfg.nc_pad
    vecs = jnp.zeros((16 + 8 * L, W), jnp.float32)
    vecs = vecs.at[0, :E].set(p["conv_b"])
    vecs = vecs.at[1, :E].set(p["class_token"])
    vecs = vecs.at[2, :E].set(p["ln_g"])
    vecs = vecs.at[3, :E].set(p["ln_b"])
    vecs = vecs.at[4, :].set(jnp.pad(p["head_b"], (0, W - cfg.num_classes)))
    vecs = vecs.at[8:8 + cfg.seq_len, :E].set(p["pos_embedding"])  # pad rows 0
    for l in range(L):
        base = 16 + 8 * l
        vecs = vecs.at[base + 0, :E].set(p["ln1_g"][l])
        vecs = vecs.at[base + 1, :E].set(p["ln1_b"][l])
        vecs = vecs.at[base + 2, :E3].set(p["in_proj_b"][l])
        vecs = vecs.at[base + 3, :E].set(p["out_proj_b"][l])
        vecs = vecs.at[base + 4, :E].set(p["ln2_g"][l])
        vecs = vecs.at[base + 5, :E].set(p["ln2_b"][l])
        vecs = vecs.at[base + 6, :M].set(p["fc1_b"][l])
        vecs = vecs.at[base + 7, :E].set(p["fc2_b"][l])
    head_w = jnp.pad(p["head_w"], ((0, 0), (0, W - cfg.num_classes)))
    return {"conv_w": p["conv_w"], "vecs": vecs, "in_w": p["in_proj_w"],
            "out_w": p["out_proj_w"], "fc1_w": p["fc1_w"], "fc2_w": p["fc2_w"],
            "head_w": head_w}


# --------------------------------- main --------------------------------------

if __name__ == "__main__":
    cfg = Config()
    key = jax.random.PRNGKey(0)
    k_img, k_params = jax.random.split(key)

    img = jax.random.normal(
        k_img, (2, cfg.in_channels, cfg.image_size, cfg.image_size),
        dtype=jnp.float32)                             # NCHW, like torch
    packed = pack_params(init_params(k_params, cfg), cfg)

    fwd = jax.jit(functools.partial(only_vit_forward, cfg=cfg))
    logits = jax.block_until_ready(fwd(img, packed))

    assert logits.shape == (2, cfg.num_classes)
    assert bool(jnp.all(jnp.isfinite(logits)))
    print("KERNEL_OK")
</pallas_src>

<mosaic_0001>
module attributes {stable_mosaic.version = 11 : i64} {
  func.func @_vit_fused_kernel(%arg0: memref<8x768xf32, #tpu.memory_space<vmem>>, %arg1: memref<768x32xf32, #tpu.memory_space<vmem>>, %arg2: memref<32x256xf32, #tpu.memory_space<vmem>>, %arg3: memref<2x32x96xf32, #tpu.memory_space<vmem>>, %arg4: memref<2x32x32xf32, #tpu.memory_space<vmem>>, %arg5: memref<2x32x64xf32, #tpu.memory_space<vmem>>, %arg6: memref<2x64x32xf32, #tpu.memory_space<vmem>>, %arg7: memref<32x256xf32, #tpu.memory_space<vmem>>, %arg8: memref<2x256xf32, #tpu.memory_space<vmem>>) attributes {dimension_semantics = [], scalar_prefetch = 0 : i64, scratch_operands = 0 : i64, tpu.core_type = #tpu.core_type<tc>} {
    %c0 = arith.constant 0 : index
    %c0_0 = arith.constant 0 : index
    %0 = vector.load %arg2[%c0, %c0_0] : memref<32x256xf32, #tpu.memory_space<vmem>>, vector<1x32xf32>
    %c1 = arith.constant 1 : index
    %c0_1 = arith.constant 0 : index
    %1 = vector.load %arg2[%c1, %c0_1] : memref<32x256xf32, #tpu.memory_space<vmem>>, vector<1x32xf32>
    %c2 = arith.constant 2 : index
    %c0_2 = arith.constant 0 : index
    %2 = vector.load %arg2[%c2, %c0_2] : memref<32x256xf32, #tpu.memory_space<vmem>>, vector<1x32xf32>
    %c3 = arith.constant 3 : index
    %c0_3 = arith.constant 0 : index
    %3 = vector.load %arg2[%c3, %c0_3] : memref<32x256xf32, #tpu.memory_space<vmem>>, vector<1x32xf32>
    %c4 = arith.constant 4 : index
    %c0_4 = arith.constant 0 : index
    %4 = vector.load %arg2[%c4, %c0_4] : memref<32x256xf32, #tpu.memory_space<vmem>>, vector<1x256xf32>
    %c8 = arith.constant 8 : index
    %c0_5 = arith.constant 0 : index
    %5 = vector.load %arg2[%c8, %c0_5] : memref<32x256xf32, #tpu.memory_space<vmem>>, vector<8x32xf32>
    %c0_6 = arith.constant 0 : index
    %c0_7 = arith.constant 0 : index
    %6 = vector.load %arg0[%c0_6, %c0_7] : memref<8x768xf32, #tpu.memory_space<vmem>>, vector<8x768xf32>
    %c0_8 = arith.constant 0 : index
    %c0_9 = arith.constant 0 : index
    %7 = vector.load %arg1[%c0_8, %c0_9] : memref<768x32xf32, #tpu.memory_space<vmem>>, vector<768x32xf32>
    %cst = arith.constant dense<0.000000e+00> : vector<8x32xf32>
    %8 = tpu.matmul %6, %7, %cst {dimension_numbers = #tpu.dot_dimension_numbers<[1], [0], [0], [1], [0, 0, 1, 1], [], []>} : vector<8x768xf32>, vector<768x32xf32>, vector<8x32xf32> -> vector<8x32xf32>
    %9 = vector.broadcast %0 : vector<1x32xf32> to vector<8x32xf32>
    %10 = arith.addf %8, %9 : vector<8x32xf32>
    %11 = vector.extract_strided_slice %5 {offsets = [0, 0], sizes = [1, 32], strides = [1, 1]} : vector<8x32xf32> to vector<1x32xf32>
    %12 = arith.addf %1, %11 : vector<1x32xf32>
    %cst_10 = arith.constant 0.000000e+00 : f32
    %13 = vector.broadcast %cst_10 : f32 to vector<3x32xf32>
    %14 = vector.extract_strided_slice %10 {offsets = [0, 0], sizes = [4, 32], strides = [1, 1]} : vector<8x32xf32> to vector<4x32xf32>
    %15 = vector.extract_strided_slice %5 {offsets = [1, 0], sizes = [4, 32], strides = [1, 1]} : vector<8x32xf32> to vector<4x32xf32>
    %16 = arith.addf %14, %15 : vector<4x32xf32>
    %17 = vector.extract_strided_slice %10 {offsets = [4, 0], sizes = [4, 32], strides = [1, 1]} : vector<8x32xf32> to vector<4x32xf32>
    %18 = vector.extract_strided_slice %5 {offsets = [1, 0], sizes = [4, 32], strides = [1, 1]} : vector<8x32xf32> to vector<4x32xf32>
    %19 = arith.addf %17, %18 : vector<4x32xf32>
    %20 = tpu.concatenate %12, %16, %13, %12, %19, %13 in 0 : vector<1x32xf32>, vector<4x32xf32>, vector<3x32xf32>, vector<1x32xf32>, vector<4x32xf32>, vector<3x32xf32> -> vector<16x32xf32>
    %21 = tpu.iota {dimensions = array<i32: 2>} : vector<1x1x8xi32>
    %c5_i32 = arith.constant 5 : i32
    %22 = vector.broadcast %c5_i32 : i32 to vector<1x1x8xi32>
    %23 = arith.cmpi slt, %21, %22 : vector<1x1x8xi32>
    %cst_11 = arith.constant 0.000000e+00 : f32
    %cst_12 = arith.constant -1.000000e+30 : f32
    %24 = vector.broadcast %cst_11 : f32 to vector<1x1x8xf32>
    %25 = vector.broadcast %cst_12 : f32 to vector<1x1x8xf32>
    %26 = arith.select %23, %24, %25 : vector<1x1x8xi1>, vector<1x1x8xf32>
    %c16 = arith.constant 16 : index
    %c0_13 = arith.constant 0 : index
    %27 = vector.load %arg2[%c16, %c0_13] : memref<32x256xf32, #tpu.memory_space<vmem>>, vector<1x32xf32>
    %c17 = arith.constant 17 : index
    %c0_14 = arith.constant 0 : index
    %28 = vector.load %arg2[%c17, %c0_14] : memref<32x256xf32, #tpu.memory_space<vmem>>, vector<1x32xf32>
    %c18 = arith.constant 18 : index
    %c0_15 = arith.constant 0 : index
    %29 = vector.load %arg2[%c18, %c0_15] : memref<32x256xf32, #tpu.memory_space<vmem>>, vector<1x96xf32>
    %c19 = arith.constant 19 : index
    %c0_16 = arith.constant 0 : index
    %30 = vector.load %arg2[%c19, %c0_16] : memref<32x256xf32, #tpu.memory_space<vmem>>, vector<1x32xf32>
    %c20 = arith.constant 20 : index
    %c0_17 = arith.constant 0 : index
    %31 = vector.load %arg2[%c20, %c0_17] : memref<32x256xf32, #tpu.memory_space<vmem>>, vector<1x32xf32>
    %c21 = arith.constant 21 : index
    %c0_18 = arith.constant 0 : index
    %32 = vector.load %arg2[%c21, %c0_18] : memref<32x256xf32, #tpu.memory_space<vmem>>, vector<1x32xf32>
    %c22 = arith.constant 22 : index
    %c0_19 = arith.constant 0 : index
    %33 = vector.load %arg2[%c22, %c0_19] : memref<32x256xf32, #tpu.memory_space<vmem>>, vector<1x64xf32>
    %c23 = arith.constant 23 : index
    %c0_20 = arith.constant 0 : index
    %34 = vector.load %arg2[%c23, %c0_20] : memref<32x256xf32, #tpu.memory_space<vmem>>, vector<1x32xf32>
    %cst_21 = arith.constant dense<0.000000e+00> : vector<16xf32>
    %35 = vector.multi_reduction <add>, %20, %cst_21 [1] : vector<16x32xf32> to vector<16xf32>
    %36 = vector.shape_cast %35 : vector<16xf32> to vector<16x1xf32>
    %cst_22 = arith.constant 3.200000e+01 : f32
    %37 = vector.broadcast %cst_22 : f32 to vector<16x1xf32>
    %38 = arith.divf %36, %37 : vector<16x1xf32>
    %39 = vector.broadcast %38 : vector<16x1xf32> to vector<16x32xf32>
    %40 = arith.subf %20, %39 : vector<16x32xf32>
    %41 = arith.mulf %40, %40 : vector<16x32xf32>
    %cst_23 = arith.constant dense<0.000000e+00> : vector<16xf32>
    %42 = vector.multi_reduction <add>, %41, %cst_23 [1] : vector<16x32xf32> to vector<16xf32>
    %43 = vector.shape_cast %42 : vector<16xf32> to vector<16x1xf32>
    %cst_24 = arith.constant 3.200000e+01 : f32
    %44 = vector.broadcast %cst_24 : f32 to vector<16x1xf32>
    %45 = arith.divf %43, %44 : vector<16x1xf32>
    %cst_25 = arith.constant 9.99999997E-7 : f32
    %46 = vector.broadcast %cst_25 : f32 to vector<16x1xf32>
    %47 = arith.addf %45, %46 : vector<16x1xf32>
    %48 = math.rsqrt %47 : vector<16x1xf32>
    %49 = vector.broadcast %48 : vector<16x1xf32> to vector<16x32xf32>
    %50 = arith.mulf %40, %49 : vector<16x32xf32>
    %51 = vector.broadcast %27 : vector<1x32xf32> to vector<16x32xf32>
    %52 = arith.mulf %50, %51 : vector<16x32xf32>
    %53 = vector.broadcast %28 : vector<1x32xf32> to vector<16x32xf32>
    %54 = arith.addf %52, %53 : vector<16x32xf32>
    %c0_26 = arith.constant 0 : index
    %c0_27 = arith.constant 0 : index
    %c0_28 = arith.constant 0 : index
    %55 = vector.load %arg3[%c0_26, %c0_27, %c0_28] : memref<2x32x96xf32, #tpu.memory_space<vmem>>, vector<1x32x96xf32>
    %56 = vector.shape_cast %55 : vector<1x32x96xf32> to vector<32x96xf32>
    %cst_29 = arith.constant dense<0.000000e+00> : vector<16x96xf32>
    %57 = tpu.matmul %54, %56, %cst_29 {dimension_numbers = #tpu.dot_dimension_numbers<[1], [0], [0], [1], [0, 0, 1, 1], [], []>} : vector<16x32xf32>, vector<32x96xf32>, vector<16x96xf32> -> vector<16x96xf32>
    %58 = vector.broadcast %29 : vector<1x96xf32> to vector<16x96xf32>
    %59 = arith.addf %57, %58 : vector<16x96xf32>
    %60 = vector.shape_cast %59 : vector<16x96xf32> to vector<2x8x96xf32>
    %61 = vector.extract_strided_slice %60 {offsets = [0, 0, 0], sizes = [2, 8, 16], strides = [1, 1, 1]} : vector<2x8x96xf32> to vector<2x8x16xf32>
    %62 = vector.extract_strided_slice %60 {offsets = [0, 0, 16], sizes = [2, 8, 16], strides = [1, 1, 1]} : vector<2x8x96xf32> to vector<2x8x16xf32>
    %63 = tpu.concatenate %61, %62 in 0 : vector<2x8x16xf32>, vector<2x8x16xf32> -> vector<4x8x16xf32>
    %64 = vector.extract_strided_slice %60 {offsets = [0, 0, 32], sizes = [2, 8, 16], strides = [1, 1, 1]} : vector<2x8x96xf32> to vector<2x8x16xf32>
    %65 = vector.extract_strided_slice %60 {offsets = [0, 0, 48], sizes = [2, 8, 16], strides = [1, 1, 1]} : vector<2x8x96xf32> to vector<2x8x16xf32>
    %66 = tpu.concatenate %64, %65 in 0 : vector<2x8x16xf32>, vector<2x8x16xf32> -> vector<4x8x16xf32>
    %67 = vector.extract_strided_slice %60 {offsets = [0, 0, 64], sizes = [2, 8, 16], strides = [1, 1, 1]} : vector<2x8x96xf32> to vector<2x8x16xf32>
    %68 = vector.extract_strided_slice %60 {offsets = [0, 0, 80], sizes = [2, 8, 16], strides = [1, 1, 1]} : vector<2x8x96xf32> to vector<2x8x16xf32>
    %69 = tpu.concatenate %67, %68 in 0 : vector<2x8x16xf32>, vector<2x8x16xf32> -> vector<4x8x16xf32>
    %cst_30 = arith.constant dense<0.000000e+00> : vector<4x8x8xf32>
    %70 = tpu.matmul %63, %66, %cst_30 {dimension_numbers = #tpu.dot_dimension_numbers<[2], [2], [1], [1], [0, 0, 0, 1, 1, 1], [0], [0]>} : vector<4x8x16xf32>, vector<4x8x16xf32>, vector<4x8x8xf32> -> vector<4x8x8xf32>
    %cst_31 = arith.constant 2.500000e-01 : f32
    %71 = vector.broadcast %cst_31 : f32 to vector<4x8x8xf32>
    %72 = arith.mulf %70, %71 : vector<4x8x8xf32>
    %73 = vector.broadcast %26 : vector<1x1x8xf32> to vector<4x8x8xf32>
    %74 = arith.addf %72, %73 : vector<4x8x8xf32>
    %cst_32 = arith.constant dense<0xFF800000> : vector<4x8xf32>
    %75 = vector.multi_reduction <maximumf>, %74, %cst_32 [2] : vector<4x8x8xf32> to vector<4x8xf32>
    %76 = vector.shape_cast %75 : vector<4x8xf32> to vector<4x8x1xf32>
    %77 = vector.broadcast %76 : vector<4x8x1xf32> to vector<4x8x8xf32>
    %78 = arith.subf %74, %77 : vector<4x8x8xf32>
    %79 = math.exp %78 : vector<4x8x8xf32>
    %cst_33 = arith.constant dense<0.000000e+00> : vector<4x8xf32>
    %80 = vector.multi_reduction <add>, %79, %cst_33 [2] : vector<4x8x8xf32> to vector<4x8xf32>
    %81 = vector.shape_cast %80 : vector<4x8xf32> to vector<4x8x1xf32>
    %82 = tpu.reciprocal %81 {approx = true} : vector<4x8x1xf32> -> vector<4x8x1xf32>
    %83 = vector.broadcast %82 : vector<4x8x1xf32> to vector<4x8x8xf32>
    %84 = arith.mulf %79, %83 : vector<4x8x8xf32>
    %cst_34 = arith.constant dense<0.000000e+00> : vector<4x8x16xf32>
    %85 = tpu.matmul %84, %69, %cst_34 {dimension_numbers = #tpu.dot_dimension_numbers<[2], [1], [1], [2], [0, 0, 0, 1, 1, 2], [0], [0]>} : vector<4x8x8xf32>, vector<4x8x16xf32>, vector<4x8x16xf32> -> vector<4x8x16xf32>
    %86 = vector.extract_strided_slice %85 {offsets = [0, 0, 0], sizes = [2, 8, 16], strides = [1, 1, 1]} : vector<4x8x16xf32> to vector<2x8x16xf32>
    %87 = vector.extract_strided_slice %85 {offsets = [2, 0, 0], sizes = [2, 8, 16], strides = [1, 1, 1]} : vector<4x8x16xf32> to vector<2x8x16xf32>
    %88 = tpu.concatenate %86, %87 in 2 : vector<2x8x16xf32>, vector<2x8x16xf32> -> vector<2x8x32xf32>
    %89 = vector.shape_cast %88 : vector<2x8x32xf32> to vector<16x32xf32>
    %c0_35 = arith.constant 0 : index
    %c0_36 = arith.constant 0 : index
    %c0_37 = arith.constant 0 : index
    %90 = vector.load %arg4[%c0_35, %c0_36, %c0_37] : memref<2x32x32xf32, #tpu.memory_space<vmem>>, vector<1x32x32xf32>
    %91 = vector.shape_cast %90 : vector<1x32x32xf32> to vector<32x32xf32>
    %cst_38 = arith.constant dense<0.000000e+00> : vector<16x32xf32>
    %92 = tpu.matmul %89, %91, %cst_38 {dimension_numbers = #tpu.dot_dimension_numbers<[1], [0], [0], [1], [0, 0, 1, 1], [], []>} : vector<16x32xf32>, vector<32x32xf32>, vector<16x32xf32> -> vector<16x32xf32>
    %93 = arith.addf %20, %92 : vector<16x32xf32>
    %94 = vector.broadcast %30 : vector<1x32xf32> to vector<16x32xf32>
    %95 = arith.addf %93, %94 : vector<16x32xf32>
    %cst_39 = arith.constant dense<0.000000e+00> : vector<16xf32>
    %96 = vector.multi_reduction <add>, %95, %cst_39 [1] : vector<16x32xf32> to vector<16xf32>
    %97 = vector.shape_cast %96 : vector<16xf32> to vector<16x1xf32>
    %cst_40 = arith.constant 3.200000e+01 : f32
    %98 = vector.broadcast %cst_40 : f32 to vector<16x1xf32>
    %99 = arith.divf %97, %98 : vector<16x1xf32>
    %100 = vector.broadcast %99 : vector<16x1xf32> to vector<16x32xf32>
    %101 = arith.subf %95, %100 : vector<16x32xf32>
    %102 = arith.mulf %101, %101 : vector<16x32xf32>
    %cst_41 = arith.constant dense<0.000000e+00> : vector<16xf32>
    %103 = vector.multi_reduction <add>, %102, %cst_41 [1] : vector<16x32xf32> to vector<16xf32>
    %104 = vector.shape_cast %103 : vector<16xf32> to vector<16x1xf32>
    %cst_42 = arith.constant 3.200000e+01 : f32
    %105 = vector.broadcast %cst_42 : f32 to vector<16x1xf32>
    %106 = arith.divf %104, %105 : vector<16x1xf32>
    %cst_43 = arith.constant 9.99999997E-7 : f32
    %107 = vector.broadcast %cst_43 : f32 to vector<16x1xf32>
    %108 = arith.addf %106, %107 : vector<16x1xf32>
    %109 = math.rsqrt %108 : vector<16x1xf32>
    %110 = vector.broadcast %109 : vector<16x1xf32> to vector<16x32xf32>
    %111 = arith.mulf %101, %110 : vector<16x32xf32>
    %112 = vector.broadcast %31 : vector<1x32xf32> to vector<16x32xf32>
    %113 = arith.mulf %111, %112 : vector<16x32xf32>
    %114 = vector.broadcast %32 : vector<1x32xf32> to vector<16x32xf32>
    %115 = arith.addf %113, %114 : vector<16x32xf32>
    %c0_44 = arith.constant 0 : index
    %c0_45 = arith.constant 0 : index
    %c0_46 = arith.constant 0 : index
    %116 = vector.load %arg5[%c0_44, %c0_45, %c0_46] : memref<2x32x64xf32, #tpu.memory_space<vmem>>, vector<1x32x64xf32>
    %117 = vector.shape_cast %116 : vector<1x32x64xf32> to vector<32x64xf32>
    %cst_47 = arith.constant dense<0.000000e+00> : vector<16x64xf32>
    %118 = tpu.matmul %115, %117, %cst_47 {dimension_numbers = #tpu.dot_dimension_numbers<[1], [0], [0], [1], [0, 0, 1, 1], [], []>} : vector<16x32xf32>, vector<32x64xf32>, vector<16x64xf32> -> vector<16x64xf32>
    %119 = vector.broadcast %33 : vector<1x64xf32> to vector<16x64xf32>
    %120 = arith.addf %118, %119 : vector<16x64xf32>
    %cst_48 = arith.constant 0.707106769 : f32
    %121 = vector.broadcast %cst_48 : f32 to vector<16x64xf32>
    %122 = arith.mulf %120, %121 : vector<16x64xf32>
    %123 = math.absf %122 : vector<16x64xf32>
    %cst_49 = arith.constant 0.327591091 : f32
    %124 = vector.broadcast %cst_49 : f32 to vector<16x64xf32>
    %125 = arith.mulf %124, %123 : vector<16x64xf32>
    %cst_50 = arith.constant 1.000000e+00 : f32
    %126 = vector.broadcast %cst_50 : f32 to vector<16x64xf32>
    %127 = arith.addf %126, %125 : vector<16x64xf32>
    %cst_51 = arith.constant 1.000000e+00 : f32
    %128 = vector.broadcast %cst_51 : f32 to vector<16x64xf32>
    %129 = arith.divf %128, %127 : vector<16x64xf32>
    %cst_52 = arith.constant 1.06140542 : f32
    %130 = vector.broadcast %cst_52 : f32 to vector<16x64xf32>
    %131 = arith.mulf %130, %129 : vector<16x64xf32>
    %cst_53 = arith.constant 1.45315206 : f32
    %132 = vector.broadcast %cst_53 : f32 to vector<16x64xf32>
    %133 = arith.subf %131, %132 : vector<16x64xf32>
    %134 = arith.mulf %133, %129 : vector<16x64xf32>
    %cst_54 = arith.constant 1.42141378 : f32
    %135 = vector.broadcast %cst_54 : f32 to vector<16x64xf32>
    %136 = arith.addf %134, %135 : vector<16x64xf32>
    %137 = arith.mulf %136, %129 : vector<16x64xf32>
    %cst_55 = arith.constant 0.284496725 : f32
    %138 = vector.broadcast %cst_55 : f32 to vector<16x64xf32>
    %139 = arith.subf %137, %138 : vector<16x64xf32>
    %140 = arith.mulf %139, %129 : vector<16x64xf32>
    %cst_56 = arith.constant 0.254829586 : f32
    %141 = vector.broadcast %cst_56 : f32 to vector<16x64xf32>
    %142 = arith.addf %140, %141 : vector<16x64xf32>
    %143 = arith.mulf %142, %129 : vector<16x64xf32>
    %cst_57 = arith.constant 0.000000e+00 : f32
    %144 = vector.broadcast %cst_57 : f32 to vector<16x64xf32>
    %145 = arith.subf %144, %123 : vector<16x64xf32>
    %146 = arith.mulf %145, %123 : vector<16x64xf32>
    %147 = math.exp %146 : vector<16x64xf32>
    %148 = arith.mulf %143, %147 : vector<16x64xf32>
    %cst_58 = arith.constant 1.000000e+00 : f32
    %149 = vector.broadcast %cst_58 : f32 to vector<16x64xf32>
    %150 = arith.subf %149, %148 : vector<16x64xf32>
    %cst_59 = arith.constant 0.000000e+00 : f32
    %151 = vector.broadcast %cst_59 : f32 to vector<16x64xf32>
    %152 = arith.cmpf oge, %122, %151 : vector<16x64xf32>
    %cst_60 = arith.constant 0.000000e+00 : f32
    %153 = vector.broadcast %cst_60 : f32 to vector<16x64xf32>
    %154 = arith.subf %153, %150 : vector<16x64xf32>
    %155 = arith.select %152, %150, %154 : vector<16x64xi1>, vector<16x64xf32>
    %cst_61 = arith.constant 5.000000e-01 : f32
    %156 = vector.broadcast %cst_61 : f32 to vector<16x64xf32>
    %157 = arith.mulf %156, %120 : vector<16x64xf32>
    %cst_62 = arith.constant 1.000000e+00 : f32
    %158 = vector.broadcast %cst_62 : f32 to vector<16x64xf32>
    %159 = arith.addf %158, %155 : vector<16x64xf32>
    %160 = arith.mulf %157, %159 : vector<16x64xf32>
    %c0_63 = arith.constant 0 : index
    %c0_64 = arith.constant 0 : index
    %c0_65 = arith.constant 0 : index
    %161 = vector.load %arg6[%c0_63, %c0_64, %c0_65] : memref<2x64x32xf32, #tpu.memory_space<vmem>>, vector<1x64x32xf32>
    %162 = vector.shape_cast %161 : vector<1x64x32xf32> to vector<64x32xf32>
    %cst_66 = arith.constant dense<0.000000e+00> : vector<16x32xf32>
    %163 = tpu.matmul %160, %162, %cst_66 {dimension_numbers = #tpu.dot_dimension_numbers<[1], [0], [0], [1], [0, 0, 1, 1], [], []>} : vector<16x64xf32>, vector<64x32xf32>, vector<16x32xf32> -> vector<16x32xf32>
    %164 = arith.addf %95, %163 : vector<16x32xf32>
    %165 = vector.broadcast %34 : vector<1x32xf32> to vector<16x32xf32>
    %166 = arith.addf %164, %165 : vector<16x32xf32>
    %c24 = arith.constant 24 : index
    %c0_67 = arith.constant 0 : index
    %167 = vector.load %arg2[%c24, %c0_67] : memref<32x256xf32, #tpu.memory_space<vmem>>, vector<1x32xf32>
    %c25 = arith.constant 25 : index
    %c0_68 = arith.constant 0 : index
    %168 = vector.load %arg2[%c25, %c0_68] : memref<32x256xf32, #tpu.memory_space<vmem>>, vector<1x32xf32>
    %c26 = arith.constant 26 : index
    %c0_69 = arith.constant 0 : index
    %169 = vector.load %arg2[%c26, %c0_69] : memref<32x256xf32, #tpu.memory_space<vmem>>, vector<1x96xf32>
    %c27 = arith.constant 27 : index
    %c0_70 = arith.constant 0 : index
    %170 = vector.load %arg2[%c27, %c0_70] : memref<32x256xf32, #tpu.memory_space<vmem>>, vector<1x32xf32>
    %c28 = arith.constant 28 : index
    %c0_71 = arith.constant 0 : index
    %171 = vector.load %arg2[%c28, %c0_71] : memref<32x256xf32, #tpu.memory_space<vmem>>, vector<1x32xf32>
    %c29 = arith.constant 29 : index
    %c0_72 = arith.constant 0 : index
    %172 = vector.load %arg2[%c29, %c0_72] : memref<32x256xf32, #tpu.memory_space<vmem>>, vector<1x32xf32>
    %c30 = arith.constant 30 : index
    %c0_73 = arith.constant 0 : index
    %173 = vector.load %arg2[%c30, %c0_73] : memref<32x256xf32, #tpu.memory_space<vmem>>, vector<1x64xf32>
    %c31 = arith.constant 31 : index
    %c0_74 = arith.constant 0 : index
    %174 = vector.load %arg2[%c31, %c0_74] : memref<32x256xf32, #tpu.memory_space<vmem>>, vector<1x32xf32>
    %cst_75 = arith.constant dense<0.000000e+00> : vector<16xf32>
    %175 = vector.multi_reduction <add>, %166, %cst_75 [1] : vector<16x32xf32> to vector<16xf32>
    %176 = vector.shape_cast %175 : vector<16xf32> to vector<16x1xf32>
    %cst_76 = arith.constant 3.200000e+01 : f32
    %177 = vector.broadcast %cst_76 : f32 to vector<16x1xf32>
    %178 = arith.divf %176, %177 : vector<16x1xf32>
    %179 = vector.broadcast %178 : vector<16x1xf32> to vector<16x32xf32>
    %180 = arith.subf %166, %179 : vector<16x32xf32>
    %181 = arith.mulf %180, %180 : vector<16x32xf32>
    %cst_77 = arith.constant dense<0.000000e+00> : vector<16xf32>
    %182 = vector.multi_reduction <add>, %181, %cst_77 [1] : vector<16x32xf32> to vector<16xf32>
    %183 = vector.shape_cast %182 : vector<16xf32> to vector<16x1xf32>
    %cst_78 = arith.constant 3.200000e+01 : f32
    %184 = vector.broadcast %cst_78 : f32 to vector<16x1xf32>
    %185 = arith.divf %183, %184 : vector<16x1xf32>
    %cst_79 = arith.constant 9.99999997E-7 : f32
    %186 = vector.broadcast %cst_79 : f32 to vector<16x1xf32>
    %187 = arith.addf %185, %186 : vector<16x1xf32>
    %188 = math.rsqrt %187 : vector<16x1xf32>
    %189 = vector.broadcast %188 : vector<16x1xf32> to vector<16x32xf32>
    %190 = arith.mulf %180, %189 : vector<16x32xf32>
    %191 = vector.broadcast %167 : vector<1x32xf32> to vector<16x32xf32>
    %192 = arith.mulf %190, %191 : vector<16x32xf32>
    %193 = vector.broadcast %168 : vector<1x32xf32> to vector<16x32xf32>
    %194 = arith.addf %192, %193 : vector<16x32xf32>
    %c1_80 = arith.constant 1 : index
    %c0_81 = arith.constant 0 : index
    %c0_82 = arith.constant 0 : index
    %195 = vector.load %arg3[%c1_80, %c0_81, %c0_82] : memref<2x32x96xf32, #tpu.memory_space<vmem>>, vector<1x32x96xf32>
    %196 = vector.shape_cast %195 : vector<1x32x96xf32> to vector<32x96xf32>
    %cst_83 = arith.constant dense<0.000000e+00> : vector<16x96xf32>
    %197 = tpu.matmul %194, %196, %cst_83 {dimension_numbers = #tpu.dot_dimension_numbers<[1], [0], [0], [1], [0, 0, 1, 1], [], []>} : vector<16x32xf32>, vector<32x96xf32>, vector<16x96xf32> -> vector<16x96xf32>
    %198 = vector.broadcast %169 : vector<1x96xf32> to vector<16x96xf32>
    %199 = arith.addf %197, %198 : vector<16x96xf32>
    %200 = vector.shape_cast %199 : vector<16x96xf32> to vector<2x8x96xf32>
    %201 = vector.extract_strided_slice %200 {offsets = [0, 0, 0], sizes = [2, 8, 16], strides = [1, 1, 1]} : vector<2x8x96xf32> to vector<2x8x16xf32>
    %202 = vector.extract_strided_slice %200 {offsets = [0, 0, 16], sizes = [2, 8, 16], strides = [1, 1, 1]} : vector<2x8x96xf32> to vector<2x8x16xf32>
    %203 = tpu.concatenate %201, %202 in 0 : vector<2x8x16xf32>, vector<2x8x16xf32> -> vector<4x8x16xf32>
    %204 = vector.extract_strided_slice %200 {offsets = [0, 0, 32], sizes = [2, 8, 16], strides = [1, 1, 1]} : vector<2x8x96xf32> to vector<2x8x16xf32>
    %205 = vector.extract_strided_slice %200 {offsets = [0, 0, 48], sizes = [2, 8, 16], strides = [1, 1, 1]} : vector<2x8x96xf32> to vector<2x8x16xf32>
    %206 = tpu.concatenate %204, %205 in 0 : vector<2x8x16xf32>, vector<2x8x16xf32> -> vector<4x8x16xf32>
    %207 = vector.extract_strided_slice %200 {offsets = [0, 0, 64], sizes = [2, 8, 16], strides = [1, 1, 1]} : vector<2x8x96xf32> to vector<2x8x16xf32>
    %208 = vector.extract_strided_slice %200 {offsets = [0, 0, 80], sizes = [2, 8, 16], strides = [1, 1, 1]} : vector<2x8x96xf32> to vector<2x8x16xf32>
    %209 = tpu.concatenate %207, %208 in 0 : vector<2x8x16xf32>, vector<2x8x16xf32> -> vector<4x8x16xf32>
    %cst_84 = arith.constant dense<0.000000e+00> : vector<4x8x8xf32>
    %210 = tpu.matmul %203, %206, %cst_84 {dimension_numbers = #tpu.dot_dimension_numbers<[2], [2], [1], [1], [0, 0, 0, 1, 1, 1], [0], [0]>} : vector<4x8x16xf32>, vector<4x8x16xf32>, vector<4x8x8xf32> -> vector<4x8x8xf32>
    %cst_85 = arith.constant 2.500000e-01 : f32
    %211 = vector.broadcast %cst_85 : f32 to vector<4x8x8xf32>
    %212 = arith.mulf %210, %211 : vector<4x8x8xf32>
    %213 = vector.broadcast %26 : vector<1x1x8xf32> to vector<4x8x8xf32>
    %214 = arith.addf %212, %213 : vector<4x8x8xf32>
    %cst_86 = arith.constant dense<0xFF800000> : vector<4x8xf32>
    %215 = vector.multi_reduction <maximumf>, %214, %cst_86 [2] : vector<4x8x8xf32> to vector<4x8xf32>
    %216 = vector.shape_cast %215 : vector<4x8xf32> to vector<4x8x1xf32>
    %217 = vector.broadcast %216 : vector<4x8x1xf32> to vector<4x8x8xf32>
    %218 = arith.subf %214, %217 : vector<4x8x8xf32>
    %219 = math.exp %218 : vector<4x8x8xf32>
    %cst_87 = arith.constant dense<0.000000e+00> : vector<4x8xf32>
    %220 = vector.multi_reduction <add>, %219, %cst_87 [2] : vector<4x8x8xf32> to vector<4x8xf32>
    %221 = vector.shape_cast %220 : vector<4x8xf32> to vector<4x8x1xf32>
    %222 = tpu.reciprocal %221 {approx = true} : vector<4x8x1xf32> -> vector<4x8x1xf32>
    %223 = vector.broadcast %222 : vector<4x8x1xf32> to vector<4x8x8xf32>
    %224 = arith.mulf %219, %223 : vector<4x8x8xf32>
    %cst_88 = arith.constant dense<0.000000e+00> : vector<4x8x16xf32>
    %225 = tpu.matmul %224, %209, %cst_88 {dimension_numbers = #tpu.dot_dimension_numbers<[2], [1], [1], [2], [0, 0, 0, 1, 1, 2], [0], [0]>} : vector<4x8x8xf32>, vector<4x8x16xf32>, vector<4x8x16xf32> -> vector<4x8x16xf32>
    %226 = vector.extract_strided_slice %225 {offsets = [0, 0, 0], sizes = [2, 8, 16], strides = [1, 1, 1]} : vector<4x8x16xf32> to vector<2x8x16xf32>
    %227 = vector.extract_strided_slice %225 {offsets = [2, 0, 0], sizes = [2, 8, 16], strides = [1, 1, 1]} : vector<4x8x16xf32> to vector<2x8x16xf32>
    %228 = tpu.concatenate %226, %227 in 2 : vector<2x8x16xf32>, vector<2x8x16xf32> -> vector<2x8x32xf32>
    %229 = vector.shape_cast %228 : vector<2x8x32xf32> to vector<16x32xf32>
    %c1_89 = arith.constant 1 : index
    %c0_90 = arith.constant 0 : index
    %c0_91 = arith.constant 0 : index
    %230 = vector.load %arg4[%c1_89, %c0_90, %c0_91] : memref<2x32x32xf32, #tpu.memory_space<vmem>>, vector<1x32x32xf32>
    %231 = vector.shape_cast %230 : vector<1x32x32xf32> to vector<32x32xf32>
    %cst_92 = arith.constant dense<0.000000e+00> : vector<16x32xf32>
    %232 = tpu.matmul %229, %231, %cst_92 {dimension_numbers = #tpu.dot_dimension_numbers<[1], [0], [0], [1], [0, 0, 1, 1], [], []>} : vector<16x32xf32>, vector<32x32xf32>, vector<16x32xf32> -> vector<16x32xf32>
    %233 = arith.addf %166, %232 : vector<16x32xf32>
    %234 = vector.broadcast %170 : vector<1x32xf32> to vector<16x32xf32>
    %235 = arith.addf %233, %234 : vector<16x32xf32>
    %cst_93 = arith.constant dense<0.000000e+00> : vector<16xf32>
    %236 = vector.multi_reduction <add>, %235, %cst_93 [1] : vector<16x32xf32> to vector<16xf32>
    %237 = vector.shape_cast %236 : vector<16xf32> to vector<16x1xf32>
    %cst_94 = arith.constant 3.200000e+01 : f32
    %238 = vector.broadcast %cst_94 : f32 to vector<16x1xf32>
    %239 = arith.divf %237, %238 : vector<16x1xf32>
    %240 = vector.broadcast %239 : vector<16x1xf32> to vector<16x32xf32>
    %241 = arith.subf %235, %240 : vector<16x32xf32>
    %242 = arith.mulf %241, %241 : vector<16x32xf32>
    %cst_95 = arith.constant dense<0.000000e+00> : vector<16xf32>
    %243 = vector.multi_reduction <add>, %242, %cst_95 [1] : vector<16x32xf32> to vector<16xf32>
    %244 = vector.shape_cast %243 : vector<16xf32> to vector<16x1xf32>
    %cst_96 = arith.constant 3.200000e+01 : f32
    %245 = vector.broadcast %cst_96 : f32 to vector<16x1xf32>
    %246 = arith.divf %244, %245 : vector<16x1xf32>
    %cst_97 = arith.constant 9.99999997E-7 : f32
    %247 = vector.broadcast %cst_97 : f32 to vector<16x1xf32>
    %248 = arith.addf %246, %247 : vector<16x1xf32>
    %249 = math.rsqrt %248 : vector<16x1xf32>
    %250 = vector.broadcast %249 : vector<16x1xf32> to vector<16x32xf32>
    %251 = arith.mulf %241, %250 : vector<16x32xf32>
    %252 = vector.broadcast %171 : vector<1x32xf32> to vector<16x32xf32>
    %253 = arith.mulf %251, %252 : vector<16x32xf32>
    %254 = vector.broadcast %172 : vector<1x32xf32> to vector<16x32xf32>
    %255 = arith.addf %253, %254 : vector<16x32xf32>
    %c1_98 = arith.constant 1 : index
    %c0_99 = arith.constant 0 : index
    %c0_100 = arith.constant 0 : index
    %256 = vector.load %arg5[%c1_98, %c0_99, %c0_100] : memref<2x32x64xf32, #tpu.memory_space<vmem>>, vector<1x32x64xf32>
    %257 = vector.shape_cast %256 : vector<1x32x64xf32> to vector<32x64xf32>
    %cst_101 = arith.constant dense<0.000000e+00> : vector<16x64xf32>
    %258 = tpu.matmul %255, %257, %cst_101 {dimension_numbers = #tpu.dot_dimension_numbers<[1], [0], [0], [1], [0, 0, 1, 1], [], []>} : vector<16x32xf32>, vector<32x64xf32>, vector<16x64xf32> -> vector<16x64xf32>
    %259 = vector.broadcast %173 : vector<1x64xf32> to vector<16x64xf32>
    %260 = arith.addf %258, %259 : vector<16x64xf32>
    %cst_102 = arith.constant 0.707106769 : f32
    %261 = vector.broadcast %cst_102 : f32 to vector<16x64xf32>
    %262 = arith.mulf %260, %261 : vector<16x64xf32>
    %263 = math.absf %262 : vector<16x64xf32>
    %cst_103 = arith.constant 0.327591091 : f32
    %264 = vector.broadcast %cst_103 : f32 to vector<16x64xf32>
    %265 = arith.mulf %264, %263 : vector<16x64xf32>
    %cst_104 = arith.constant 1.000000e+00 : f32
    %266 = vector.broadcast %cst_104 : f32 to vector<16x64xf32>
    %267 = arith.addf %266, %265 : vector<16x64xf32>
    %cst_105 = arith.constant 1.000000e+00 : f32
    %268 = vector.broadcast %cst_105 : f32 to vector<16x64xf32>
    %269 = arith.divf %268, %267 : vector<16x64xf32>
    %cst_106 = arith.constant 1.06140542 : f32
    %270 = vector.broadcast %cst_106 : f32 to vector<16x64xf32>
    %271 = arith.mulf %270, %269 : vector<16x64xf32>
    %cst_107 = arith.constant 1.45315206 : f32
    %272 = vector.broadcast %cst_107 : f32 to vector<16x64xf32>
    %273 = arith.subf %271, %272 : vector<16x64xf32>
    %274 = arith.mulf %273, %269 : vector<16x64xf32>
    %cst_108 = arith.constant 1.42141378 : f32
    %275 = vector.broadcast %cst_108 : f32 to vector<16x64xf32>
    %276 = arith.addf %274, %275 : vector<16x64xf32>
    %277 = arith.mulf %276, %269 : vector<16x64xf32>
    %cst_109 = arith.constant 0.284496725 : f32
    %278 = vector.broadcast %cst_109 : f32 to vector<16x64xf32>
    %279 = arith.subf %277, %278 : vector<16x64xf32>
    %280 = arith.mulf %279, %269 : vector<16x64xf32>
    %cst_110 = arith.constant 0.254829586 : f32
    %281 = vector.broadcast %cst_110 : f32 to vector<16x64xf32>
    %282 = arith.addf %280, %281 : vector<16x64xf32>
    %283 = arith.mulf %282, %269 : vector<16x64xf32>
    %cst_111 = arith.constant 0.000000e+00 : f32
    %284 = vector.broadcast %cst_111 : f32 to vector<16x64xf32>
    %285 = arith.subf %284, %263 : vector<16x64xf32>
    %286 = arith.mulf %285, %263 : vector<16x64xf32>
    %287 = math.exp %286 : vector<16x64xf32>
    %288 = arith.mulf %283, %287 : vector<16x64xf32>
    %cst_112 = arith.constant 1.000000e+00 : f32
    %289 = vector.broadcast %cst_112 : f32 to vector<16x64xf32>
    %290 = arith.subf %289, %288 : vector<16x64xf32>
    %cst_113 = arith.constant 0.000000e+00 : f32
    %291 = vector.broadcast %cst_113 : f32 to vector<16x64xf32>
    %292 = arith.cmpf oge, %262, %291 : vector<16x64xf32>
    %cst_114 = arith.constant 0.000000e+00 : f32
    %293 = vector.broadcast %cst_114 : f32 to vector<16x64xf32>
    %294 = arith.subf %293, %290 : vector<16x64xf32>
    %295 = arith.select %292, %290, %294 : vector<16x64xi1>, vector<16x64xf32>
    %cst_115 = arith.constant 5.000000e-01 : f32
    %296 = vector.broadcast %cst_115 : f32 to vector<16x64xf32>
    %297 = arith.mulf %296, %260 : vector<16x64xf32>
    %cst_116 = arith.constant 1.000000e+00 : f32
    %298 = vector.broadcast %cst_116 : f32 to vector<16x64xf32>
    %299 = arith.addf %298, %295 : vector<16x64xf32>
    %300 = arith.mulf %297, %299 : vector<16x64xf32>
    %c1_117 = arith.constant 1 : index
    %c0_118 = arith.constant 0 : index
    %c0_119 = arith.constant 0 : index
    %301 = vector.load %arg6[%c1_117, %c0_118, %c0_119] : memref<2x64x32xf32, #tpu.memory_space<vmem>>, vector<1x64x32xf32>
    %302 = vector.shape_cast %301 : vector<1x64x32xf32> to vector<64x32xf32>
    %cst_120 = arith.constant dense<0.000000e+00> : vector<16x32xf32>
    %303 = tpu.matmul %300, %302, %cst_120 {dimension_numbers = #tpu.dot_dimension_numbers<[1], [0], [0], [1], [0, 0, 1, 1], [], []>} : vector<16x64xf32>, vector<64x32xf32>, vector<16x32xf32> -> vector<16x32xf32>
    %304 = arith.addf %235, %303 : vector<16x32xf32>
    %305 = vector.broadcast %174 : vector<1x32xf32> to vector<16x32xf32>
    %306 = arith.addf %304, %305 : vector<16x32xf32>
    %307 = vector.extract_strided_slice %306 {offsets = [0, 0], sizes = [1, 32], strides = [1, 1]} : vector<16x32xf32> to vector<1x32xf32>
    %308 = vector.extract_strided_slice %306 {offsets = [8, 0], sizes = [1, 32], strides = [1, 1]} : vector<16x32xf32> to vector<1x32xf32>
    %309 = tpu.concatenate %307, %308 in 0 : vector<1x32xf32>, vector<1x32xf32> -> vector<2x32xf32>
    %cst_121 = arith.constant dense<0.000000e+00> : vector<2xf32>
    %310 = vector.multi_reduction <add>, %309, %cst_121 [1] : vector<2x32xf32> to vector<2xf32>
    %311 = vector.shape_cast %310 : vector<2xf32> to vector<2x1xf32>
    %cst_122 = arith.constant 3.200000e+01 : f32
    %312 = vector.broadcast %cst_122 : f32 to vector<2x1xf32>
    %313 = arith.divf %311, %312 : vector<2x1xf32>
    %314 = vector.broadcast %313 : vector<2x1xf32> to vector<2x32xf32>
    %315 = arith.subf %309, %314 : vector<2x32xf32>
    %316 = arith.mulf %315, %315 : vector<2x32xf32>
    %cst_123 = arith.constant dense<0.000000e+00> : vector<2xf32>
    %317 = vector.multi_reduction <add>, %316, %cst_123 [1] : vector<2x32xf32> to vector<2xf32>
    %318 = vector.shape_cast %317 : vector<2xf32> to vector<2x1xf32>
    %cst_124 = arith.constant 3.200000e+01 : f32
    %319 = vector.broadcast %cst_124 : f32 to vector<2x1xf32>
    %320 = arith.divf %318, %319 : vector<2x1xf32>
    %cst_125 = arith.constant 9.99999997E-7 : f32
    %321 = vector.broadcast %cst_125 : f32 to vector<2x1xf32>
    %322 = arith.addf %320, %321 : vector<2x1xf32>
    %323 = math.rsqrt %322 : vector<2x1xf32>
    %324 = vector.broadcast %323 : vector<2x1xf32> to vector<2x32xf32>
    %325 = arith.mulf %315, %324 : vector<2x32xf32>
    %326 = vector.broadcast %2 : vector<1x32xf32> to vector<2x32xf32>
    %327 = arith.mulf %325, %326 : vector<2x32xf32>
    %328 = vector.broadcast %3 : vector<1x32xf32> to vector<2x32xf32>
    %329 = arith.addf %327, %328 : vector<2x32xf32>
    %c0_126 = arith.constant 0 : index
    %c0_127 = arith.constant 0 : index
    %330 = vector.load %arg7[%c0_126, %c0_127] : memref<32x256xf32, #tpu.memory_space<vmem>>, vector<32x256xf32>
    %cst_128 = arith.constant dense<0.000000e+00> : vector<2x256xf32>
    %331 = tpu.matmul %329, %330, %cst_128 {dimension_numbers = #tpu.dot_dimension_numbers<[1], [0], [0], [1], [0, 0, 1, 1], [], []>} : vector<2x32xf32>, vector<32x256xf32>, vector<2x256xf32> -> vector<2x256xf32>
    %332 = vector.broadcast %4 : vector<1x256xf32> to vector<2x256xf32>
    %333 = arith.addf %331, %332 : vector<2x256xf32>
    %c0_129 = arith.constant 0 : index
    %c0_130 = arith.constant 0 : index
    %334 = vector.load %arg8[%c0_129, %c0_130] : memref<2x256xf32, #tpu.memory_space<vmem>>, vector<2x256xf32>
    tpu.vector_store %arg8[%c0_129, %c0_130], %333 {strides = array<i32>} : memref<2x256xf32, #tpu.memory_space<vmem>>, vector<2x256xf32>,
    return
  }
}

</mosaic_0001>

<llo_original>
// kernel: only_vit_forward.1
$region0: #{only_vit_forward.1}
  #allocation0 [shape = 'u32[]', space=smem, size = 0x4, offset = 0x4, fixed_abs, tag = 'smem constant byte address 0x4 - core index']
  #allocation1 [shape = 'u32[144,128]{1,0:T(1,128)}', space=vmem, size = 0x12000, scoped, tag = 'internal scratch']
  %s0 = inlined_call_operand.vmem [shape: f32[8,768], index: 0, kind: input, shape index: {}]
  %s1 = inlined_call_operand.vmem [shape: f32[768,32], index: 1, kind: input, shape index: {}]
  %s2 = inlined_call_operand.vmem [shape: f32[32,256], index: 2, kind: input, shape index: {}]
  %s3 = inlined_call_operand.vmem [shape: f32[2,32,96], index: 3, kind: input, shape index: {}]
  %s4 = inlined_call_operand.vmem [shape: f32[2,32,32], index: 4, kind: input, shape index: {}]
  %s5 = inlined_call_operand.vmem [shape: f32[2,32,64], index: 5, kind: input, shape index: {}]
  %s6 = inlined_call_operand.vmem [shape: f32[2,64,32], index: 6, kind: input, shape index: {}]
  %s7 = inlined_call_operand.vmem [shape: f32[32,256], index: 7, kind: input, shape index: {}]
  %s8 = inlined_call_operand.hbm [shape: f32[2,256], index: 8, kind: output, shape index: {}]
  %s9 = sld [smem:[#allocation0]]
  $region42: #{only_vit_forward.1} parent=0
    _
  %s11 = ssub.s32 1, %s9
  %s12 = scalar_select 0, %s11, %s9
  $region1: #{only_vit_forward.1} parent=0
    #allocation2 [shape = 'u8[2048]{0}', space=vmem, size = 0x800, scoped, tag = 'output window, operand 0, single buffered']
    #allocation3 [shape = 's32[1]{0}', space=sflag, size = 0x4, scoped, tag = 'scoped memory for only_vit_forward.1']
    %13 = vsyncpa [#allocation3], 0
    // Predicated region
    $region2: #{only_vit_forward.1} parent=1 // pred_check
      _
    $region3: #{only_vit_forward.1} parent=1 // pred_check_branch
      %15 = sbr.rel (0) target = $region5
    $region4: #{only_vit_forward.1} parent=1 // pred_region
      _
    $region5: #{only_vit_forward.1} parent=1 // pred_fallthru
      _
    // Predicated region
    $region6: #{only_vit_forward.1} parent=1 // pred_check
      _
    $region7: #{only_vit_forward.1} parent=1 // pred_check_branch
      %17 = sbr.rel (0) target = $region9
    $region8: #{only_vit_forward.1} parent=1 // pred_region
      _
    $region9: #{only_vit_forward.1} parent=1 // pred_fallthru
      _
    // Predicated region
    $region10: #{only_vit_forward.1} parent=1 // pred_check
      _
    $region11: #{only_vit_forward.1} parent=1 // pred_check_branch
      %19 = sbr.rel (0) target = $region13
    $region12: #{only_vit_forward.1} parent=1 // pred_region
      _
    $region13: #{only_vit_forward.1} parent=1 // pred_fallthru
      _
    // Predicated region
    $region14: #{only_vit_forward.1} parent=1 // pred_check
      _
    $region15: #{only_vit_forward.1} parent=1 // pred_check_branch
      %21 = sbr.rel (0) target = $region17
    $region16: #{only_vit_forward.1} parent=1 // pred_region
      _
    $region17: #{only_vit_forward.1} parent=1 // pred_fallthru
      _
    // Predicated region
    $region18: #{only_vit_forward.1} parent=1 // pred_check
      _
    $region19: #{only_vit_forward.1} parent=1 // pred_check_branch
      %23 = sbr.rel (0) target = $region21
    $region20: #{only_vit_forward.1} parent=1 // pred_region
      _
    $region21: #{only_vit_forward.1} parent=1 // pred_fallthru
      _
    // Predicated region
    $region22: #{only_vit_forward.1} parent=1 // pred_check
      _
    $region23: #{only_vit_forward.1} parent=1 // pred_check_branch
      %25 = sbr.rel (0) target = $region25
    $region24: #{only_vit_forward.1} parent=1 // pred_region
      _
    $region25: #{only_vit_forward.1} parent=1 // pred_fallthru
      _
    // Predicated region
    $region26: #{only_vit_forward.1} parent=1 // pred_check
      _
    $region27: #{only_vit_forward.1} parent=1 // pred_check_branch
      %27 = sbr.rel (0) target = $region29
    $region28: #{only_vit_forward.1} parent=1 // pred_region
      _
    $region29: #{only_vit_forward.1} parent=1 // pred_fallthru
      _
    // Predicated region
    $region30: #{only_vit_forward.1} parent=1 // pred_check
      _
    $region31: #{only_vit_forward.1} parent=1 // pred_check_branch
      %29 = sbr.rel (0) target = $region33
    $region32: #{only_vit_forward.1} parent=1 // pred_region
      _
    $region33: #{only_vit_forward.1} parent=1 // pred_fallthru
      _
    %v30 = vld [vmem:[%s2] ss:$0 sm:$0xff]
    %v31 = vld [vmem:[%s2 + $0x1] ss:$0 sm:$0xff]
    %v32 = vld [vmem:[%s2 + $0x2] ss:$0 sm:$0xff]
    %v33 = vld [vmem:[%s2 + $0x3] ss:$0 sm:$0xff]
    %s34 = scalar_lea.vmem %s2, 4
    %v35 = vld [vmem:[%s34] ss:$8 sm:$0x3]
    %v36 = vld [vmem:[%s2 + $0x10] sm:$0xff]
    %v37 = vld [vmem:[%s0] sm:$0xff]
    %v38 = vld [vmem:[%s0 + $0x8] sm:$0xff]
    %v39 = vld [vmem:[%s0 + $0x10] sm:$0xff]
    %v40 = vld [vmem:[%s0 + $0x18] sm:$0xff]
    %v41 = vld [vmem:[%s0 + $0x20] sm:$0xff]
    %v42 = vld [vmem:[%s0 + $0x28] sm:$0xff]
    %v43 = vld [vmem:[%s1] sm:$0xff]
    %v44 = vld [vmem:[%s1 + $0x8] sm:$0xff]
    %v45 = vld [vmem:[%s1 + $0x10] sm:$0xff]
    %v46 = vld [vmem:[%s1 + $0x18] sm:$0xff]
    %v47 = vld [vmem:[%s1 + $0x20] sm:$0xff]
    %v48 = vld [vmem:[%s1 + $0x28] sm:$0xff]
    %v49 = vld [vmem:[%s1 + $0x30] sm:$0xff]
    %v50 = vld [vmem:[%s1 + $0x38] sm:$0xff]
    %v51 = vld [vmem:[%s1 + $0x40] sm:$0xff]
    %v52 = vld [vmem:[%s1 + $0x48] sm:$0xff]
    %v53 = vld [vmem:[%s1 + $0x50] sm:$0xff]
    %v54 = vld [vmem:[%s1 + $0x58] sm:$0xff]
    %v55 = vld [vmem:[%s1 + $0x60] sm:$0xff]
    %v56 = vld [vmem:[%s1 + $0x68] sm:$0xff]
    %v57 = vld [vmem:[%s1 + $0x70] sm:$0xff]
    %v58 = vld [vmem:[%s1 + $0x78] sm:$0xff]
    %v59 = vld [vmem:[%s1 + $0x80] sm:$0xff]
    %v60 = vld [vmem:[%s1 + $0x88] sm:$0xff]
    %v61 = vld [vmem:[%s1 + $0x90] sm:$0xff]
    %v62 = vld [vmem:[%s1 + $0x98] sm:$0xff]
    %v63 = vld [vmem:[%s1 + $0xa0] sm:$0xff]
    %v64 = vld [vmem:[%s1 + $0xa8] sm:$0xff]
    %v65 = vld [vmem:[%s1 + $0xb0] sm:$0xff]
    %v66 = vld [vmem:[%s1 + $0xb8] sm:$0xff]
    %v67 = vld [vmem:[%s1 + $0xc0] sm:$0xff]
    %v68 = vld [vmem:[%s1 + $0xc8] sm:$0xff]
    %v69 = vld [vmem:[%s1 + $0xd0] sm:$0xff]
    %v70 = vld [vmem:[%s1 + $0xd8] sm:$0xff]
    %v71 = vld [vmem:[%s1 + $0xe0] sm:$0xff]
    %v72 = vld [vmem:[%s1 + $0xe8] sm:$0xff]
    %v73 = vld [vmem:[%s1 + $0xf0] sm:$0xff]
    %v74 = vld [vmem:[%s1 + $0xf8] sm:$0xff]
    %v75 = vld [vmem:[%s1 + $0x100] sm:$0xff]
    %v76 = vld [vmem:[%s1 + $0x108] sm:$0xff]
    %v77 = vld [vmem:[%s1 + $0x110] sm:$0xff]
    %v78 = vld [vmem:[%s1 + $0x118] sm:$0xff]
    %v79 = vld [vmem:[%s1 + $0x120] sm:$0xff]
    %v80 = vld [vmem:[%s1 + $0x128] sm:$0xff]
    %v81 = vld [vmem:[%s1 + $0x130] sm:$0xff]
    %v82 = vld [vmem:[%s1 + $0x138] sm:$0xff]
    %v83 = vld [vmem:[%s1 + $0x140] sm:$0xff]
    %v84 = vld [vmem:[%s1 + $0x148] sm:$0xff]
    %v85 = vld [vmem:[%s1 + $0x150] sm:$0xff]
    %v86 = vld [vmem:[%s1 + $0x158] sm:$0xff]
    %v87 = vld [vmem:[%s1 + $0x160] sm:$0xff]
    %v88 = vld [vmem:[%s1 + $0x168] sm:$0xff]
    %v89 = vld [vmem:[%s1 + $0x170] sm:$0xff]
    %v90 = vld [vmem:[%s1 + $0x178] sm:$0xff]
    %v91 = vld [vmem:[%s1 + $0x180] sm:$0xff]
    %v92 = vld [vmem:[%s1 + $0x188] sm:$0xff]
    %v93 = vld [vmem:[%s1 + $0x190] sm:$0xff]
    %v94 = vld [vmem:[%s1 + $0x198] sm:$0xff]
    %v95 = vld [vmem:[%s1 + $0x1a0] sm:$0xff]
    %v96 = vld [vmem:[%s1 + $0x1a8] sm:$0xff]
    %v97 = vld [vmem:[%s1 + $0x1b0] sm:$0xff]
    %v98 = vld [vmem:[%s1 + $0x1b8] sm:$0xff]
    %v99 = vld [vmem:[%s1 + $0x1c0] sm:$0xff]
    %v100 = vld [vmem:[%s1 + $0x1c8] sm:$0xff]
    %v101 = vld [vmem:[%s1 + $0x1d0] sm:$0xff]
    %v102 = vld [vmem:[%s1 + $0x1d8] sm:$0xff]
    %v103 = vld [vmem:[%s1 + $0x1e0] sm:$0xff]
    %v104 = vld [vmem:[%s1 + $0x1e8] sm:$0xff]
    %v105 = vld [vmem:[%s1 + $0x1f0] sm:$0xff]
    %v106 = vld [vmem:[%s1 + $0x1f8] sm:$0xff]
    %v107 = vld [vmem:[%s1 + $0x200] sm:$0xff]
    %v108 = vld [vmem:[%s1 + $0x208] sm:$0xff]
    %v109 = vld [vmem:[%s1 + $0x210] sm:$0xff]
    %v110 = vld [vmem:[%s1 + $0x218] sm:$0xff]
    %v111 = vld [vmem:[%s1 + $0x220] sm:$0xff]
    %v112 = vld [vmem:[%s1 + $0x228] sm:$0xff]
    %v113 = vld [vmem:[%s1 + $0x230] sm:$0xff]
    %v114 = vld [vmem:[%s1 + $0x238] sm:$0xff]
    %v115 = vld [vmem:[%s1 + $0x240] sm:$0xff]
    %v116 = vld [vmem:[%s1 + $0x248] sm:$0xff]
    %v117 = vld [vmem:[%s1 + $0x250] sm:$0xff]
    %v118 = vld [vmem:[%s1 + $0x258] sm:$0xff]
    %v119 = vld [vmem:[%s1 + $0x260] sm:$0xff]
    %v120 = vld [vmem:[%s1 + $0x268] sm:$0xff]
    %v121 = vld [vmem:[%s1 + $0x270] sm:$0xff]
    %v122 = vld [vmem:[%s1 + $0x278] sm:$0xff]
    %v123 = vld [vmem:[%s1 + $0x280] sm:$0xff]
    %v124 = vld [vmem:[%s1 + $0x288] sm:$0xff]
    %v125 = vld [vmem:[%s1 + $0x290] sm:$0xff]
    %v126 = vld [vmem:[%s1 + $0x298] sm:$0xff]
    %v127 = vld [vmem:[%s1 + $0x2a0] sm:$0xff]
    %v128 = vld [vmem:[%s1 + $0x2a8] sm:$0xff]
    %v129 = vld [vmem:[%s1 + $0x2b0] sm:$0xff]
    %v130 = vld [vmem:[%s1 + $0x2b8] sm:$0xff]
    %v131 = vld [vmem:[%s1 + $0x2c0] sm:$0xff]
    %v132 = vld [vmem:[%s1 + $0x2c8] sm:$0xff]
    %v133 = vld [vmem:[%s1 + $0x2d0] sm:$0xff]
    %v134 = vld [vmem:[%s1 + $0x2d8] sm:$0xff]
    %v135 = vld [vmem:[%s1 + $0x2e0] sm:$0xff]
    %v136 = vld [vmem:[%s1 + $0x2e8] sm:$0xff]
    %v137 = vld [vmem:[%s1 + $0x2f0] sm:$0xff]
    %v138 = vld [vmem:[%s1 + $0x2f8] sm:$0xff]
    %139 = vmatprep.subr.mxu0 0.0
    %140 = vmatpush1.msra.mxu0 %v58
    %141 = vmatprep.subr.mxu0 0.0
    %142 = vmatpush1.msra.mxu0 %v57
    %143 = vmatprep.subr.mxu0 0.0
    %144 = vmatpush1.msra.mxu0 %v56
    %145 = vmatprep.subr.mxu0 0.0
    %146 = vmatpush1.msra.mxu0 %v55
    %147 = vmatprep.subr.mxu0 0.0
    %148 = vmatpush1.msra.mxu0 %v54
    %149 = vmatprep.subr.mxu0 0.0
    %150 = vmatpush1.msra.mxu0 %v53
    %151 = vmatprep.subr.mxu0 0.0
    %152 = vmatpush1.msra.mxu0 %v52
    %153 = vmatprep.subr.mxu0 0.0
    %154 = vmatpush1.msra.mxu0 %v51
    %155 = vmatprep.subr.mxu0 0.0
    %156 = vmatpush1.msra.mxu0 %v50
    %157 = vmatprep.subr.mxu0 0.0
    %158 = vmatpush1.msra.mxu0 %v49
    %159 = vmatprep.subr.mxu0 0.0
    %160 = vmatpush1.msra.mxu0 %v48
    %161 = vmatprep.subr.mxu0 0.0
    %162 = vmatpush1.msra.mxu0 %v47
    %163 = vmatprep.subr.mxu0 0.0
    %164 = vmatpush1.msra.mxu0 %v46
    %165 = vmatprep.subr.mxu0 0.0
    %166 = vmatpush1.msra.mxu0 %v45
    %167 = vmatprep.subr.mxu0 0.0
    %168 = vmatpush1.msra.mxu0 %v44
    %169 = vmatprep.subr.mxu0 0.0
    %170 = vmatpush1.msra.mxu0 %v43
    %171 = vmatprep.subr.mxu0 0.0
    %172 = vmatpush2.msra.mxu0 %v74
    %173 = vmatprep.subr.mxu0 0.0
    %174 = vmatpush2.msra.mxu0 %v73
    %175 = vmatprep.subr.mxu0 0.0
    %176 = vmatpush2.msra.mxu0 %v72
    %177 = vmatprep.subr.mxu0 0.0
    %178 = vmatpush2.msra.mxu0 %v71
    %179 = vmatprep.subr.mxu0 0.0
    %180 = vmatpush2.msra.mxu0 %v70
    %181 = vmatprep.subr.mxu0 0.0
    %182 = vmatpush2.msra.mxu0 %v69
    %183 = vmatprep.subr.mxu0 0.0
    %184 = vmatpush2.msra.mxu0 %v68
    %185 = vmatprep.subr.mxu0 0.0
    %186 = vmatpush2.msra.mxu0 %v67
    %187 = vmatprep.subr.mxu0 0.0
    %188 = vmatpush2.msra.mxu0 %v66
    %189 = vmatprep.subr.mxu0 0.0
    %190 = vmatpush2.msra.mxu0 %v65
    %191 = vmatprep.subr.mxu0 0.0
    %192 = vmatpush2.msra.mxu0 %v64
    %193 = vmatprep.subr.mxu0 0.0
    %194 = vmatpush2.msra.mxu0 %v63
    %195 = vmatprep.subr.mxu0 0.0
    %196 = vmatpush2.msra.mxu0 %v62
    %197 = vmatprep.subr.mxu0 0.0
    %198 = vmatpush2.msra.mxu0 %v61
    %199 = vmatprep.subr.mxu0 0.0
    %200 = vmatpush2.msra.mxu0 %v60
    %201 = vmatprep.subr.mxu0 0.0
    %202 = vmatpush2.msra.mxu0 %v59
    %203 = vmatprep.mubr.f32.mxu0 %v38
    %204 = vmatmul.mubr.f32.gmra.mxu0 %v37
    %v205 = vpop.f32.mrf.mxu0
    %v206 = vadd.f32 %v30, %v205
    %v207 = vpop.f32.mrf.mxu0
    %208 = vdwg.mxu0
    %209 = vmatprep.subr.mxu0 0.0
    %210 = vmatpush1.msra.mxu0 %v90
    %211 = vmatprep.subr.mxu0 0.0
    %212 = vmatpush1.msra.mxu0 %v89
    %213 = vmatprep.subr.mxu0 0.0
    %214 = vmatpush1.msra.mxu0 %v88
    %215 = vmatprep.subr.mxu0 0.0
    %216 = vmatpush1.msra.mxu0 %v87
    %217 = vmatprep.subr.mxu0 0.0
    %218 = vmatpush1.msra.mxu0 %v86
    %219 = vmatprep.subr.mxu0 0.0
    %220 = vmatpush1.msra.mxu0 %v85
    %221 = vmatprep.subr.mxu0 0.0
    %222 = vmatpush1.msra.mxu0 %v84
    %223 = vmatprep.subr.mxu0 0.0
    %224 = vmatpush1.msra.mxu0 %v83
    %225 = vmatprep.subr.mxu0 0.0
    %226 = vmatpush1.msra.mxu0 %v82
    %227 = vmatprep.subr.mxu0 0.0
    %228 = vmatpush1.msra.mxu0 %v81
    %229 = vmatprep.subr.mxu0 0.0
    %230 = vmatpush1.msra.mxu0 %v80
    %231 = vmatprep.subr.mxu0 0.0
    %232 = vmatpush1.msra.mxu0 %v79
    %233 = vmatprep.subr.mxu0 0.0
    %234 = vmatpush1.msra.mxu0 %v78
    %235 = vmatprep.subr.mxu0 0.0
    %236 = vmatpush1.msra.mxu0 %v77
    %237 = vmatprep.subr.mxu0 0.0
    %238 = vmatpush1.msra.mxu0 %v76
    %239 = vmatprep.subr.mxu0 0.0
    %240 = vmatpush1.msra.mxu0 %v75
    %241 = vmatprep.subr.mxu0 0.0
    %242 = vmatpush2.msra.mxu0 %v106
    %243 = vmatprep.subr.mxu0 0.0
    %244 = vmatpush2.msra.mxu0 %v105
    %245 = vmatprep.subr.mxu0 0.0
    %246 = vmatpush2.msra.mxu0 %v104
    %247 = vmatprep.subr.mxu0 0.0
    %248 = vmatpush2.msra.mxu0 %v103
    %249 = vmatprep.subr.mxu0 0.0
    %250 = vmatpush2.msra.mxu0 %v102
    %251 = vmatprep.subr.mxu0 0.0
    %252 = vmatpush2.msra.mxu0 %v101
    %253 = vmatprep.subr.mxu0 0.0
    %254 = vmatpush2.msra.mxu0 %v100
    %255 = vmatprep.subr.mxu0 0.0
    %256 = vmatpush2.msra.mxu0 %v99
    %257 = vmatprep.subr.mxu0 0.0
    %258 = vmatpush2.msra.mxu0 %v98
    %259 = vmatprep.subr.mxu0 0.0
    %260 = vmatpush2.msra.mxu0 %v97
    %261 = vmatprep.subr.mxu0 0.0
    %262 = vmatpush2.msra.mxu0 %v96
    %263 = vmatprep.subr.mxu0 0.0
    %264 = vmatpush2.msra.mxu0 %v95
    %265 = vmatprep.subr.mxu0 0.0
    %266 = vmatpush2.msra.mxu0 %v94
    %267 = vmatprep.subr.mxu0 0.0
    %268 = vmatpush2.msra.mxu0 %v93
    %269 = vmatprep.subr.mxu0 0.0
    %270 = vmatpush2.msra.mxu0 %v92
    %271 = vmatprep.subr.mxu0 0.0
    %272 = vmatpush2.msra.mxu0 %v91
    %273 = vmatprep.mubr.f32.mxu0 %v40
    %274 = vmatmul.mubr.f32.gmra.mxu0 %v39
    %v275 = vpop.f32.mrf.mxu0
    %v276 = vadd.f32 %v206, %v275
    %v277 = vpop.f32.mrf.mxu0
    %278 = vdwg.mxu0
    %279 = vmatprep.subr.mxu0 0.0
    %280 = vmatpush1.msra.mxu0 %v122
    %281 = vmatprep.subr.mxu0 0.0
    %282 = vmatpush1.msra.mxu0 %v121
    %283 = vmatprep.subr.mxu0 0.0
    %284 = vmatpush1.msra.mxu0 %v120
    %285 = vmatprep.subr.mxu0 0.0
    %286 = vmatpush1.msra.mxu0 %v119
    %287 = vmatprep.subr.mxu0 0.0
    %288 = vmatpush1.msra.mxu0 %v118
    %289 = vmatprep.subr.mxu0 0.0
    %290 = vmatpush1.msra.mxu0 %v117
    %291 = vmatprep.subr.mxu0 0.0
    %292 = vmatpush1.msra.mxu0 %v116
    %293 = vmatprep.subr.mxu0 0.0
    %294 = vmatpush1.msra.mxu0 %v115
    %295 = vmatprep.subr.mxu0 0.0
    %296 = vmatpush1.msra.mxu0 %v114
    %297 = vmatprep.subr.mxu0 0.0
    %298 = vmatpush1.msra.mxu0 %v113
    %299 = vmatprep.subr.mxu0 0.0
    %300 = vmatpush1.msra.mxu0 %v112
    %301 = vmatprep.subr.mxu0 0.0
    %302 = vmatpush1.msra.mxu0 %v111
    %303 = vmatprep.subr.mxu0 0.0
    %304 = vmatpush1.msra.mxu0 %v110
    %305 = vmatprep.subr.mxu0 0.0
    %306 = vmatpush1.msra.mxu0 %v109
    %307 = vmatprep.subr.mxu0 0.0
    %308 = vmatpush1.msra.mxu0 %v108
    %309 = vmatprep.subr.mxu0 0.0
    %310 = vmatpush1.msra.mxu0 %v107
    %311 = vmatprep.subr.mxu0 0.0
    %312 = vmatpush2.msra.mxu0 %v138
    %313 = vmatprep.subr.mxu0 0.0
    %314 = vmatpush2.msra.mxu0 %v137
    %315 = vmatprep.subr.mxu0 0.0
    %316 = vmatpush2.msra.mxu0 %v136
    %317 = vmatprep.subr.mxu0 0.0
    %318 = vmatpush2.msra.mxu0 %v135
    %319 = vmatprep.subr.mxu0 0.0
    %320 = vmatpush2.msra.mxu0 %v134
    %321 = vmatprep.subr.mxu0 0.0
    %322 = vmatpush2.msra.mxu0 %v133
    %323 = vmatprep.subr.mxu0 0.0
    %324 = vmatpush2.msra.mxu0 %v132
    %325 = vmatprep.subr.mxu0 0.0
    %326 = vmatpush2.msra.mxu0 %v131
    %327 = vmatprep.subr.mxu0 0.0
    %328 = vmatpush2.msra.mxu0 %v130
    %329 = vmatprep.subr.mxu0 0.0
    %330 = vmatpush2.msra.mxu0 %v129
    %331 = vmatprep.subr.mxu0 0.0
    %332 = vmatpush2.msra.mxu0 %v128
    %333 = vmatprep.subr.mxu0 0.0
    %334 = vmatpush2.msra.mxu0 %v127
    %335 = vmatprep.subr.mxu0 0.0
    %336 = vmatpush2.msra.mxu0 %v126
    %337 = vmatprep.subr.mxu0 0.0
    %338 = vmatpush2.msra.mxu0 %v125
    %339 = vmatprep.subr.mxu0 0.0
    %340 = vmatpush2.msra.mxu0 %v124
    %341 = vmatprep.subr.mxu0 0.0
    %342 = vmatpush2.msra.mxu0 %v123
    %343 = vmatprep.mubr.f32.mxu0 %v42
    %344 = vmatmul.mubr.f32.gmra.mxu0 %v41
    %v345 = vpop.f32.mrf.mxu0
    %v346 = vadd.f32 %v276, %v345
    %v347 = vpop.f32.mrf.mxu0
    %348 = vdwg.mxu0
    %v349 = vadd.f32 %v31, %v36
    %v351 = vrot.slane %v36, 1
    %v353 = vadd.f32 %v346, %v351
    %v354 = vrot.slane %v36, 5
    %v356 = vadd.f32 %v346, %v354
    %v358 = vrot.slane %v353, 7
    %v361 = vrot.slane %v356, 3
    %vm363 = vcmask 1040384
    %v364 = vsel %vm363, %v349, %v358
    %vm365 = vcmask 1044480
    %v366 = vsel %vm365, %v364, 0.0
    %v367 = vsel %vm363, %v349, %v361
    %v368 = vsel %vm365, %v367, 0.0
    %v369 = vlaneseq
    %v370 = vand.u32 %v369, 127
    %vm371 = vcmp.lt.s32.totalorder %v370, 5
    %v372 = vsel %vm371, 0.0, -1e+30
    %v373 = vld [vmem:[%s2 + $0x20] ss:$0 sm:$0xff]
    %v374 = vld [vmem:[%s2 + $0x21] ss:$0 sm:$0xff]
    %v375 = vld [vmem:[%s2 + $0x22] ss:$0 sm:$0xff]
    %v376 = vld [vmem:[%s2 + $0x23] ss:$0 sm:$0xff]
    %v377 = vld [vmem:[%s2 + $0x24] ss:$0 sm:$0xff]
    %v378 = vld [vmem:[%s2 + $0x25] ss:$0 sm:$0xff]
    %v379 = vld [vmem:[%s2 + $0x26] ss:$0 sm:$0xff]
    %v380 = vld [vmem:[%s2 + $0x27] ss:$0 sm:$0xff]
    %vm381 = vcmask 261120
    %v382 = vsel %vm381, %v366, 0.0
    %383 = vadd.xlane.f32.xlu0 %v382
    %v384 = vpop.xlane.xlu0 %383
    %v385 = vsel %vm381, %v368, 0.0
    %386 = vadd.xlane.f32.xlu0 %v385
    %v387 = vpop.xlane.xlu0 %386
    %v388 = vrcp.pop 32.0
    %v389 = vmul.f32 %v384, %v388
    %v390 = vmul.f32 %v387, %v388
    %v391 = vsub.f32 %v366, %v389
    %v392 = vsub.f32 %v368, %v390
    %v393 = vmul.f32 %v391, %v391
    %v394 = vmul.f32 %v392, %v392
    %v395 = vsel %vm381, %v393, 0.0
    %396 = vadd.xlane.f32.xlu0 %v395
    %v397 = vpop.xlane.xlu0 %396
    %v398 = vsel %vm381, %v394, 0.0
    %399 = vadd.xlane.f32.xlu0 %v398
    %v400 = vpop.xlane.xlu0 %399
    %v401 = vmul.f32 %v397, %v388
    %v402 = vmul.f32 %v400, %v388
    %v403 = vadd.f32 %v401, 1e-06
    %v404 = vadd.f32 %v402, 1e-06
    %v405 = vrsqrt.pop %v403
    %v406 = vrsqrt.pop %v404
    %v407 = vmul.f32 %v391, %v405
    %v408 = vmul.f32 %v392, %v406
    %v409 = vmul.f32 %v407, %v373
    %v410 = vmul.f32 %v408, %v373
    %v411 = vadd.f32 %v409, %v374
    %v412 = vadd.f32 %v410, %v374
    %v413 = vld [vmem:[%s3] sm:$0xff]
    %v414 = vld [vmem:[%s3 + $0x8] sm:$0xff]
    %v415 = vld [vmem:[%s3 + $0x10] sm:$0xff]
    %v416 = vld [vmem:[%s3 + $0x18] sm:$0xff]
    %v418 = vsel %vm381, %v411, 0
    %v421 = vsel %vm381, %v412, 0
    %423 = vmatprep.subr.mxu0 0.0
    %424 = vmatpush1.msra.mxu0 0.0
    %425 = vmatprep.subr.mxu0 0.0
    %426 = vmatpush1.msra.mxu0 0.0
    %427 = vmatprep.subr.mxu0 0.0
    %428 = vmatpush1.msra.mxu0 0.0
    %429 = vmatprep.subr.mxu0 0.0
    %430 = vmatpush1.msra.mxu0 0.0
    %431 = vmatprep.subr.mxu0 0.0
    %432 = vmatpush1.msra.mxu0 0.0
    %433 = vmatprep.subr.mxu0 0.0
    %434 = vmatpush1.msra.mxu0 0.0
    %435 = vmatprep.subr.mxu0 0.0
    %436 = vmatpush1.msra.mxu0 0.0
    %437 = vmatprep.subr.mxu0 0.0
    %438 = vmatpush1.msra.mxu0 0.0
    %439 = vmatprep.subr.mxu0 0.0
    %440 = vmatpush1.msra.mxu0 0.0
    %441 = vmatprep.subr.mxu0 0.0
    %442 = vmatpush1.msra.mxu0 0.0
    %443 = vmatprep.subr.mxu0 0.0
    %444 = vmatpush1.msra.mxu0 0.0
    %445 = vmatprep.subr.mxu0 0.0
    %446 = vmatpush1.msra.mxu0 0.0
    %447 = vmatprep.subr.mxu0 0.0
    %448 = vmatpush1.msra.mxu0 %v416
    %449 = vmatprep.subr.mxu0 0.0
    %450 = vmatpush1.msra.mxu0 %v415
    %451 = vmatprep.subr.mxu0 0.0
    %452 = vmatpush1.msra.mxu0 %v414
    %453 = vmatprep.subr.mxu0 0.0
    %454 = vmatpush1.msra.mxu0 %v413
    %455 = vmatprep.subr.mxu0 0.0
    %456 = vmatpush2.msra.mxu0 0.0
    %457 = vmatprep.subr.mxu0 0.0
    %458 = vmatpush2.msra.mxu0 0.0
    %459 = vmatprep.subr.mxu0 0.0
    %460 = vmatpush2.msra.mxu0 0.0
    %461 = vmatprep.subr.mxu0 0.0
    %462 = vmatpush2.msra.mxu0 0.0
    %463 = vmatprep.subr.mxu0 0.0
    %464 = vmatpush2.msra.mxu0 0.0
    %465 = vmatprep.subr.mxu0 0.0
    %466 = vmatpush2.msra.mxu0 0.0
    %467 = vmatprep.subr.mxu0 0.0
    %468 = vmatpush2.msra.mxu0 0.0
    %469 = vmatprep.subr.mxu0 0.0
    %470 = vmatpush2.msra.mxu0 0.0
    %471 = vmatprep.subr.mxu0 0.0
    %472 = vmatpush2.msra.mxu0 0.0
    %473 = vmatprep.subr.mxu0 0.0
    %474 = vmatpush2.msra.mxu0 0.0
    %475 = vmatprep.subr.mxu0 0.0
    %476 = vmatpush2.msra.mxu0 0.0
    %477 = vmatprep.subr.mxu0 0.0
    %478 = vmatpush2.msra.mxu0 0.0
    %479 = vmatprep.subr.mxu0 0.0
    %480 = vmatpush2.msra.mxu0 0.0
    %481 = vmatprep.subr.mxu0 0.0
    %482 = vmatpush2.msra.mxu0 0.0
    %483 = vmatprep.subr.mxu0 0.0
    %484 = vmatpush2.msra.mxu0 0.0
    %485 = vmatprep.subr.mxu0 0.0
    %486 = vmatpush2.msra.mxu0 0.0
    %487 = vmatprep.mubr.f32.mxu0 0.0
    %488 = vmatmul.mubr.f32.gmra.mxu0 %v418
    %v489 = vpop.f32.mrf.mxu0
    %v490 = vadd.f32 %v375, %v489
    %v491 = vpop.f32.mrf.mxu0
    %492 = vmatprep.mubr.f32.mxu0 0.0
    %493 = vmatmul.mubr.f32.gmra.mxu0 %v421
    %v494 = vpop.f32.mrf.mxu0
    %v495 = vadd.f32 %v375, %v494
    %v496 = vpop.f32.mrf.mxu0
    %497 = vdwg.mxu0
    %500 = vrot.lane.b32.xlu0 %v490, 112
    %v501 = vpop.permute.xlu0 %500
    %502 = vrot.lane.b32.xlu0 %v495, 112
    %v503 = vpop.permute.xlu0 %502
    %504 = vrot.lane.b32.xlu0 %v490, 96
    %v505 = vpop.permute.xlu0 %504
    %vm506 = vcmask 130048
    %v507 = vsel %vm506, %v490, 0
    %v509 = vsel %vm506, %v505, 0
    %511 = vmatprep.subr.mxu0 0.0
    %512 = vmatpush1.xpose.msra.mxu0 0.0
    %513 = vmatprep.subr.mxu0 0.0
    %514 = vmatpush1.xpose.msra.mxu0 0.0
    %515 = vmatprep.subr.mxu0 0.0
    %516 = vmatpush1.xpose.msra.mxu0 0.0
    %517 = vmatprep.subr.mxu0 0.0
    %518 = vmatpush1.xpose.msra.mxu0 0.0
    %519 = vmatprep.subr.mxu0 0.0
    %520 = vmatpush1.xpose.msra.mxu0 0.0
    %521 = vmatprep.subr.mxu0 0.0
    %522 = vmatpush1.xpose.msra.mxu0 0.0
    %523 = vmatprep.subr.mxu0 0.0
    %524 = vmatpush1.xpose.msra.mxu0 0.0
    %525 = vmatprep.subr.mxu0 0.0
    %526 = vmatpush1.xpose.msra.mxu0 0.0
    %527 = vmatprep.subr.mxu0 0.0
    %528 = vmatpush1.xpose.msra.mxu0 0.0
    %529 = vmatprep.subr.mxu0 0.0
    %530 = vmatpush1.xpose.msra.mxu0 0.0
    %531 = vmatprep.subr.mxu0 0.0
    %532 = vmatpush1.xpose.msra.mxu0 0.0
    %533 = vmatprep.subr.mxu0 0.0
    %534 = vmatpush1.xpose.msra.mxu0 0.0
    %535 = vmatprep.subr.mxu0 0.0
    %536 = vmatpush1.xpose.msra.mxu0 0.0
    %537 = vmatprep.subr.mxu0 0.0
    %538 = vmatpush1.xpose.msra.mxu0 0.0
    %539 = vmatprep.subr.mxu0 0.0
    %540 = vmatpush1.xpose.msra.mxu0 0.0
    %541 = vmatprep.subr.mxu0 0.0
    %542 = vmatpush1.xpose.msra.mxu0 %v509
    %543 = vmatprep.subr.mxu0 0.0
    %544 = vmatpush2.xpose.msra.mxu0 0.0
    %545 = vmatprep.subr.mxu0 0.0
    %546 = vmatpush2.xpose.msra.mxu0 0.0
    %547 = vmatprep.subr.mxu0 0.0
    %548 = vmatpush2.xpose.msra.mxu0 0.0
    %549 = vmatprep.subr.mxu0 0.0
    %550 = vmatpush2.xpose.msra.mxu0 0.0
    %551 = vmatprep.subr.mxu0 0.0
    %552 = vmatpush2.xpose.msra.mxu0 0.0
    %553 = vmatprep.subr.mxu0 0.0
    %554 = vmatpush2.xpose.msra.mxu0 0.0
    %555 = vmatprep.subr.mxu0 0.0
    %556 = vmatpush2.xpose.msra.mxu0 0.0
    %557 = vmatprep.subr.mxu0 0.0
    %558 = vmatpush2.xpose.msra.mxu0 0.0
    %559 = vmatprep.subr.mxu0 0.0
    %560 = vmatpush2.xpose.msra.mxu0 0.0
    %561 = vmatprep.subr.mxu0 0.0
    %562 = vmatpush2.xpose.msra.mxu0 0.0
    %563 = vmatprep.subr.mxu0 0.0
    %564 = vmatpush2.xpose.msra.mxu0 0.0
    %565 = vmatprep.subr.mxu0 0.0
    %566 = vmatpush2.xpose.msra.mxu0 0.0
    %567 = vmatprep.subr.mxu0 0.0
    %568 = vmatpush2.xpose.msra.mxu0 0.0
    %569 = vmatprep.subr.mxu0 0.0
    %570 = vmatpush2.xpose.msra.mxu0 0.0
    %571 = vmatprep.subr.mxu0 0.0
    %572 = vmatpush2.xpose.msra.mxu0 0.0
    %573 = vmatprep.subr.mxu0 0.0
    %574 = vmatpush2.xpose.msra.mxu0 0.0
    %575 = vmatprep.mubr.f32.mxu0 0.0
    %576 = vmatmul.mubr.f32.gmra.mxu0 %v507
    %v577 = vpop.f32.mrf.mxu0
    %v578 = vadd.f32 0.0, %v577
    %v579 = vpop.f32.mrf.mxu0
    %580 = vdwg.mxu0
    %581 = vrot.lane.b32.xlu0 %v495, 96
    %v582 = vpop.permute.xlu0 %581
    %v583 = vsel %vm506, %v495, 0
    %v585 = vsel %vm506, %v582, 0
    %587 = vmatprep.subr.mxu0 0.0
    %588 = vmatpush1.xpose.msra.mxu0 0.0
    %589 = vmatprep.subr.mxu0 0.0
    %590 = vmatpush1.xpose.msra.mxu0 0.0
    %591 = vmatprep.subr.mxu0 0.0
    %592 = vmatpush1.xpose.msra.mxu0 0.0
    %593 = vmatprep.subr.mxu0 0.0
    %594 = vmatpush1.xpose.msra.mxu0 0.0
    %595 = vmatprep.subr.mxu0 0.0
    %596 = vmatpush1.xpose.msra.mxu0 0.0
    %597 = vmatprep.subr.mxu0 0.0
    %598 = vmatpush1.xpose.msra.mxu0 0.0
    %599 = vmatprep.subr.mxu0 0.0
    %600 = vmatpush1.xpose.msra.mxu0 0.0
    %601 = vmatprep.subr.mxu0 0.0
    %602 = vmatpush1.xpose.msra.mxu0 0.0
    %603 = vmatprep.subr.mxu0 0.0
    %604 = vmatpush1.xpose.msra.mxu0 0.0
    %605 = vmatprep.subr.mxu0 0.0
    %606 = vmatpush1.xpose.msra.mxu0 0.0
    %607 = vmatprep.subr.mxu0 0.0
    %608 = vmatpush1.xpose.msra.mxu0 0.0
    %609 = vmatprep.subr.mxu0 0.0
    %610 = vmatpush1.xpose.msra.mxu0 0.0
    %611 = vmatprep.subr.mxu0 0.0
    %612 = vmatpush1.xpose.msra.mxu0 0.0
    %613 = vmatprep.subr.mxu0 0.0
    %614 = vmatpush1.xpose.msra.mxu0 0.0
    %615 = vmatprep.subr.mxu0 0.0
    %616 = vmatpush1.xpose.msra.mxu0 0.0
    %617 = vmatprep.subr.mxu0 0.0
    %618 = vmatpush1.xpose.msra.mxu0 %v585
    %619 = vmatprep.subr.mxu0 0.0
    %620 = vmatpush2.xpose.msra.mxu0 0.0
    %621 = vmatprep.subr.mxu0 0.0
    %622 = vmatpush2.xpose.msra.mxu0 0.0
    %623 = vmatprep.subr.mxu0 0.0
    %624 = vmatpush2.xpose.msra.mxu0 0.0
    %625 = vmatprep.subr.mxu0 0.0
    %626 = vmatpush2.xpose.msra.mxu0 0.0
    %627 = vmatprep.subr.mxu0 0.0
    %628 = vmatpush2.xpose.msra.mxu0 0.0
    %629 = vmatprep.subr.mxu0 0.0
    %630 = vmatpush2.xpose.msra.mxu0 0.0
    %631 = vmatprep.subr.mxu0 0.0
    %632 = vmatpush2.xpose.msra.mxu0 0.0
    %633 = vmatprep.subr.mxu0 0.0
    %634 = vmatpush2.xpose.msra.mxu0 0.0
    %635 = vmatprep.subr.mxu0 0.0
    %636 = vmatpush2.xpose.msra.mxu0 0.0
    %637 = vmatprep.subr.mxu0 0.0
    %638 = vmatpush2.xpose.msra.mxu0 0.0
    %639 = vmatprep.subr.mxu0 0.0
    %640 = vmatpush2.xpose.msra.mxu0 0.0
    %641 = vmatprep.subr.mxu0 0.0
    %642 = vmatpush2.xpose.msra.mxu0 0.0
    %643 = vmatprep.subr.mxu0 0.0
    %644 = vmatpush2.xpose.msra.mxu0 0.0
    %645 = vmatprep.subr.mxu0 0.0
    %646 = vmatpush2.xpose.msra.mxu0 0.0
    %647 = vmatprep.subr.mxu0 0.0
    %648 = vmatpush2.xpose.msra.mxu0 0.0
    %649 = vmatprep.subr.mxu0 0.0
    %650 = vmatpush2.xpose.msra.mxu0 0.0
    %651 = vmatprep.mubr.f32.mxu0 0.0
    %652 = vmatmul.mubr.f32.gmra.mxu0 %v583
    %v653 = vpop.f32.mrf.mxu0
    %v654 = vadd.f32 0.0, %v653
    %v655 = vpop.f32.mrf.mxu0
    %656 = vdwg.mxu0
    %657 = vrot.lane.b32.xlu0 %v501, 96
    %v658 = vpop.permute.xlu0 %657
    %v659 = vsel %vm506, %v501, 0
    %v661 = vsel %vm506, %v658, 0
    %663 = vmatprep.subr.mxu0 0.0
    %664 = vmatpush1.xpose.msra.mxu0 0.0
    %665 = vmatprep.subr.mxu0 0.0
    %666 = vmatpush1.xpose.msra.mxu0 0.0
    %667 = vmatprep.subr.mxu0 0.0
    %668 = vmatpush1.xpose.msra.mxu0 0.0
    %669 = vmatprep.subr.mxu0 0.0
    %670 = vmatpush1.xpose.msra.mxu0 0.0
    %671 = vmatprep.subr.mxu0 0.0
    %672 = vmatpush1.xpose.msra.mxu0 0.0
    %673 = vmatprep.subr.mxu0 0.0
    %674 = vmatpush1.xpose.msra.mxu0 0.0
    %675 = vmatprep.subr.mxu0 0.0
    %676 = vmatpush1.xpose.msra.mxu0 0.0
    %677 = vmatprep.subr.mxu0 0.0
    %678 = vmatpush1.xpose.msra.mxu0 0.0
    %679 = vmatprep.subr.mxu0 0.0
    %680 = vmatpush1.xpose.msra.mxu0 0.0
    %681 = vmatprep.subr.mxu0 0.0
    %682 = vmatpush1.xpose.msra.mxu0 0.0
    %683 = vmatprep.subr.mxu0 0.0
    %684 = vmatpush1.xpose.msra.mxu0 0.0
    %685 = vmatprep.subr.mxu0 0.0
    %686 = vmatpush1.xpose.msra.mxu0 0.0
    %687 = vmatprep.subr.mxu0 0.0
    %688 = vmatpush1.xpose.msra.mxu0 0.0
    %689 = vmatprep.subr.mxu0 0.0
    %690 = vmatpush1.xpose.msra.mxu0 0.0
    %691 = vmatprep.subr.mxu0 0.0
    %692 = vmatpush1.xpose.msra.mxu0 0.0
    %693 = vmatprep.subr.mxu0 0.0
    %694 = vmatpush1.xpose.msra.mxu0 %v661
    %695 = vmatprep.subr.mxu0 0.0
    %696 = vmatpush2.xpose.msra.mxu0 0.0
    %697 = vmatprep.subr.mxu0 0.0
    %698 = vmatpush2.xpose.msra.mxu0 0.0
    %699 = vmatprep.subr.mxu0 0.0
    %700 = vmatpush2.xpose.msra.mxu0 0.0
    %701 = vmatprep.subr.mxu0 0.0
    %702 = vmatpush2.xpose.msra.mxu0 0.0
    %703 = vmatprep.subr.mxu0 0.0
    %704 = vmatpush2.xpose.msra.mxu0 0.0
    %705 = vmatprep.subr.mxu0 0.0
    %706 = vmatpush2.xpose.msra.mxu0 0.0
    %707 = vmatprep.subr.mxu0 0.0
    %708 = vmatpush2.xpose.msra.mxu0 0.0
    %709 = vmatprep.subr.mxu0 0.0
    %710 = vmatpush2.xpose.msra.mxu0 0.0
    %711 = vmatprep.subr.mxu0 0.0
    %712 = vmatpush2.xpose.msra.mxu0 0.0
    %713 = vmatprep.subr.mxu0 0.0
    %714 = vmatpush2.xpose.msra.mxu0 0.0
    %715 = vmatprep.subr.mxu0 0.0
    %716 = vmatpush2.xpose.msra.mxu0 0.0
    %717 = vmatprep.subr.mxu0 0.0
    %718 = vmatpush2.xpose.msra.mxu0 0.0
    %719 = vmatprep.subr.mxu0 0.0
    %720 = vmatpush2.xpose.msra.mxu0 0.0
    %721 = vmatprep.subr.mxu0 0.0
    %722 = vmatpush2.xpose.msra.mxu0 0.0
    %723 = vmatprep.subr.mxu0 0.0
    %724 = vmatpush2.xpose.msra.mxu0 0.0
    %725 = vmatprep.subr.mxu0 0.0
    %726 = vmatpush2.xpose.msra.mxu0 0.0
    %727 = vmatprep.mubr.f32.mxu0 0.0
    %728 = vmatmul.mubr.f32.gmra.mxu0 %v659
    %v729 = vpop.f32.mrf.mxu0
    %v730 = vadd.f32 0.0, %v729
    %v731 = vpop.f32.mrf.mxu0
    %732 = vdwg.mxu0
    %733 = vrot.lane.b32.xlu0 %v503, 96
    %v734 = vpop.permute.xlu0 %733
    %v735 = vsel %vm506, %v503, 0
    %v737 = vsel %vm506, %v734, 0
    %739 = vmatprep.subr.mxu0 0.0
    %740 = vmatpush1.xpose.msra.mxu0 0.0
    %741 = vmatprep.subr.mxu0 0.0
    %742 = vmatpush1.xpose.msra.mxu0 0.0
    %743 = vmatprep.subr.mxu0 0.0
    %744 = vmatpush1.xpose.msra.mxu0 0.0
    %745 = vmatprep.subr.mxu0 0.0
    %746 = vmatpush1.xpose.msra.mxu0 0.0
    %747 = vmatprep.subr.mxu0 0.0
    %748 = vmatpush1.xpose.msra.mxu0 0.0
    %749 = vmatprep.subr.mxu0 0.0
    %750 = vmatpush1.xpose.msra.mxu0 0.0
    %751 = vmatprep.subr.mxu0 0.0
    %752 = vmatpush1.xpose.msra.mxu0 0.0
    %753 = vmatprep.subr.mxu0 0.0
    %754 = vmatpush1.xpose.msra.mxu0 0.0
    %755 = vmatprep.subr.mxu0 0.0
    %756 = vmatpush1.xpose.msra.mxu0 0.0
    %757 = vmatprep.subr.mxu0 0.0
    %758 = vmatpush1.xpose.msra.mxu0 0.0
    %759 = vmatprep.subr.mxu0 0.0
    %760 = vmatpush1.xpose.msra.mxu0 0.0
    %761 = vmatprep.subr.mxu0 0.0
    %762 = vmatpush1.xpose.msra.mxu0 0.0
    %763 = vmatprep.subr.mxu0 0.0
    %764 = vmatpush1.xpose.msra.mxu0 0.0
    %765 = vmatprep.subr.mxu0 0.0
    %766 = vmatpush1.xpose.msra.mxu0 0.0
    %767 = vmatprep.subr.mxu0 0.0
    %768 = vmatpush1.xpose.msra.mxu0 0.0
    %769 = vmatprep.subr.mxu0 0.0
    %770 = vmatpush1.xpose.msra.mxu0 %v737
    %771 = vmatprep.subr.mxu0 0.0
    %772 = vmatpush2.xpose.msra.mxu0 0.0
    %773 = vmatprep.subr.mxu0 0.0
    %774 = vmatpush2.xpose.msra.mxu0 0.0
    %775 = vmatprep.subr.mxu0 0.0
    %776 = vmatpush2.xpose.msra.mxu0 0.0
    %777 = vmatprep.subr.mxu0 0.0
    %778 = vmatpush2.xpose.msra.mxu0 0.0
    %779 = vmatprep.subr.mxu0 0.0
    %780 = vmatpush2.xpose.msra.mxu0 0.0
    %781 = vmatprep.subr.mxu0 0.0
    %782 = vmatpush2.xpose.msra.mxu0 0.0
    %783 = vmatprep.subr.mxu0 0.0
    %784 = vmatpush2.xpose.msra.mxu0 0.0
    %785 = vmatprep.subr.mxu0 0.0
    %786 = vmatpush2.xpose.msra.mxu0 0.0
    %787 = vmatprep.subr.mxu0 0.0
    %788 = vmatpush2.xpose.msra.mxu0 0.0
    %789 = vmatprep.subr.mxu0 0.0
    %790 = vmatpush2.xpose.msra.mxu0 0.0
    %791 = vmatprep.subr.mxu0 0.0
    %792 = vmatpush2.xpose.msra.mxu0 0.0
    %793 = vmatprep.subr.mxu0 0.0
    %794 = vmatpush2.xpose.msra.mxu0 0.0
    %795 = vmatprep.subr.mxu0 0.0
    %796 = vmatpush2.xpose.msra.mxu0 0.0
    %797 = vmatprep.subr.mxu0 0.0
    %798 = vmatpush2.xpose.msra.mxu0 0.0
    %799 = vmatprep.subr.mxu0 0.0
    %800 = vmatpush2.xpose.msra.mxu0 0.0
    %801 = vmatprep.subr.mxu0 0.0
    %802 = vmatpush2.xpose.msra.mxu0 0.0
    %803 = vmatprep.mubr.f32.mxu0 0.0
    %804 = vmatmul.mubr.f32.gmra.mxu0 %v735
    %v805 = vpop.f32.mrf.mxu0
    %v806 = vadd.f32 0.0, %v805
    %v807 = vpop.f32.mrf.mxu0
    %808 = vdwg.mxu0
    %v809 = vmul.f32 %v578, 0.25
    %v810 = vmul.f32 %v654, 0.25
    %v811 = vmul.f32 %v730, 0.25
    %v812 = vmul.f32 %v806, 0.25
    %v813 = vadd.f32 %v809, %v372
    %v814 = vadd.f32 %v810, %v372
    %v815 = vadd.f32 %v811, %v372
    %v816 = vadd.f32 %v812, %v372
    %vm817 = vcmask 64512
    %v818 = vsel %vm817, %v813, -inf
    %819 = vmax.xlane.f32.xlu0 %v818
    %v820 = vpop.xlane.xlu0 %819
    %v821 = vsel %vm817, %v814, -inf
    %822 = vmax.xlane.f32.xlu0 %v821
    %v823 = vpop.xlane.xlu0 %822
    %v824 = vsel %vm817, %v815, -inf
    %825 = vmax.xlane.f32.xlu0 %v824
    %v826 = vpop.xlane.xlu0 %825
    %v827 = vsel %vm817, %v816, -inf
    %828 = vmax.xlane.f32.xlu0 %v827
    %v829 = vpop.xlane.xlu0 %828
    %v830 = vsub.f32 %v813, %v820
    %v831 = vsub.f32 %v814, %v823
    %v832 = vsub.f32 %v815, %v826
    %v833 = vsub.f32 %v816, %v829
    %v834 = vmul.f32 %v830, 1.442695
    %v835 = vpow.pop %v834
    %v836 = vmul.f32 %v831, 1.442695
    %v837 = vpow.pop %v836
    %v838 = vmul.f32 %v832, 1.442695
    %v839 = vpow.pop %v838
    %v840 = vmul.f32 %v833, 1.442695
    %v841 = vpow.pop %v840
    %v842 = vsel %vm817, %v835, 0.0
    %843 = vadd.xlane.f32.xlu0 %v842
    %v844 = vpop.xlane.xlu0 %843
    %v845 = vsel %vm817, %v837, 0.0
    %846 = vadd.xlane.f32.xlu0 %v845
    %v847 = vpop.xlane.xlu0 %846
    %v848 = vsel %vm817, %v839, 0.0
    %849 = vadd.xlane.f32.xlu0 %v848
    %v850 = vpop.xlane.xlu0 %849
    %v851 = vsel %vm817, %v841, 0.0
    %852 = vadd.xlane.f32.xlu0 %v851
    %v853 = vpop.xlane.xlu0 %852
    %v854 = vrcp.pop %v844
    %v855 = vrcp.pop %v847
    %v856 = vrcp.pop %v850
    %v857 = vrcp.pop %v853
    %v858 = vmul.f32 %v835, %v854
    %v859 = vmul.f32 %v837, %v855
    %v860 = vmul.f32 %v839, %v856
    %v861 = vmul.f32 %v841, %v857
    %862 = vrot.lane.b32.xlu0 %v490, 64
    %v863 = vpop.permute.xlu0 %862
    %v866 = vsel %vm817, %v858, 0
    %868 = vmatprep.subr.mxu0 0.0
    %869 = vmatpush1.msra.mxu0 0.0
    %870 = vmatprep.subr.mxu0 0.0
    %871 = vmatpush1.msra.mxu0 0.0
    %872 = vmatprep.subr.mxu0 0.0
    %873 = vmatpush1.msra.mxu0 0.0
    %874 = vmatprep.subr.mxu0 0.0
    %875 = vmatpush1.msra.mxu0 0.0
    %876 = vmatprep.subr.mxu0 0.0
    %877 = vmatpush1.msra.mxu0 0.0
    %878 = vmatprep.subr.mxu0 0.0
    %879 = vmatpush1.msra.mxu0 0.0
    %880 = vmatprep.subr.mxu0 0.0
    %881 = vmatpush1.msra.mxu0 0.0
    %882 = vmatprep.subr.mxu0 0.0
    %883 = vmatpush1.msra.mxu0 0.0
    %884 = vmatprep.subr.mxu0 0.0
    %885 = vmatpush1.msra.mxu0 0.0
    %886 = vmatprep.subr.mxu0 0.0
    %887 = vmatpush1.msra.mxu0 0.0
    %888 = vmatprep.subr.mxu0 0.0
    %889 = vmatpush1.msra.mxu0 0.0
    %890 = vmatprep.subr.mxu0 0.0
    %891 = vmatpush1.msra.mxu0 0.0
    %892 = vmatprep.subr.mxu0 0.0
    %893 = vmatpush1.msra.mxu0 0.0
    %894 = vmatprep.subr.mxu0 0.0
    %895 = vmatpush1.msra.mxu0 0.0
    %896 = vmatprep.subr.mxu0 0.0
    %897 = vmatpush1.msra.mxu0 0.0
    %898 = vmatprep.subr.mxu0 0.0
    %899 = vmatpush1.msra.mxu0 %v863
    %900 = vmatprep.subr.mxu0 0.0
    %901 = vmatpush2.msra.mxu0 0.0
    %902 = vmatprep.subr.mxu0 0.0
    %903 = vmatpush2.msra.mxu0 0.0
    %904 = vmatprep.subr.mxu0 0.0
    %905 = vmatpush2.msra.mxu0 0.0
    %906 = vmatprep.subr.mxu0 0.0
    %907 = vmatpush2.msra.mxu0 0.0
    %908 = vmatprep.subr.mxu0 0.0
    %909 = vmatpush2.msra.mxu0 0.0
    %910 = vmatprep.subr.mxu0 0.0
    %911 = vmatpush2.msra.mxu0 0.0
    %912 = vmatprep.subr.mxu0 0.0
    %913 = vmatpush2.msra.mxu0 0.0
    %914 = vmatprep.subr.mxu0 0.0
    %915 = vmatpush2.msra.mxu0 0.0
    %916 = vmatprep.subr.mxu0 0.0
    %917 = vmatpush2.msra.mxu0 0.0
    %918 = vmatprep.subr.mxu0 0.0
    %919 = vmatpush2.msra.mxu0 0.0
    %920 = vmatprep.subr.mxu0 0.0
    %921 = vmatpush2.msra.mxu0 0.0
    %922 = vmatprep.subr.mxu0 0.0
    %923 = vmatpush2.msra.mxu0 0.0
    %924 = vmatprep.subr.mxu0 0.0
    %925 = vmatpush2.msra.mxu0 0.0
    %926 = vmatprep.subr.mxu0 0.0
    %927 = vmatpush2.msra.mxu0 0.0
    %928 = vmatprep.subr.mxu0 0.0
    %929 = vmatpush2.msra.mxu0 0.0
    %930 = vmatprep.subr.mxu0 0.0
    %931 = vmatpush2.msra.mxu0 0.0
    %932 = vmatprep.mubr.f32.mxu0 0.0
    %933 = vmatmul.mubr.f32.gmra.mxu0 %v866
    %v934 = vpop.f32.mrf.mxu0
    %v935 = vadd.f32 0.0, %v934
    %v936 = vpop.f32.mrf.mxu0
    %937 = vdwg.mxu0
    %938 = vrot.lane.b32.xlu0 %v495, 64
    %v939 = vpop.permute.xlu0 %938
    %v942 = vsel %vm817, %v859, 0
    %944 = vmatprep.subr.mxu0 0.0
    %945 = vmatpush1.msra.mxu0 0.0
    %946 = vmatprep.subr.mxu0 0.0
    %947 = vmatpush1.msra.mxu0 0.0
    %948 = vmatprep.subr.mxu0 0.0
    %949 = vmatpush1.msra.mxu0 0.0
    %950 = vmatprep.subr.mxu0 0.0
    %951 = vmatpush1.msra.mxu0 0.0
    %952 = vmatprep.subr.mxu0 0.0
    %953 = vmatpush1.msra.mxu0 0.0
    %954 = vmatprep.subr.mxu0 0.0
    %955 = vmatpush1.msra.mxu0 0.0
    %956 = vmatprep.subr.mxu0 0.0
    %957 = vmatpush1.msra.mxu0 0.0
    %958 = vmatprep.subr.mxu0 0.0
    %959 = vmatpush1.msra.mxu0 0.0
    %960 = vmatprep.subr.mxu0 0.0
    %961 = vmatpush1.msra.mxu0 0.0
    %962 = vmatprep.subr.mxu0 0.0
    %963 = vmatpush1.msra.mxu0 0.0
    %964 = vmatprep.subr.mxu0 0.0
    %965 = vmatpush1.msra.mxu0 0.0
    %966 = vmatprep.subr.mxu0 0.0
    %967 = vmatpush1.msra.mxu0 0.0
    %968 = vmatprep.subr.mxu0 0.0
    %969 = vmatpush1.msra.mxu0 0.0
    %970 = vmatprep.subr.mxu0 0.0
    %971 = vmatpush1.msra.mxu0 0.0
    %972 = vmatprep.subr.mxu0 0.0
    %973 = vmatpush1.msra.mxu0 0.0
    %974 = vmatprep.subr.mxu0 0.0
    %975 = vmatpush1.msra.mxu0 %v939
    %976 = vmatprep.subr.mxu0 0.0
    %977 = vmatpush2.msra.mxu0 0.0
    %978 = vmatprep.subr.mxu0 0.0
    %979 = vmatpush2.msra.mxu0 0.0
    %980 = vmatprep.subr.mxu0 0.0
    %981 = vmatpush2.msra.mxu0 0.0
    %982 = vmatprep.subr.mxu0 0.0
    %983 = vmatpush2.msra.mxu0 0.0
    %984 = vmatprep.subr.mxu0 0.0
    %985 = vmatpush2.msra.mxu0 0.0
    %986 = vmatprep.subr.mxu0 0.0
    %987 = vmatpush2.msra.mxu0 0.0
    %988 = vmatprep.subr.mxu0 0.0
    %989 = vmatpush2.msra.mxu0 0.0
    %990 = vmatprep.subr.mxu0 0.0
    %991 = vmatpush2.msra.mxu0 0.0
    %992 = vmatprep.subr.mxu0 0.0
    %993 = vmatpush2.msra.mxu0 0.0
    %994 = vmatprep.subr.mxu0 0.0
    %995 = vmatpush2.msra.mxu0 0.0
    %996 = vmatprep.subr.mxu0 0.0
    %997 = vmatpush2.msra.mxu0 0.0
    %998 = vmatprep.subr.mxu0 0.0
    %999 = vmatpush2.msra.mxu0 0.0
    %1000 = vmatprep.subr.mxu0 0.0
    %1001 = vmatpush2.msra.mxu0 0.0
    %1002 = vmatprep.subr.mxu0 0.0
    %1003 = vmatpush2.msra.mxu0 0.0
    %1004 = vmatprep.subr.mxu0 0.0
    %1005 = vmatpush2.msra.mxu0 0.0
    %1006 = vmatprep.subr.mxu0 0.0
    %1007 = vmatpush2.msra.mxu0 0.0
    %1008 = vmatprep.mubr.f32.mxu0 0.0
    %1009 = vmatmul.mubr.f32.gmra.mxu0 %v942
    %v1010 = vpop.f32.mrf.mxu0
    %v1011 = vadd.f32 0.0, %v1010
    %v1012 = vpop.f32.mrf.mxu0
    %1013 = vdwg.mxu0
    %1014 = vrot.lane.b32.xlu0 %v501, 64
    %v1015 = vpop.permute.xlu0 %1014
    %v1018 = vsel %vm817, %v860, 0
    %1020 = vmatprep.subr.mxu0 0.0
    %1021 = vmatpush1.msra.mxu0 0.0
    %1022 = vmatprep.subr.mxu0 0.0
    %1023 = vmatpush1.msra.mxu0 0.0
    %1024 = vmatprep.subr.mxu0 0.0
    %1025 = vmatpush1.msra.mxu0 0.0
    %1026 = vmatprep.subr.mxu0 0.0
    %1027 = vmatpush1.msra.mxu0 0.0
    %1028 = vmatprep.subr.mxu0 0.0
    %1029 = vmatpush1.msra.mxu0 0.0
    %1030 = vmatprep.subr.mxu0 0.0
    %1031 = vmatpush1.msra.mxu0 0.0
    %1032 = vmatprep.subr.mxu0 0.0
    %1033 = vmatpush1.msra.mxu0 0.0
    %1034 = vmatprep.subr.mxu0 0.0
    %1035 = vmatpush1.msra.mxu0 0.0
    %1036 = vmatprep.subr.mxu0 0.0
    %1037 = vmatpush1.msra.mxu0 0.0
    %1038 = vmatprep.subr.mxu0 0.0
    %1039 = vmatpush1.msra.mxu0 0.0
    %1040 = vmatprep.subr.mxu0 0.0
    %1041 = vmatpush1.msra.mxu0 0.0
    %1042 = vmatprep.subr.mxu0 0.0
    %1043 = vmatpush1.msra.mxu0 0.0
    %1044 = vmatprep.subr.mxu0 0.0
    %1045 = vmatpush1.msra.mxu0 0.0
    %1046 = vmatprep.subr.mxu0 0.0
    %1047 = vmatpush1.msra.mxu0 0.0
    %1048 = vmatprep.subr.mxu0 0.0
    %1049 = vmatpush1.msra.mxu0 0.0
    %1050 = vmatprep.subr.mxu0 0.0
    %1051 = vmatpush1.msra.mxu0 %v1015
    %1052 = vmatprep.subr.mxu0 0.0
    %1053 = vmatpush2.msra.mxu0 0.0
    %1054 = vmatprep.subr.mxu0 0.0
    %1055 = vmatpush2.msra.mxu0 0.0
    %1056 = vmatprep.subr.mxu0 0.0
    %1057 = vmatpush2.msra.mxu0 0.0
    %1058 = vmatprep.subr.mxu0 0.0
    %1059 = vmatpush2.msra.mxu0 0.0
    %1060 = vmatprep.subr.mxu0 0.0
    %1061 = vmatpush2.msra.mxu0 0.0
    %1062 = vmatprep.subr.mxu0 0.0
    %1063 = vmatpush2.msra.mxu0 0.0
    %1064 = vmatprep.subr.mxu0 0.0
    %1065 = vmatpush2.msra.mxu0 0.0
    %1066 = vmatprep.subr.mxu0 0.0
    %1067 = vmatpush2.msra.mxu0 0.0
    %1068 = vmatprep.subr.mxu0 0.0
    %1069 = vmatpush2.msra.mxu0 0.0
    %1070 = vmatprep.subr.mxu0 0.0
    %1071 = vmatpush2.msra.mxu0 0.0
    %1072 = vmatprep.subr.mxu0 0.0
    %1073 = vmatpush2.msra.mxu0 0.0
    %1074 = vmatprep.subr.mxu0 0.0
    %1075 = vmatpush2.msra.mxu0 0.0
    %1076 = vmatprep.subr.mxu0 0.0
    %1077 = vmatpush2.msra.mxu0 0.0
    %1078 = vmatprep.subr.mxu0 0.0
    %1079 = vmatpush2.msra.mxu0 0.0
    %1080 = vmatprep.subr.mxu0 0.0
    %1081 = vmatpush2.msra.mxu0 0.0
    %1082 = vmatprep.subr.mxu0 0.0
    %1083 = vmatpush2.msra.mxu0 0.0
    %1084 = vmatprep.mubr.f32.mxu0 0.0
    %1085 = vmatmul.mubr.f32.gmra.mxu0 %v1018
    %v1086 = vpop.f32.mrf.mxu0
    %v1087 = vadd.f32 0.0, %v1086
    %v1088 = vpop.f32.mrf.mxu0
    %1089 = vdwg.mxu0
    %1090 = vrot.lane.b32.xlu0 %v503, 64
    %v1091 = vpop.permute.xlu0 %1090
    %v1094 = vsel %vm817, %v861, 0
    %1096 = vmatprep.subr.mxu0 0.0
    %1097 = vmatpush1.msra.mxu0 0.0
    %1098 = vmatprep.subr.mxu0 0.0
    %1099 = vmatpush1.msra.mxu0 0.0
    %1100 = vmatprep.subr.mxu0 0.0
    %1101 = vmatpush1.msra.mxu0 0.0
    %1102 = vmatprep.subr.mxu0 0.0
    %1103 = vmatpush1.msra.mxu0 0.0
    %1104 = vmatprep.subr.mxu0 0.0
    %1105 = vmatpush1.msra.mxu0 0.0
    %1106 = vmatprep.subr.mxu0 0.0
    %1107 = vmatpush1.msra.mxu0 0.0
    %1108 = vmatprep.subr.mxu0 0.0
    %1109 = vmatpush1.msra.mxu0 0.0
    %1110 = vmatprep.subr.mxu0 0.0
    %1111 = vmatpush1.msra.mxu0 0.0
    %1112 = vmatprep.subr.mxu0 0.0
    %1113 = vmatpush1.msra.mxu0 0.0
    %1114 = vmatprep.subr.mxu0 0.0
    %1115 = vmatpush1.msra.mxu0 0.0
    %1116 = vmatprep.subr.mxu0 0.0
    %1117 = vmatpush1.msra.mxu0 0.0
    %1118 = vmatprep.subr.mxu0 0.0
    %1119 = vmatpush1.msra.mxu0 0.0
    %1120 = vmatprep.subr.mxu0 0.0
    %1121 = vmatpush1.msra.mxu0 0.0
    %1122 = vmatprep.subr.mxu0 0.0
    %1123 = vmatpush1.msra.mxu0 0.0
    %1124 = vmatprep.subr.mxu0 0.0
    %1125 = vmatpush1.msra.mxu0 0.0
    %1126 = vmatprep.subr.mxu0 0.0
    %1127 = vmatpush1.msra.mxu0 %v1091
    %1128 = vmatprep.subr.mxu0 0.0
    %1129 = vmatpush2.msra.mxu0 0.0
    %1130 = vmatprep.subr.mxu0 0.0
    %1131 = vmatpush2.msra.mxu0 0.0
    %1132 = vmatprep.subr.mxu0 0.0
    %1133 = vmatpush2.msra.mxu0 0.0
    %1134 = vmatprep.subr.mxu0 0.0
    %1135 = vmatpush2.msra.mxu0 0.0
    %1136 = vmatprep.subr.mxu0 0.0
    %1137 = vmatpush2.msra.mxu0 0.0
    %1138 = vmatprep.subr.mxu0 0.0
    %1139 = vmatpush2.msra.mxu0 0.0
    %1140 = vmatprep.subr.mxu0 0.0
    %1141 = vmatpush2.msra.mxu0 0.0
    %1142 = vmatprep.subr.mxu0 0.0
    %1143 = vmatpush2.msra.mxu0 0.0
    %1144 = vmatprep.subr.mxu0 0.0
    %1145 = vmatpush2.msra.mxu0 0.0
    %1146 = vmatprep.subr.mxu0 0.0
    %1147 = vmatpush2.msra.mxu0 0.0
    %1148 = vmatprep.subr.mxu0 0.0
    %1149 = vmatpush2.msra.mxu0 0.0
    %1150 = vmatprep.subr.mxu0 0.0
    %1151 = vmatpush2.msra.mxu0 0.0
    %1152 = vmatprep.subr.mxu0 0.0
    %1153 = vmatpush2.msra.mxu0 0.0
    %1154 = vmatprep.subr.mxu0 0.0
    %1155 = vmatpush2.msra.mxu0 0.0
    %1156 = vmatprep.subr.mxu0 0.0
    %1157 = vmatpush2.msra.mxu0 0.0
    %1158 = vmatprep.subr.mxu0 0.0
    %1159 = vmatpush2.msra.mxu0 0.0
    %1160 = vmatprep.mubr.f32.mxu0 0.0
    %1161 = vmatmul.mubr.f32.gmra.mxu0 %v1094
    %v1162 = vpop.f32.mrf.mxu0
    %v1163 = vadd.f32 0.0, %v1162
    %v1164 = vpop.f32.mrf.mxu0
    %1165 = vdwg.mxu0
    %1168 = vrot.lane.b32.xlu0 %v1087, 16
    %v1169 = vpop.permute.xlu0 %1168
    %1170 = vrot.lane.b32.xlu0 %v1163, 16
    %v1171 = vpop.permute.xlu0 %1170
    %v1174 = vsel %vm506, %v935, %v1169
    %v1175 = vsel %vm506, %v1011, %v1171
    %v1176 = vld [vmem:[%s4] sm:$0xff]
    %v1177 = vld [vmem:[%s4 + $0x8] sm:$0xff]
    %v1178 = vld [vmem:[%s4 + $0x10] sm:$0xff]
    %v1179 = vld [vmem:[%s4 + $0x18] sm:$0xff]
    %v1181 = vsel %vm381, %v1174, 0
    %v1184 = vsel %vm381, %v1175, 0
    %1186 = vmatprep.subr.mxu0 0.0
    %1187 = vmatpush1.msra.mxu0 0.0
    %1188 = vmatprep.subr.mxu0 0.0
    %1189 = vmatpush1.msra.mxu0 0.0
    %1190 = vmatprep.subr.mxu0 0.0
    %1191 = vmatpush1.msra.mxu0 0.0
    %1192 = vmatprep.subr.mxu0 0.0
    %1193 = vmatpush1.msra.mxu0 0.0
    %1194 = vmatprep.subr.mxu0 0.0
    %1195 = vmatpush1.msra.mxu0 0.0
    %1196 = vmatprep.subr.mxu0 0.0
    %1197 = vmatpush1.msra.mxu0 0.0
    %1198 = vmatprep.subr.mxu0 0.0
    %1199 = vmatpush1.msra.mxu0 0.0
    %1200 = vmatprep.subr.mxu0 0.0
    %1201 = vmatpush1.msra.mxu0 0.0
    %1202 = vmatprep.subr.mxu0 0.0
    %1203 = vmatpush1.msra.mxu0 0.0
    %1204 = vmatprep.subr.mxu0 0.0
    %1205 = vmatpush1.msra.mxu0 0.0
    %1206 = vmatprep.subr.mxu0 0.0
    %1207 = vmatpush1.msra.mxu0 0.0
    %1208 = vmatprep.subr.mxu0 0.0
    %1209 = vmatpush1.msra.mxu0 0.0
    %1210 = vmatprep.subr.mxu0 0.0
    %1211 = vmatpush1.msra.mxu0 %v1179
    %1212 = vmatprep.subr.mxu0 0.0
    %1213 = vmatpush1.msra.mxu0 %v1178
    %1214 = vmatprep.subr.mxu0 0.0
    %1215 = vmatpush1.msra.mxu0 %v1177
    %1216 = vmatprep.subr.mxu0 0.0
    %1217 = vmatpush1.msra.mxu0 %v1176
    %1218 = vmatprep.subr.mxu0 0.0
    %1219 = vmatpush2.msra.mxu0 0.0
    %1220 = vmatprep.subr.mxu0 0.0
    %1221 = vmatpush2.msra.mxu0 0.0
    %1222 = vmatprep.subr.mxu0 0.0
    %1223 = vmatpush2.msra.mxu0 0.0
    %1224 = vmatprep.subr.mxu0 0.0
    %1225 = vmatpush2.msra.mxu0 0.0
    %1226 = vmatprep.subr.mxu0 0.0
    %1227 = vmatpush2.msra.mxu0 0.0
    %1228 = vmatprep.subr.mxu0 0.0
    %1229 = vmatpush2.msra.mxu0 0.0
    %1230 = vmatprep.subr.mxu0 0.0
    %1231 = vmatpush2.msra.mxu0 0.0
    %1232 = vmatprep.subr.mxu0 0.0
    %1233 = vmatpush2.msra.mxu0 0.0
    %1234 = vmatprep.subr.mxu0 0.0
    %1235 = vmatpush2.msra.mxu0 0.0
    %1236 = vmatprep.subr.mxu0 0.0
    %1237 = vmatpush2.msra.mxu0 0.0
    %1238 = vmatprep.subr.mxu0 0.0
    %1239 = vmatpush2.msra.mxu0 0.0
    %1240 = vmatprep.subr.mxu0 0.0
    %1241 = vmatpush2.msra.mxu0 0.0
    %1242 = vmatprep.subr.mxu0 0.0
    %1243 = vmatpush2.msra.mxu0 0.0
    %1244 = vmatprep.subr.mxu0 0.0
    %1245 = vmatpush2.msra.mxu0 0.0
    %1246 = vmatprep.subr.mxu0 0.0
    %1247 = vmatpush2.msra.mxu0 0.0
    %1248 = vmatprep.subr.mxu0 0.0
    %1249 = vmatpush2.msra.mxu0 0.0
    %1250 = vmatprep.mubr.f32.mxu0 0.0
    %1251 = vmatmul.mubr.f32.gmra.mxu0 %v1181
    %v1252 = vpop.f32.mrf.mxu0
    %v1253 = vadd.f32 0.0, %v1252
    %v1254 = vpop.f32.mrf.mxu0
    %1255 = vmatprep.mubr.f32.mxu0 0.0
    %1256 = vmatmul.mubr.f32.gmra.mxu0 %v1184
    %v1257 = vpop.f32.mrf.mxu0
    %v1258 = vadd.f32 0.0, %v1257
    %v1259 = vpop.f32.mrf.mxu0
    %1260 = vdwg.mxu0
    %v1261 = vadd.f32 %v366, %v1253
    %v1262 = vadd.f32 %v368, %v1258
    %v1263 = vadd.f32 %v1261, %v376
    %v1264 = vadd.f32 %v1262, %v376
    %v1265 = vsel %vm381, %v1263, 0.0
    %1266 = vadd.xlane.f32.xlu0 %v1265
    %v1267 = vpop.xlane.xlu0 %1266
    %v1268 = vsel %vm381, %v1264, 0.0
    %1269 = vadd.xlane.f32.xlu0 %v1268
    %v1270 = vpop.xlane.xlu0 %1269
    %v1271 = vmul.f32 %v1267, %v388
    %v1272 = vmul.f32 %v1270, %v388
    %v1273 = vsub.f32 %v1263, %v1271
    %v1274 = vsub.f32 %v1264, %v1272
    %v1275 = vmul.f32 %v1273, %v1273
    %v1276 = vmul.f32 %v1274, %v1274
    %v1277 = vsel %vm381, %v1275, 0.0
    %1278 = vadd.xlane.f32.xlu0 %v1277
    %v1279 = vpop.xlane.xlu0 %1278
    %v1280 = vsel %vm381, %v1276, 0.0
    %1281 = vadd.xlane.f32.xlu0 %v1280
    %v1282 = vpop.xlane.xlu0 %1281
    %v1283 = vmul.f32 %v1279, %v388
    %v1284 = vmul.f32 %v1282, %v388
    %v1285 = vadd.f32 %v1283, 1e-06
    %v1286 = vadd.f32 %v1284, 1e-06
    %v1287 = vrsqrt.pop %v1285
    %v1288 = vrsqrt.pop %v1286
    %v1289 = vmul.f32 %v1273, %v1287
    %v1290 = vmul.f32 %v1274, %v1288
    %v1291 = vmul.f32 %v1289, %v377
    %v1292 = vmul.f32 %v1290, %v377
    %v1293 = vadd.f32 %v1291, %v378
    %v1294 = vadd.f32 %v1292, %v378
    %v1295 = vld [vmem:[%s5] sm:$0xff]
    %v1296 = vld [vmem:[%s5 + $0x8] sm:$0xff]
    %v1297 = vld [vmem:[%s5 + $0x10] sm:$0xff]
    %v1298 = vld [vmem:[%s5 + $0x18] sm:$0xff]
    %v1300 = vsel %vm381, %v1293, 0
    %v1303 = vsel %vm381, %v1294, 0
    %1305 = vmatprep.subr.mxu0 0.0
    %1306 = vmatpush1.msra.mxu0 0.0
    %1307 = vmatprep.subr.mxu0 0.0
    %1308 = vmatpush1.msra.mxu0 0.0
    %1309 = vmatprep.subr.mxu0 0.0
    %1310 = vmatpush1.msra.mxu0 0.0
    %1311 = vmatprep.subr.mxu0 0.0
    %1312 = vmatpush1.msra.mxu0 0.0
    %1313 = vmatprep.subr.mxu0 0.0
    %1314 = vmatpush1.msra.mxu0 0.0
    %1315 = vmatprep.subr.mxu0 0.0
    %1316 = vmatpush1.msra.mxu0 0.0
    %1317 = vmatprep.subr.mxu0 0.0
    %1318 = vmatpush1.msra.mxu0 0.0
    %1319 = vmatprep.subr.mxu0 0.0
    %1320 = vmatpush1.msra.mxu0 0.0
    %1321 = vmatprep.subr.mxu0 0.0
    %1322 = vmatpush1.msra.mxu0 0.0
    %1323 = vmatprep.subr.mxu0 0.0
    %1324 = vmatpush1.msra.mxu0 0.0
    %1325 = vmatprep.subr.mxu0 0.0
    %1326 = vmatpush1.msra.mxu0 0.0
    %1327 = vmatprep.subr.mxu0 0.0
    %1328 = vmatpush1.msra.mxu0 0.0
    %1329 = vmatprep.subr.mxu0 0.0
    %1330 = vmatpush1.msra.mxu0 %v1298
    %1331 = vmatprep.subr.mxu0 0.0
    %1332 = vmatpush1.msra.mxu0 %v1297
    %1333 = vmatprep.subr.mxu0 0.0
    %1334 = vmatpush1.msra.mxu0 %v1296
    %1335 = vmatprep.subr.mxu0 0.0
    %1336 = vmatpush1.msra.mxu0 %v1295
    %1337 = vmatprep.subr.mxu0 0.0
    %1338 = vmatpush2.msra.mxu0 0.0
    %1339 = vmatprep.subr.mxu0 0.0
    %1340 = vmatpush2.msra.mxu0 0.0
    %1341 = vmatprep.subr.mxu0 0.0
    %1342 = vmatpush2.msra.mxu0 0.0
    %1343 = vmatprep.subr.mxu0 0.0
    %1344 = vmatpush2.msra.mxu0 0.0
    %1345 = vmatprep.subr.mxu0 0.0
    %1346 = vmatpush2.msra.mxu0 0.0
    %1347 = vmatprep.subr.mxu0 0.0
    %1348 = vmatpush2.msra.mxu0 0.0
    %1349 = vmatprep.subr.mxu0 0.0
    %1350 = vmatpush2.msra.mxu0 0.0
    %1351 = vmatprep.subr.mxu0 0.0
    %1352 = vmatpush2.msra.mxu0 0.0
    %1353 = vmatprep.subr.mxu0 0.0
    %1354 = vmatpush2.msra.mxu0 0.0
    %1355 = vmatprep.subr.mxu0 0.0
    %1356 = vmatpush2.msra.mxu0 0.0
    %1357 = vmatprep.subr.mxu0 0.0
    %1358 = vmatpush2.msra.mxu0 0.0
    %1359 = vmatprep.subr.mxu0 0.0
    %1360 = vmatpush2.msra.mxu0 0.0
    %1361 = vmatprep.subr.mxu0 0.0
    %1362 = vmatpush2.msra.mxu0 0.0
    %1363 = vmatprep.subr.mxu0 0.0
    %1364 = vmatpush2.msra.mxu0 0.0
    %1365 = vmatprep.subr.mxu0 0.0
    %1366 = vmatpush2.msra.mxu0 0.0
    %1367 = vmatprep.subr.mxu0 0.0
    %1368 = vmatpush2.msra.mxu0 0.0
    %1369 = vmatprep.mubr.f32.mxu0 0.0
    %1370 = vmatmul.mubr.f32.gmra.mxu0 %v1300
    %v1371 = vpop.f32.mrf.mxu0
    %v1372 = vadd.f32 %v379, %v1371
    %v1373 = vpop.f32.mrf.mxu0
    %1374 = vmatprep.mubr.f32.mxu0 0.0
    %1375 = vmatmul.mubr.f32.gmra.mxu0 %v1303
    %v1376 = vpop.f32.mrf.mxu0
    %v1377 = vadd.f32 %v379, %v1376
    %v1378 = vpop.f32.mrf.mxu0
    %1379 = vdwg.mxu0
    %v1380 = vmul.f32 %v1372, 0.70710677
    %v1381 = vmul.f32 %v1377, 0.70710677
    %v1382 = vand.u32 2147483647, %v1380
    %v1383 = vand.u32 2147483647, %v1381
    %v1384 = vmul.f32 %v1382, 0.3275911
    %v1385 = vmul.f32 %v1383, 0.3275911
    %v1386 = vadd.f32 %v1384, 1.0
    %v1387 = vadd.f32 %v1385, 1.0
    %v1388 = vrcp.pop %v1386
    %v1389 = vmul.f32 1.0, %v1388
    %v1390 = vrcp.pop %v1387
    %v1391 = vmul.f32 1.0, %v1390
    %v1392 = vmul.f32 %v1389, 1.0614054
    %v1393 = vmul.f32 %v1391, 1.0614054
    %v1394 = vsub.f32 %v1392, 1.4531521
    %v1395 = vsub.f32 %v1393, 1.4531521
    %v1396 = vmul.f32 %v1394, %v1389
    %v1397 = vmul.f32 %v1395, %v1391
    %v1398 = vadd.f32 %v1396, 1.4214138
    %v1399 = vadd.f32 %v1397, 1.4214138
    %v1400 = vmul.f32 %v1398, %v1389
    %v1401 = vmul.f32 %v1399, %v1391
    %v1402 = vsub.f32 %v1400, 0.28449672
    %v1403 = vsub.f32 %v1401, 0.28449672
    %v1404 = vmul.f32 %v1402, %v1389
    %v1405 = vmul.f32 %v1403, %v1391
    %v1406 = vadd.f32 %v1404, 0.2548296
    %v1407 = vadd.f32 %v1405, 0.2548296
    %v1408 = vmul.f32 %v1406, %v1389
    %v1409 = vmul.f32 %v1407, %v1391
    %v1410 = vsub.f32 0.0, %v1382
    %v1411 = vsub.f32 0.0, %v1383
    %v1412 = vmul.f32 %v1410, %v1382
    %v1413 = vmul.f32 %v1411, %v1383
    %v1414 = vmul.f32 %v1412, 1.442695
    %v1415 = vpow.pop %v1414
    %v1416 = vmul.f32 %v1413, 1.442695
    %v1417 = vpow.pop %v1416
    %v1418 = vmul.f32 %v1408, %v1415
    %v1419 = vmul.f32 %v1409, %v1417
    %v1420 = vsub.f32 1.0, %v1418
    %v1421 = vsub.f32 1.0, %v1419
    %vm1422 = vcmp.ge.f32.partialorder %v1380, 0.0
    %vm1423 = vcmp.ge.f32.partialorder %v1381, 0.0
    %v1424 = vsub.f32 0.0, %v1420
    %v1425 = vsub.f32 0.0, %v1421
    %v1426 = vsel %vm1422, %v1420, %v1424
    %v1427 = vsel %vm1423, %v1421, %v1425
    %v1428 = vmul.f32 %v1372, 0.5
    %v1429 = vmul.f32 %v1377, 0.5
    %v1430 = vadd.f32 %v1426, 1.0
    %v1431 = vadd.f32 %v1427, 1.0
    %v1432 = vmul.f32 %v1428, %v1430
    %v1433 = vmul.f32 %v1429, %v1431
    %v1434 = vld [vmem:[%s6] sm:$0xff]
    %v1435 = vld [vmem:[%s6 + $0x8] sm:$0xff]
    %v1436 = vld [vmem:[%s6 + $0x10] sm:$0xff]
    %v1437 = vld [vmem:[%s6 + $0x18] sm:$0xff]
    %v1438 = vld [vmem:[%s6 + $0x20] sm:$0xff]
    %v1439 = vld [vmem:[%s6 + $0x28] sm:$0xff]
    %v1440 = vld [vmem:[%s6 + $0x30] sm:$0xff]
    %v1441 = vld [vmem:[%s6 + $0x38] sm:$0xff]
    %vm1442 = vcmask 523264
    %v1444 = vsel %vm1442, %v1432, 0
    %v1447 = vsel %vm1442, %v1433, 0
    %1449 = vmatprep.subr.mxu0 0.0
    %1450 = vmatpush1.msra.mxu0 0.0
    %1451 = vmatprep.subr.mxu0 0.0
    %1452 = vmatpush1.msra.mxu0 0.0
    %1453 = vmatprep.subr.mxu0 0.0
    %1454 = vmatpush1.msra.mxu0 0.0
    %1455 = vmatprep.subr.mxu0 0.0
    %1456 = vmatpush1.msra.mxu0 0.0
    %1457 = vmatprep.subr.mxu0 0.0
    %1458 = vmatpush1.msra.mxu0 0.0
    %1459 = vmatprep.subr.mxu0 0.0
    %1460 = vmatpush1.msra.mxu0 0.0
    %1461 = vmatprep.subr.mxu0 0.0
    %1462 = vmatpush1.msra.mxu0 0.0
    %1463 = vmatprep.subr.mxu0 0.0
    %1464 = vmatpush1.msra.mxu0 0.0
    %1465 = vmatprep.subr.mxu0 0.0
    %1466 = vmatpush1.msra.mxu0 %v1441
    %1467 = vmatprep.subr.mxu0 0.0
    %1468 = vmatpush1.msra.mxu0 %v1440
    %1469 = vmatprep.subr.mxu0 0.0
    %1470 = vmatpush1.msra.mxu0 %v1439
    %1471 = vmatprep.subr.mxu0 0.0
    %1472 = vmatpush1.msra.mxu0 %v1438
    %1473 = vmatprep.subr.mxu0 0.0
    %1474 = vmatpush1.msra.mxu0 %v1437
    %1475 = vmatprep.subr.mxu0 0.0
    %1476 = vmatpush1.msra.mxu0 %v1436
    %1477 = vmatprep.subr.mxu0 0.0
    %1478 = vmatpush1.msra.mxu0 %v1435
    %1479 = vmatprep.subr.mxu0 0.0
    %1480 = vmatpush1.msra.mxu0 %v1434
    %1481 = vmatprep.subr.mxu0 0.0
    %1482 = vmatpush2.msra.mxu0 0.0
    %1483 = vmatprep.subr.mxu0 0.0
    %1484 = vmatpush2.msra.mxu0 0.0
    %1485 = vmatprep.subr.mxu0 0.0
    %1486 = vmatpush2.msra.mxu0 0.0
    %1487 = vmatprep.subr.mxu0 0.0
    %1488 = vmatpush2.msra.mxu0 0.0
    %1489 = vmatprep.subr.mxu0 0.0
    %1490 = vmatpush2.msra.mxu0 0.0
    %1491 = vmatprep.subr.mxu0 0.0
    %1492 = vmatpush2.msra.mxu0 0.0
    %1493 = vmatprep.subr.mxu0 0.0
    %1494 = vmatpush2.msra.mxu0 0.0
    %1495 = vmatprep.subr.mxu0 0.0
    %1496 = vmatpush2.msra.mxu0 0.0
    %1497 = vmatprep.subr.mxu0 0.0
    %1498 = vmatpush2.msra.mxu0 0.0
    %1499 = vmatprep.subr.mxu0 0.0
    %1500 = vmatpush2.msra.mxu0 0.0
    %1501 = vmatprep.subr.mxu0 0.0
    %1502 = vmatpush2.msra.mxu0 0.0
    %1503 = vmatprep.subr.mxu0 0.0
    %1504 = vmatpush2.msra.mxu0 0.0
    %1505 = vmatprep.subr.mxu0 0.0
    %1506 = vmatpush2.msra.mxu0 0.0
    %1507 = vmatprep.subr.mxu0 0.0
    %1508 = vmatpush2.msra.mxu0 0.0
    %1509 = vmatprep.subr.mxu0 0.0
    %1510 = vmatpush2.msra.mxu0 0.0
    %1511 = vmatprep.subr.mxu0 0.0
    %1512 = vmatpush2.msra.mxu0 0.0
    %1513 = vmatprep.mubr.f32.mxu0 0.0
    %1514 = vmatmul.mubr.f32.gmra.mxu0 %v1444
    %v1515 = vpop.f32.mrf.mxu0
    %v1516 = vadd.f32 0.0, %v1515
    %v1517 = vpop.f32.mrf.mxu0
    %1518 = vmatprep.mubr.f32.mxu0 0.0
    %1519 = vmatmul.mubr.f32.gmra.mxu0 %v1447
    %v1520 = vpop.f32.mrf.mxu0
    %v1521 = vadd.f32 0.0, %v1520
    %v1522 = vpop.f32.mrf.mxu0
    %1523 = vdwg.mxu0
    %v1524 = vadd.f32 %v1263, %v1516
    %v1525 = vadd.f32 %v1264, %v1521
    %v1526 = vadd.f32 %v1524, %v380
    %v1527 = vadd.f32 %v1525, %v380
    %v1528 = vld [vmem:[%s2 + $0x30] ss:$0 sm:$0xff]
    %v1529 = vld [vmem:[%s2 + $0x31] ss:$0 sm:$0xff]
    %v1530 = vld [vmem:[%s2 + $0x32] ss:$0 sm:$0xff]
    %v1531 = vld [vmem:[%s2 + $0x33] ss:$0 sm:$0xff]
    %v1532 = vld [vmem:[%s2 + $0x34] ss:$0 sm:$0xff]
    %v1533 = vld [vmem:[%s2 + $0x35] ss:$0 sm:$0xff]
    %v1534 = vld [vmem:[%s2 + $0x36] ss:$0 sm:$0xff]
    %v1535 = vld [vmem:[%s2 + $0x37] ss:$0 sm:$0xff]
    %v1536 = vsel %vm381, %v1526, 0.0
    %1537 = vadd.xlane.f32.xlu0 %v1536
    %v1538 = vpop.xlane.xlu0 %1537
    %v1539 = vsel %vm381, %v1527, 0.0
    %1540 = vadd.xlane.f32.xlu0 %v1539
    %v1541 = vpop.xlane.xlu0 %1540
    %v1542 = vmul.f32 %v1538, %v388
    %v1543 = vmul.f32 %v1541, %v388
    %v1544 = vsub.f32 %v1526, %v1542
    %v1545 = vsub.f32 %v1527, %v1543
    %v1546 = vmul.f32 %v1544, %v1544
    %v1547 = vmul.f32 %v1545, %v1545
    %v1548 = vsel %vm381, %v1546, 0.0
    %1549 = vadd.xlane.f32.xlu0 %v1548
    %v1550 = vpop.xlane.xlu0 %1549
    %v1551 = vsel %vm381, %v1547, 0.0
    %1552 = vadd.xlane.f32.xlu0 %v1551
    %v1553 = vpop.xlane.xlu0 %1552
    %v1554 = vmul.f32 %v1550, %v388
    %v1555 = vmul.f32 %v1553, %v388
    %v1556 = vadd.f32 %v1554, 1e-06
    %v1557 = vadd.f32 %v1555, 1e-06
    %v1558 = vrsqrt.pop %v1556
    %v1559 = vrsqrt.pop %v1557
    %v1560 = vmul.f32 %v1544, %v1558
    %v1561 = vmul.f32 %v1545, %v1559
    %v1562 = vmul.f32 %v1560, %v1528
    %v1563 = vmul.f32 %v1561, %v1528
    %v1564 = vadd.f32 %v1562, %v1529
    %v1565 = vadd.f32 %v1563, %v1529
    %s1566 = scalar_lea.vmem %s3, 32
    %v1567 = vld [vmem:[%s1566] sm:$0xff]
    %v1568 = vld [vmem:[%s1566 + $0x8] sm:$0xff]
    %v1569 = vld [vmem:[%s1566 + $0x10] sm:$0xff]
    %v1570 = vld [vmem:[%s1566 + $0x18] sm:$0xff]
    %v1572 = vsel %vm381, %v1564, 0
    %v1575 = vsel %vm381, %v1565, 0
    %1577 = vmatprep.subr.mxu0 0.0
    %1578 = vmatpush1.msra.mxu0 0.0
    %1579 = vmatprep.subr.mxu0 0.0
    %1580 = vmatpush1.msra.mxu0 0.0
    %1581 = vmatprep.subr.mxu0 0.0
    %1582 = vmatpush1.msra.mxu0 0.0
    %1583 = vmatprep.subr.mxu0 0.0
    %1584 = vmatpush1.msra.mxu0 0.0
    %1585 = vmatprep.subr.mxu0 0.0
    %1586 = vmatpush1.msra.mxu0 0.0
    %1587 = vmatprep.subr.mxu0 0.0
    %1588 = vmatpush1.msra.mxu0 0.0
    %1589 = vmatprep.subr.mxu0 0.0
    %1590 = vmatpush1.msra.mxu0 0.0
    %1591 = vmatprep.subr.mxu0 0.0
    %1592 = vmatpush1.msra.mxu0 0.0
    %1593 = vmatprep.subr.mxu0 0.0
    %1594 = vmatpush1.msra.mxu0 0.0
    %1595 = vmatprep.subr.mxu0 0.0
    %1596 = vmatpush1.msra.mxu0 0.0
    %1597 = vmatprep.subr.mxu0 0.0
    %1598 = vmatpush1.msra.mxu0 0.0
    %1599 = vmatprep.subr.mxu0 0.0
    %1600 = vmatpush1.msra.mxu0 0.0
    %1601 = vmatprep.subr.mxu0 0.0
    %1602 = vmatpush1.msra.mxu0 %v1570
    %1603 = vmatprep.subr.mxu0 0.0
    %1604 = vmatpush1.msra.mxu0 %v1569
    %1605 = vmatprep.subr.mxu0 0.0
    %1606 = vmatpush1.msra.mxu0 %v1568
    %1607 = vmatprep.subr.mxu0 0.0
    %1608 = vmatpush1.msra.mxu0 %v1567
    %1609 = vmatprep.subr.mxu0 0.0
    %1610 = vmatpush2.msra.mxu0 0.0
    %1611 = vmatprep.subr.mxu0 0.0
    %1612 = vmatpush2.msra.mxu0 0.0
    %1613 = vmatprep.subr.mxu0 0.0
    %1614 = vmatpush2.msra.mxu0 0.0
    %1615 = vmatprep.subr.mxu0 0.0
    %1616 = vmatpush2.msra.mxu0 0.0
    %1617 = vmatprep.subr.mxu0 0.0
    %1618 = vmatpush2.msra.mxu0 0.0
    %1619 = vmatprep.subr.mxu0 0.0
    %1620 = vmatpush2.msra.mxu0 0.0
    %1621 = vmatprep.subr.mxu0 0.0
    %1622 = vmatpush2.msra.mxu0 0.0
    %1623 = vmatprep.subr.mxu0 0.0
    %1624 = vmatpush2.msra.mxu0 0.0
    %1625 = vmatprep.subr.mxu0 0.0
    %1626 = vmatpush2.msra.mxu0 0.0
    %1627 = vmatprep.subr.mxu0 0.0
    %1628 = vmatpush2.msra.mxu0 0.0
    %1629 = vmatprep.subr.mxu0 0.0
    %1630 = vmatpush2.msra.mxu0 0.0
    %1631 = vmatprep.subr.mxu0 0.0
    %1632 = vmatpush2.msra.mxu0 0.0
    %1633 = vmatprep.subr.mxu0 0.0
    %1634 = vmatpush2.msra.mxu0 0.0
    %1635 = vmatprep.subr.mxu0 0.0
    %1636 = vmatpush2.msra.mxu0 0.0
    %1637 = vmatprep.subr.mxu0 0.0
    %1638 = vmatpush2.msra.mxu0 0.0
    %1639 = vmatprep.subr.mxu0 0.0
    %1640 = vmatpush2.msra.mxu0 0.0
    %1641 = vmatprep.mubr.f32.mxu0 0.0
    %1642 = vmatmul.mubr.f32.gmra.mxu0 %v1572
    %v1643 = vpop.f32.mrf.mxu0
    %v1644 = vadd.f32 %v1530, %v1643
    %v1645 = vpop.f32.mrf.mxu0
    %1646 = vmatprep.mubr.f32.mxu0 0.0
    %1647 = vmatmul.mubr.f32.gmra.mxu0 %v1575
    %v1648 = vpop.f32.mrf.mxu0
    %v1649 = vadd.f32 %v1530, %v1648
    %v1650 = vpop.f32.mrf.mxu0
    %1651 = vdwg.mxu0
    %1654 = vrot.lane.b32.xlu0 %v1644, 112
    %v1655 = vpop.permute.xlu0 %1654
    %1656 = vrot.lane.b32.xlu0 %v1649, 112
    %v1657 = vpop.permute.xlu0 %1656
    %1658 = vrot.lane.b32.xlu0 %v1644, 96
    %v1659 = vpop.permute.xlu0 %1658
    %v1660 = vsel %vm506, %v1644, 0
    %v1662 = vsel %vm506, %v1659, 0
    %1664 = vmatprep.subr.mxu0 0.0
    %1665 = vmatpush1.xpose.msra.mxu0 0.0
    %1666 = vmatprep.subr.mxu0 0.0
    %1667 = vmatpush1.xpose.msra.mxu0 0.0
    %1668 = vmatprep.subr.mxu0 0.0
    %1669 = vmatpush1.xpose.msra.mxu0 0.0
    %1670 = vmatprep.subr.mxu0 0.0
    %1671 = vmatpush1.xpose.msra.mxu0 0.0
    %1672 = vmatprep.subr.mxu0 0.0
    %1673 = vmatpush1.xpose.msra.mxu0 0.0
    %1674 = vmatprep.subr.mxu0 0.0
    %1675 = vmatpush1.xpose.msra.mxu0 0.0
    %1676 = vmatprep.subr.mxu0 0.0
    %1677 = vmatpush1.xpose.msra.mxu0 0.0
    %1678 = vmatprep.subr.mxu0 0.0
    %1679 = vmatpush1.xpose.msra.mxu0 0.0
    %1680 = vmatprep.subr.mxu0 0.0
    %1681 = vmatpush1.xpose.msra.mxu0 0.0
    %1682 = vmatprep.subr.mxu0 0.0
    %1683 = vmatpush1.xpose.msra.mxu0 0.0
    %1684 = vmatprep.subr.mxu0 0.0
    %1685 = vmatpush1.xpose.msra.mxu0 0.0
    %1686 = vmatprep.subr.mxu0 0.0
    %1687 = vmatpush1.xpose.msra.mxu0 0.0
    %1688 = vmatprep.subr.mxu0 0.0
    %1689 = vmatpush1.xpose.msra.mxu0 0.0
    %1690 = vmatprep.subr.mxu0 0.0
    %1691 = vmatpush1.xpose.msra.mxu0 0.0
    %1692 = vmatprep.subr.mxu0 0.0
    %1693 = vmatpush1.xpose.msra.mxu0 0.0
    %1694 = vmatprep.subr.mxu0 0.0
    %1695 = vmatpush1.xpose.msra.mxu0 %v1662
    %1696 = vmatprep.subr.mxu0 0.0
    %1697 = vmatpush2.xpose.msra.mxu0 0.0
    %1698 = vmatprep.subr.mxu0 0.0
    %1699 = vmatpush2.xpose.msra.mxu0 0.0
    %1700 = vmatprep.subr.mxu0 0.0
    %1701 = vmatpush2.xpose.msra.mxu0 0.0
    %1702 = vmatprep.subr.mxu0 0.0
    %1703 = vmatpush2.xpose.msra.mxu0 0.0
    %1704 = vmatprep.subr.mxu0 0.0
    %1705 = vmatpush2.xpose.msra.mxu0 0.0
    %1706 = vmatprep.subr.mxu0 0.0
    %1707 = vmatpush2.xpose.msra.mxu0 0.0
    %1708 = vmatprep.subr.mxu0 0.0
    %1709 = vmatpush2.xpose.msra.mxu0 0.0
    %1710 = vmatprep.subr.mxu0 0.0
    %1711 = vmatpush2.xpose.msra.mxu0 0.0
    %1712 = vmatprep.subr.mxu0 0.0
    %1713 = vmatpush2.xpose.msra.mxu0 0.0
    %1714 = vmatprep.subr.mxu0 0.0
    %1715 = vmatpush2.xpose.msra.mxu0 0.0
    %1716 = vmatprep.subr.mxu0 0.0
    %1717 = vmatpush2.xpose.msra.mxu0 0.0
    %1718 = vmatprep.subr.mxu0 0.0
    %1719 = vmatpush2.xpose.msra.mxu0 0.0
    %1720 = vmatprep.subr.mxu0 0.0
    %1721 = vmatpush2.xpose.msra.mxu0 0.0
    %1722 = vmatprep.subr.mxu0 0.0
    %1723 = vmatpush2.xpose.msra.mxu0 0.0
    %1724 = vmatprep.subr.mxu0 0.0
    %1725 = vmatpush2.xpose.msra.mxu0 0.0
    %1726 = vmatprep.subr.mxu0 0.0
    %1727 = vmatpush2.xpose.msra.mxu0 0.0
    %1728 = vmatprep.mubr.f32.mxu0 0.0
    %1729 = vmatmul.mubr.f32.gmra.mxu0 %v1660
    %v1730 = vpop.f32.mrf.mxu0
    %v1731 = vadd.f32 0.0, %v1730
    %v1732 = vpop.f32.mrf.mxu0
    %1733 = vdwg.mxu0
    %1734 = vrot.lane.b32.xlu0 %v1649, 96
    %v1735 = vpop.permute.xlu0 %1734
    %v1736 = vsel %vm506, %v1649, 0
    %v1738 = vsel %vm506, %v1735, 0
    %1740 = vmatprep.subr.mxu0 0.0
    %1741 = vmatpush1.xpose.msra.mxu0 0.0
    %1742 = vmatprep.subr.mxu0 0.0
    %1743 = vmatpush1.xpose.msra.mxu0 0.0
    %1744 = vmatprep.subr.mxu0 0.0
    %1745 = vmatpush1.xpose.msra.mxu0 0.0
    %1746 = vmatprep.subr.mxu0 0.0
    %1747 = vmatpush1.xpose.msra.mxu0 0.0
    %1748 = vmatprep.subr.mxu0 0.0
    %1749 = vmatpush1.xpose.msra.mxu0 0.0
    %1750 = vmatprep.subr.mxu0 0.0
    %1751 = vmatpush1.xpose.msra.mxu0 0.0
    %1752 = vmatprep.subr.mxu0 0.0
    %1753 = vmatpush1.xpose.msra.mxu0 0.0
    %1754 = vmatprep.subr.mxu0 0.0
    %1755 = vmatpush1.xpose.msra.mxu0 0.0
    %1756 = vmatprep.subr.mxu0 0.0
    %1757 = vmatpush1.xpose.msra.mxu0 0.0
    %1758 = vmatprep.subr.mxu0 0.0
    %1759 = vmatpush1.xpose.msra.mxu0 0.0
    %1760 = vmatprep.subr.mxu0 0.0
    %1761 = vmatpush1.xpose.msra.mxu0 0.0
    %1762 = vmatprep.subr.mxu0 0.0
    %1763 = vmatpush1.xpose.msra.mxu0 0.0
    %1764 = vmatprep.subr.mxu0 0.0
    %1765 = vmatpush1.xpose.msra.mxu0 0.0
    %1766 = vmatprep.subr.mxu0 0.0
    %1767 = vmatpush1.xpose.msra.mxu0 0.0
    %1768 = vmatprep.subr.mxu0 0.0
    %1769 = vmatpush1.xpose.msra.mxu0 0.0
    %1770 = vmatprep.subr.mxu0 0.0
    %1771 = vmatpush1.xpose.msra.mxu0 %v1738
    %1772 = vmatprep.subr.mxu0 0.0
    %1773 = vmatpush2.xpose.msra.mxu0 0.0
    %1774 = vmatprep.subr.mxu0 0.0
    %1775 = vmatpush2.xpose.msra.mxu0 0.0
    %1776 = vmatprep.subr.mxu0 0.0
    %1777 = vmatpush2.xpose.msra.mxu0 0.0
    %1778 = vmatprep.subr.mxu0 0.0
    %1779 = vmatpush2.xpose.msra.mxu0 0.0
    %1780 = vmatprep.subr.mxu0 0.0
    %1781 = vmatpush2.xpose.msra.mxu0 0.0
    %1782 = vmatprep.subr.mxu0 0.0
    %1783 = vmatpush2.xpose.msra.mxu0 0.0
    %1784 = vmatprep.subr.mxu0 0.0
    %1785 = vmatpush2.xpose.msra.mxu0 0.0
    %1786 = vmatprep.subr.mxu0 0.0
    %1787 = vmatpush2.xpose.msra.mxu0 0.0
    %1788 = vmatprep.subr.mxu0 0.0
    %1789 = vmatpush2.xpose.msra.mxu0 0.0
    %1790 = vmatprep.subr.mxu0 0.0
    %1791 = vmatpush2.xpose.msra.mxu0 0.0
    %1792 = vmatprep.subr.mxu0 0.0
    %1793 = vmatpush2.xpose.msra.mxu0 0.0
    %1794 = vmatprep.subr.mxu0 0.0
    %1795 = vmatpush2.xpose.msra.mxu0 0.0
    %1796 = vmatprep.subr.mxu0 0.0
    %1797 = vmatpush2.xpose.msra.mxu0 0.0
    %1798 = vmatprep.subr.mxu0 0.0
    %1799 = vmatpush2.xpose.msra.mxu0 0.0
    %1800 = vmatprep.subr.mxu0 0.0
    %1801 = vmatpush2.xpose.msra.mxu0 0.0
    %1802 = vmatprep.subr.mxu0 0.0
    %1803 = vmatpush2.xpose.msra.mxu0 0.0
    %1804 = vmatprep.mubr.f32.mxu0 0.0
    %1805 = vmatmul.mubr.f32.gmra.mxu0 %v1736
    %v1806 = vpop.f32.mrf.mxu0
    %v1807 = vadd.f32 0.0, %v1806
    %v1808 = vpop.f32.mrf.mxu0
    %1809 = vdwg.mxu0
    %1810 = vrot.lane.b32.xlu0 %v1655, 96
    %v1811 = vpop.permute.xlu0 %1810
    %v1812 = vsel %vm506, %v1655, 0
    %v1814 = vsel %vm506, %v1811, 0
    %1816 = vmatprep.subr.mxu0 0.0
    %1817 = vmatpush1.xpose.msra.mxu0 0.0
    %1818 = vmatprep.subr.mxu0 0.0
    %1819 = vmatpush1.xpose.msra.mxu0 0.0
    %1820 = vmatprep.subr.mxu0 0.0
    %1821 = vmatpush1.xpose.msra.mxu0 0.0
    %1822 = vmatprep.subr.mxu0 0.0
    %1823 = vmatpush1.xpose.msra.mxu0 0.0
    %1824 = vmatprep.subr.mxu0 0.0
    %1825 = vmatpush1.xpose.msra.mxu0 0.0
    %1826 = vmatprep.subr.mxu0 0.0
    %1827 = vmatpush1.xpose.msra.mxu0 0.0
    %1828 = vmatprep.subr.mxu0 0.0
    %1829 = vmatpush1.xpose.msra.mxu0 0.0
    %1830 = vmatprep.subr.mxu0 0.0
    %1831 = vmatpush1.xpose.msra.mxu0 0.0
    %1832 = vmatprep.subr.mxu0 0.0
    %1833 = vmatpush1.xpose.msra.mxu0 0.0
    %1834 = vmatprep.subr.mxu0 0.0
    %1835 = vmatpush1.xpose.msra.mxu0 0.0
    %1836 = vmatprep.subr.mxu0 0.0
    %1837 = vmatpush1.xpose.msra.mxu0 0.0
    %1838 = vmatprep.subr.mxu0 0.0
    %1839 = vmatpush1.xpose.msra.mxu0 0.0
    %1840 = vmatprep.subr.mxu0 0.0
    %1841 = vmatpush1.xpose.msra.mxu0 0.0
    %1842 = vmatprep.subr.mxu0 0.0
    %1843 = vmatpush1.xpose.msra.mxu0 0.0
    %1844 = vmatprep.subr.mxu0 0.0
    %1845 = vmatpush1.xpose.msra.mxu0 0.0
    %1846 = vmatprep.subr.mxu0 0.0
    %1847 = vmatpush1.xpose.msra.mxu0 %v1814
    %1848 = vmatprep.subr.mxu0 0.0
    %1849 = vmatpush2.xpose.msra.mxu0 0.0
    %1850 = vmatprep.subr.mxu0 0.0
    %1851 = vmatpush2.xpose.msra.mxu0 0.0
    %1852 = vmatprep.subr.mxu0 0.0
    %1853 = vmatpush2.xpose.msra.mxu0 0.0
    %1854 = vmatprep.subr.mxu0 0.0
    %1855 = vmatpush2.xpose.msra.mxu0 0.0
    %1856 = vmatprep.subr.mxu0 0.0
    %1857 = vmatpush2.xpose.msra.mxu0 0.0
    %1858 = vmatprep.subr.mxu0 0.0
    %1859 = vmatpush2.xpose.msra.mxu0 0.0
    %1860 = vmatprep.subr.mxu0 0.0
    %1861 = vmatpush2.xpose.msra.mxu0 0.0
    %1862 = vmatprep.subr.mxu0 0.0
    %1863 = vmatpush2.xpose.msra.mxu0 0.0
    %1864 = vmatprep.subr.mxu0 0.0
    %1865 = vmatpush2.xpose.msra.mxu0 0.0
    %1866 = vmatprep.subr.mxu0 0.0
    %1867 = vmatpush2.xpose.msra.mxu0 0.0
    %1868 = vmatprep.subr.mxu0 0.0
    %1869 = vmatpush2.xpose.msra.mxu0 0.0
    %1870 = vmatprep.subr.mxu0 0.0
    %1871 = vmatpush2.xpose.msra.mxu0 0.0
    %1872 = vmatprep.subr.mxu0 0.0
    %1873 = vmatpush2.xpose.msra.mxu0 0.0
    %1874 = vmatprep.subr.mxu0 0.0
    %1875 = vmatpush2.xpose.msra.mxu0 0.0
    %1876 = vmatprep.subr.mxu0 0.0
    %1877 = vmatpush2.xpose.msra.mxu0 0.0
    %1878 = vmatprep.subr.mxu0 0.0
    %1879 = vmatpush2.xpose.msra.mxu0 0.0
    %1880 = vmatprep.mubr.f32.mxu0 0.0
    %1881 = vmatmul.mubr.f32.gmra.mxu0 %v1812
    %v1882 = vpop.f32.mrf.mxu0
    %v1883 = vadd.f32 0.0, %v1882
    %v1884 = vpop.f32.mrf.mxu0
    %1885 = vdwg.mxu0
    %1886 = vrot.lane.b32.xlu0 %v1657, 96
    %v1887 = vpop.permute.xlu0 %1886
    %v1888 = vsel %vm506, %v1657, 0
    %v1890 = vsel %vm506, %v1887, 0
    %1892 = vmatprep.subr.mxu0 0.0
    %1893 = vmatpush1.xpose.msra.mxu0 0.0
    %1894 = vmatprep.subr.mxu0 0.0
    %1895 = vmatpush1.xpose.msra.mxu0 0.0
    %1896 = vmatprep.subr.mxu0 0.0
    %1897 = vmatpush1.xpose.msra.mxu0 0.0
    %1898 = vmatprep.subr.mxu0 0.0
    %1899 = vmatpush1.xpose.msra.mxu0 0.0
    %1900 = vmatprep.subr.mxu0 0.0
    %1901 = vmatpush1.xpose.msra.mxu0 0.0
    %1902 = vmatprep.subr.mxu0 0.0
    %1903 = vmatpush1.xpose.msra.mxu0 0.0
    %1904 = vmatprep.subr.mxu0 0.0
    %1905 = vmatpush1.xpose.msra.mxu0 0.0
    %1906 = vmatprep.subr.mxu0 0.0
    %1907 = vmatpush1.xpose.msra.mxu0 0.0
    %1908 = vmatprep.subr.mxu0 0.0
    %1909 = vmatpush1.xpose.msra.mxu0 0.0
    %1910 = vmatprep.subr.mxu0 0.0
    %1911 = vmatpush1.xpose.msra.mxu0 0.0
    %1912 = vmatprep.subr.mxu0 0.0
    %1913 = vmatpush1.xpose.msra.mxu0 0.0
    %1914 = vmatprep.subr.mxu0 0.0
    %1915 = vmatpush1.xpose.msra.mxu0 0.0
    %1916 = vmatprep.subr.mxu0 0.0
    %1917 = vmatpush1.xpose.msra.mxu0 0.0
    %1918 = vmatprep.subr.mxu0 0.0
    %1919 = vmatpush1.xpose.msra.mxu0 0.0
    %1920 = vmatprep.subr.mxu0 0.0
    %1921 = vmatpush1.xpose.msra.mxu0 0.0
    %1922 = vmatprep.subr.mxu0 0.0
    %1923 = vmatpush1.xpose.msra.mxu0 %v1890
    %1924 = vmatprep.subr.mxu0 0.0
    %1925 = vmatpush2.xpose.msra.mxu0 0.0
    %1926 = vmatprep.subr.mxu0 0.0
    %1927 = vmatpush2.xpose.msra.mxu0 0.0
    %1928 = vmatprep.subr.mxu0 0.0
    %1929 = vmatpush2.xpose.msra.mxu0 0.0
    %1930 = vmatprep.subr.mxu0 0.0
    %1931 = vmatpush2.xpose.msra.mxu0 0.0
    %1932 = vmatprep.subr.mxu0 0.0
    %1933 = vmatpush2.xpose.msra.mxu0 0.0
    %1934 = vmatprep.subr.mxu0 0.0
    %1935 = vmatpush2.xpose.msra.mxu0 0.0
    %1936 = vmatprep.subr.mxu0 0.0
    %1937 = vmatpush2.xpose.msra.mxu0 0.0
    %1938 = vmatprep.subr.mxu0 0.0
    %1939 = vmatpush2.xpose.msra.mxu0 0.0
    %1940 = vmatprep.subr.mxu0 0.0
    %1941 = vmatpush2.xpose.msra.mxu0 0.0
    %1942 = vmatprep.subr.mxu0 0.0
    %1943 = vmatpush2.xpose.msra.mxu0 0.0
    %1944 = vmatprep.subr.mxu0 0.0
    %1945 = vmatpush2.xpose.msra.mxu0 0.0
    %1946 = vmatprep.subr.mxu0 0.0
    %1947 = vmatpush2.xpose.msra.mxu0 0.0
    %1948 = vmatprep.subr.mxu0 0.0
    %1949 = vmatpush2.xpose.msra.mxu0 0.0
    %1950 = vmatprep.subr.mxu0 0.0
    %1951 = vmatpush2.xpose.msra.mxu0 0.0
    %1952 = vmatprep.subr.mxu0 0.0
    %1953 = vmatpush2.xpose.msra.mxu0 0.0
    %1954 = vmatprep.subr.mxu0 0.0
    %1955 = vmatpush2.xpose.msra.mxu0 0.0
    %1956 = vmatprep.mubr.f32.mxu0 0.0
    %1957 = vmatmul.mubr.f32.gmra.mxu0 %v1888
    %v1958 = vpop.f32.mrf.mxu0
    %v1959 = vadd.f32 0.0, %v1958
    %v1960 = vpop.f32.mrf.mxu0
    %1961 = vdwg.mxu0
    %v1962 = vmul.f32 %v1731, 0.25
    %v1963 = vmul.f32 %v1807, 0.25
    %v1964 = vmul.f32 %v1883, 0.25
    %v1965 = vmul.f32 %v1959, 0.25
    %v1966 = vadd.f32 %v1962, %v372
    %v1967 = vadd.f32 %v1963, %v372
    %v1968 = vadd.f32 %v1964, %v372
    %v1969 = vadd.f32 %v1965, %v372
    %v1970 = vsel %vm817, %v1966, -inf
    %1971 = vmax.xlane.f32.xlu0 %v1970
    %v1972 = vpop.xlane.xlu0 %1971
    %v1973 = vsel %vm817, %v1967, -inf
    %1974 = vmax.xlane.f32.xlu0 %v1973
    %v1975 = vpop.xlane.xlu0 %1974
    %v1976 = vsel %vm817, %v1968, -inf
    %1977 = vmax.xlane.f32.xlu0 %v1976
    %v1978 = vpop.xlane.xlu0 %1977
    %v1979 = vsel %vm817, %v1969, -inf
    %1980 = vmax.xlane.f32.xlu0 %v1979
    %v1981 = vpop.xlane.xlu0 %1980
    %v1982 = vsub.f32 %v1966, %v1972
    %v1983 = vsub.f32 %v1967, %v1975
    %v1984 = vsub.f32 %v1968, %v1978
    %v1985 = vsub.f32 %v1969, %v1981
    %v1986 = vmul.f32 %v1982, 1.442695
    %v1987 = vpow.pop %v1986
    %v1988 = vmul.f32 %v1983, 1.442695
    %v1989 = vpow.pop %v1988
    %v1990 = vmul.f32 %v1984, 1.442695
    %v1991 = vpow.pop %v1990
    %v1992 = vmul.f32 %v1985, 1.442695
    %v1993 = vpow.pop %v1992
    %v1994 = vsel %vm817, %v1987, 0.0
    %1995 = vadd.xlane.f32.xlu0 %v1994
    %v1996 = vpop.xlane.xlu0 %1995
    %v1997 = vsel %vm817, %v1989, 0.0
    %1998 = vadd.xlane.f32.xlu0 %v1997
    %v1999 = vpop.xlane.xlu0 %1998
    %v2000 = vsel %vm817, %v1991, 0.0
    %2001 = vadd.xlane.f32.xlu0 %v2000
    %v2002 = vpop.xlane.xlu0 %2001
    %v2003 = vsel %vm817, %v1993, 0.0
    %2004 = vadd.xlane.f32.xlu0 %v2003
    %v2005 = vpop.xlane.xlu0 %2004
    %v2006 = vrcp.pop %v1996
    %v2007 = vrcp.pop %v1999
    %v2008 = vrcp.pop %v2002
    %v2009 = vrcp.pop %v2005
    %v2010 = vmul.f32 %v1987, %v2006
    %v2011 = vmul.f32 %v1989, %v2007
    %v2012 = vmul.f32 %v1991, %v2008
    %v2013 = vmul.f32 %v1993, %v2009
    %2014 = vrot.lane.b32.xlu0 %v1644, 64
    %v2015 = vpop.permute.xlu0 %2014
    %v2018 = vsel %vm817, %v2010, 0
    %2020 = vmatprep.subr.mxu0 0.0
    %2021 = vmatpush1.msra.mxu0 0.0
    %2022 = vmatprep.subr.mxu0 0.0
    %2023 = vmatpush1.msra.mxu0 0.0
    %2024 = vmatprep.subr.mxu0 0.0
    %2025 = vmatpush1.msra.mxu0 0.0
    %2026 = vmatprep.subr.mxu0 0.0
    %2027 = vmatpush1.msra.mxu0 0.0
    %2028 = vmatprep.subr.mxu0 0.0
    %2029 = vmatpush1.msra.mxu0 0.0
    %2030 = vmatprep.subr.mxu0 0.0
    %2031 = vmatpush1.msra.mxu0 0.0
    %2032 = vmatprep.subr.mxu0 0.0
    %2033 = vmatpush1.msra.mxu0 0.0
    %2034 = vmatprep.subr.mxu0 0.0
    %2035 = vmatpush1.msra.mxu0 0.0
    %2036 = vmatprep.subr.mxu0 0.0
    %2037 = vmatpush1.msra.mxu0 0.0
    %2038 = vmatprep.subr.mxu0 0.0
    %2039 = vmatpush1.msra.mxu0 0.0
    %2040 = vmatprep.subr.mxu0 0.0
    %2041 = vmatpush1.msra.mxu0 0.0
    %2042 = vmatprep.subr.mxu0 0.0
    %2043 = vmatpush1.msra.mxu0 0.0
    %2044 = vmatprep.subr.mxu0 0.0
    %2045 = vmatpush1.msra.mxu0 0.0
    %2046 = vmatprep.subr.mxu0 0.0
    %2047 = vmatpush1.msra.mxu0 0.0
    %2048 = vmatprep.subr.mxu0 0.0
    %2049 = vmatpush1.msra.mxu0 0.0
    %2050 = vmatprep.subr.mxu0 0.0
    %2051 = vmatpush1.msra.mxu0 %v2015
    %2052 = vmatprep.subr.mxu0 0.0
    %2053 = vmatpush2.msra.mxu0 0.0
    %2054 = vmatprep.subr.mxu0 0.0
    %2055 = vmatpush2.msra.mxu0 0.0
    %2056 = vmatprep.subr.mxu0 0.0
    %2057 = vmatpush2.msra.mxu0 0.0
    %2058 = vmatprep.subr.mxu0 0.0
    %2059 = vmatpush2.msra.mxu0 0.0
    %2060 = vmatprep.subr.mxu0 0.0
    %2061 = vmatpush2.msra.mxu0 0.0
    %2062 = vmatprep.subr.mxu0 0.0
    %2063 = vmatpush2.msra.mxu0 0.0
    %2064 = vmatprep.subr.mxu0 0.0
    %2065 = vmatpush2.msra.mxu0 0.0
    %2066 = vmatprep.subr.mxu0 0.0
    %2067 = vmatpush2.msra.mxu0 0.0
    %2068 = vmatprep.subr.mxu0 0.0
    %2069 = vmatpush2.msra.mxu0 0.0
    %2070 = vmatprep.subr.mxu0 0.0
    %2071 = vmatpush2.msra.mxu0 0.0
    %2072 = vmatprep.subr.mxu0 0.0
    %2073 = vmatpush2.msra.mxu0 0.0
    %2074 = vmatprep.subr.mxu0 0.0
    %2075 = vmatpush2.msra.mxu0 0.0
    %2076 = vmatprep.subr.mxu0 0.0
    %2077 = vmatpush2.msra.mxu0 0.0
    %2078 = vmatprep.subr.mxu0 0.0
    %2079 = vmatpush2.msra.mxu0 0.0
    %2080 = vmatprep.subr.mxu0 0.0
    %2081 = vmatpush2.msra.mxu0 0.0
    %2082 = vmatprep.subr.mxu0 0.0
    %2083 = vmatpush2.msra.mxu0 0.0
    %2084 = vmatprep.mubr.f32.mxu0 0.0
    %2085 = vmatmul.mubr.f32.gmra.mxu0 %v2018
    %v2086 = vpop.f32.mrf.mxu0
    %v2087 = vadd.f32 0.0, %v2086
    %v2088 = vpop.f32.mrf.mxu0
    %2089 = vdwg.mxu0
    %2090 = vrot.lane.b32.xlu0 %v1649, 64
    %v2091 = vpop.permute.xlu0 %2090
    %v2094 = vsel %vm817, %v2011, 0
    %2096 = vmatprep.subr.mxu0 0.0
    %2097 = vmatpush1.msra.mxu0 0.0
    %2098 = vmatprep.subr.mxu0 0.0
    %2099 = vmatpush1.msra.mxu0 0.0
    %2100 = vmatprep.subr.mxu0 0.0
    %2101 = vmatpush1.msra.mxu0 0.0
    %2102 = vmatprep.subr.mxu0 0.0
    %2103 = vmatpush1.msra.mxu0 0.0
    %2104 = vmatprep.subr.mxu0 0.0
    %2105 = vmatpush1.msra.mxu0 0.0
    %2106 = vmatprep.subr.mxu0 0.0
    %2107 = vmatpush1.msra.mxu0 0.0
    %2108 = vmatprep.subr.mxu0 0.0
    %2109 = vmatpush1.msra.mxu0 0.0
    %2110 = vmatprep.subr.mxu0 0.0
    %2111 = vmatpush1.msra.mxu0 0.0
    %2112 = vmatprep.subr.mxu0 0.0
    %2113 = vmatpush1.msra.mxu0 0.0
    %2114 = vmatprep.subr.mxu0 0.0
    %2115 = vmatpush1.msra.mxu0 0.0
    %2116 = vmatprep.subr.mxu0 0.0
    %2117 = vmatpush1.msra.mxu0 0.0
    %2118 = vmatprep.subr.mxu0 0.0
    %2119 = vmatpush1.msra.mxu0 0.0
    %2120 = vmatprep.subr.mxu0 0.0
    %2121 = vmatpush1.msra.mxu0 0.0
    %2122 = vmatprep.subr.mxu0 0.0
    %2123 = vmatpush1.msra.mxu0 0.0
    %2124 = vmatprep.subr.mxu0 0.0
    %2125 = vmatpush1.msra.mxu0 0.0
    %2126 = vmatprep.subr.mxu0 0.0
    %2127 = vmatpush1.msra.mxu0 %v2091
    %2128 = vmatprep.subr.mxu0 0.0
    %2129 = vmatpush2.msra.mxu0 0.0
    %2130 = vmatprep.subr.mxu0 0.0
    %2131 = vmatpush2.msra.mxu0 0.0
    %2132 = vmatprep.subr.mxu0 0.0
    %2133 = vmatpush2.msra.mxu0 0.0
    %2134 = vmatprep.subr.mxu0 0.0
    %2135 = vmatpush2.msra.mxu0 0.0
    %2136 = vmatprep.subr.mxu0 0.0
    %2137 = vmatpush2.msra.mxu0 0.0
    %2138 = vmatprep.subr.mxu0 0.0
    %2139 = vmatpush2.msra.mxu0 0.0
    %2140 = vmatprep.subr.mxu0 0.0
    %2141 = vmatpush2.msra.mxu0 0.0
    %2142 = vmatprep.subr.mxu0 0.0
    %2143 = vmatpush2.msra.mxu0 0.0
    %2144 = vmatprep.subr.mxu0 0.0
    %2145 = vmatpush2.msra.mxu0 0.0
    %2146 = vmatprep.subr.mxu0 0.0
    %2147 = vmatpush2.msra.mxu0 0.0
    %2148 = vmatprep.subr.mxu0 0.0
    %2149 = vmatpush2.msra.mxu0 0.0
    %2150 = vmatprep.subr.mxu0 0.0
    %2151 = vmatpush2.msra.mxu0 0.0
    %2152 = vmatprep.subr.mxu0 0.0
    %2153 = vmatpush2.msra.mxu0 0.0
    %2154 = vmatprep.subr.mxu0 0.0
    %2155 = vmatpush2.msra.mxu0 0.0
    %2156 = vmatprep.subr.mxu0 0.0
    %2157 = vmatpush2.msra.mxu0 0.0
    %2158 = vmatprep.subr.mxu0 0.0
    %2159 = vmatpush2.msra.mxu0 0.0
    %2160 = vmatprep.mubr.f32.mxu0 0.0
    %2161 = vmatmul.mubr.f32.gmra.mxu0 %v2094
    %v2162 = vpop.f32.mrf.mxu0
    %v2163 = vadd.f32 0.0, %v2162
    %v2164 = vpop.f32.mrf.mxu0
    %2165 = vdwg.mxu0
    %2166 = vrot.lane.b32.xlu0 %v1655, 64
    %v2167 = vpop.permute.xlu0 %2166
    %v2170 = vsel %vm817, %v2012, 0
    %2172 = vmatprep.subr.mxu0 0.0
    %2173 = vmatpush1.msra.mxu0 0.0
    %2174 = vmatprep.subr.mxu0 0.0
    %2175 = vmatpush1.msra.mxu0 0.0
    %2176 = vmatprep.subr.mxu0 0.0
    %2177 = vmatpush1.msra.mxu0 0.0
    %2178 = vmatprep.subr.mxu0 0.0
    %2179 = vmatpush1.msra.mxu0 0.0
    %2180 = vmatprep.subr.mxu0 0.0
    %2181 = vmatpush1.msra.mxu0 0.0
    %2182 = vmatprep.subr.mxu0 0.0
    %2183 = vmatpush1.msra.mxu0 0.0
    %2184 = vmatprep.subr.mxu0 0.0
    %2185 = vmatpush1.msra.mxu0 0.0
    %2186 = vmatprep.subr.mxu0 0.0
    %2187 = vmatpush1.msra.mxu0 0.0
    %2188 = vmatprep.subr.mxu0 0.0
    %2189 = vmatpush1.msra.mxu0 0.0
    %2190 = vmatprep.subr.mxu0 0.0
    %2191 = vmatpush1.msra.mxu0 0.0
    %2192 = vmatprep.subr.mxu0 0.0
    %2193 = vmatpush1.msra.mxu0 0.0
    %2194 = vmatprep.subr.mxu0 0.0
    %2195 = vmatpush1.msra.mxu0 0.0
    %2196 = vmatprep.subr.mxu0 0.0
    %2197 = vmatpush1.msra.mxu0 0.0
    %2198 = vmatprep.subr.mxu0 0.0
    %2199 = vmatpush1.msra.mxu0 0.0
    %2200 = vmatprep.subr.mxu0 0.0
    %2201 = vmatpush1.msra.mxu0 0.0
    %2202 = vmatprep.subr.mxu0 0.0
    %2203 = vmatpush1.msra.mxu0 %v2167
    %2204 = vmatprep.subr.mxu0 0.0
    %2205 = vmatpush2.msra.mxu0 0.0
    %2206 = vmatprep.subr.mxu0 0.0
    %2207 = vmatpush2.msra.mxu0 0.0
    %2208 = vmatprep.subr.mxu0 0.0
    %2209 = vmatpush2.msra.mxu0 0.0
    %2210 = vmatprep.subr.mxu0 0.0
    %2211 = vmatpush2.msra.mxu0 0.0
    %2212 = vmatprep.subr.mxu0 0.0
    %2213 = vmatpush2.msra.mxu0 0.0
    %2214 = vmatprep.subr.mxu0 0.0
    %2215 = vmatpush2.msra.mxu0 0.0
    %2216 = vmatprep.subr.mxu0 0.0
    %2217 = vmatpush2.msra.mxu0 0.0
    %2218 = vmatprep.subr.mxu0 0.0
    %2219 = vmatpush2.msra.mxu0 0.0
    %2220 = vmatprep.subr.mxu0 0.0
    %2221 = vmatpush2.msra.mxu0 0.0
    %2222 = vmatprep.subr.mxu0 0.0
    %2223 = vmatpush2.msra.mxu0 0.0
    %2224 = vmatprep.subr.mxu0 0.0
    %2225 = vmatpush2.msra.mxu0 0.0
    %2226 = vmatprep.subr.mxu0 0.0
    %2227 = vmatpush2.msra.mxu0 0.0
    %2228 = vmatprep.subr.mxu0 0.0
    %2229 = vmatpush2.msra.mxu0 0.0
    %2230 = vmatprep.subr.mxu0 0.0
    %2231 = vmatpush2.msra.mxu0 0.0
    %2232 = vmatprep.subr.mxu0 0.0
    %2233 = vmatpush2.msra.mxu0 0.0
    %2234 = vmatprep.subr.mxu0 0.0
    %2235 = vmatpush2.msra.mxu0 0.0
    %2236 = vmatprep.mubr.f32.mxu0 0.0
    %2237 = vmatmul.mubr.f32.gmra.mxu0 %v2170
    %v2238 = vpop.f32.mrf.mxu0
    %v2239 = vadd.f32 0.0, %v2238
    %v2240 = vpop.f32.mrf.mxu0
    %2241 = vdwg.mxu0
    %2242 = vrot.lane.b32.xlu0 %v1657, 64
    %v2243 = vpop.permute.xlu0 %2242
    %v2246 = vsel %vm817, %v2013, 0
    %2248 = vmatprep.subr.mxu0 0.0
    %2249 = vmatpush1.msra.mxu0 0.0
    %2250 = vmatprep.subr.mxu0 0.0
    %2251 = vmatpush1.msra.mxu0 0.0
    %2252 = vmatprep.subr.mxu0 0.0
    %2253 = vmatpush1.msra.mxu0 0.0
    %2254 = vmatprep.subr.mxu0 0.0
    %2255 = vmatpush1.msra.mxu0 0.0
    %2256 = vmatprep.subr.mxu0 0.0
    %2257 = vmatpush1.msra.mxu0 0.0
    %2258 = vmatprep.subr.mxu0 0.0
    %2259 = vmatpush1.msra.mxu0 0.0
    %2260 = vmatprep.subr.mxu0 0.0
    %2261 = vmatpush1.msra.mxu0 0.0
    %2262 = vmatprep.subr.mxu0 0.0
    %2263 = vmatpush1.msra.mxu0 0.0
    %2264 = vmatprep.subr.mxu0 0.0
    %2265 = vmatpush1.msra.mxu0 0.0
    %2266 = vmatprep.subr.mxu0 0.0
    %2267 = vmatpush1.msra.mxu0 0.0
    %2268 = vmatprep.subr.mxu0 0.0
    %2269 = vmatpush1.msra.mxu0 0.0
    %2270 = vmatprep.subr.mxu0 0.0
    %2271 = vmatpush1.msra.mxu0 0.0
    %2272 = vmatprep.subr.mxu0 0.0
    %2273 = vmatpush1.msra.mxu0 0.0
    %2274 = vmatprep.subr.mxu0 0.0
    %2275 = vmatpush1.msra.mxu0 0.0
    %2276 = vmatprep.subr.mxu0 0.0
    %2277 = vmatpush1.msra.mxu0 0.0
    %2278 = vmatprep.subr.mxu0 0.0
    %2279 = vmatpush1.msra.mxu0 %v2243
    %2280 = vmatprep.subr.mxu0 0.0
    %2281 = vmatpush2.msra.mxu0 0.0
    %2282 = vmatprep.subr.mxu0 0.0
    %2283 = vmatpush2.msra.mxu0 0.0
    %2284 = vmatprep.subr.mxu0 0.0
    %2285 = vmatpush2.msra.mxu0 0.0
    %2286 = vmatprep.subr.mxu0 0.0
    %2287 = vmatpush2.msra.mxu0 0.0
    %2288 = vmatprep.subr.mxu0 0.0
    %2289 = vmatpush2.msra.mxu0 0.0
    %2290 = vmatprep.subr.mxu0 0.0
    %2291 = vmatpush2.msra.mxu0 0.0
    %2292 = vmatprep.subr.mxu0 0.0
    %2293 = vmatpush2.msra.mxu0 0.0
    %2294 = vmatprep.subr.mxu0 0.0
    %2295 = vmatpush2.msra.mxu0 0.0
    %2296 = vmatprep.subr.mxu0 0.0
    %2297 = vmatpush2.msra.mxu0 0.0
    %2298 = vmatprep.subr.mxu0 0.0
    %2299 = vmatpush2.msra.mxu0 0.0
    %2300 = vmatprep.subr.mxu0 0.0
    %2301 = vmatpush2.msra.mxu0 0.0
    %2302 = vmatprep.subr.mxu0 0.0
    %2303 = vmatpush2.msra.mxu0 0.0
    %2304 = vmatprep.subr.mxu0 0.0
    %2305 = vmatpush2.msra.mxu0 0.0
    %2306 = vmatprep.subr.mxu0 0.0
    %2307 = vmatpush2.msra.mxu0 0.0
    %2308 = vmatprep.subr.mxu0 0.0
    %2309 = vmatpush2.msra.mxu0 0.0
    %2310 = vmatprep.subr.mxu0 0.0
    %2311 = vmatpush2.msra.mxu0 0.0
    %2312 = vmatprep.mubr.f32.mxu0 0.0
    %2313 = vmatmul.mubr.f32.gmra.mxu0 %v2246
    %v2314 = vpop.f32.mrf.mxu0
    %v2315 = vadd.f32 0.0, %v2314
    %v2316 = vpop.f32.mrf.mxu0
    %2317 = vdwg.mxu0
    %2320 = vrot.lane.b32.xlu0 %v2239, 16
    %v2321 = vpop.permute.xlu0 %2320
    %2322 = vrot.lane.b32.xlu0 %v2315, 16
    %v2323 = vpop.permute.xlu0 %2322
    %v2326 = vsel %vm506, %v2087, %v2321
    %v2327 = vsel %vm506, %v2163, %v2323
    %s2328 = scalar_lea.vmem %s4, 32
    %v2329 = vld [vmem:[%s2328] sm:$0xff]
    %v2330 = vld [vmem:[%s2328 + $0x8] sm:$0xff]
    %v2331 = vld [vmem:[%s2328 + $0x10] sm:$0xff]
    %v2332 = vld [vmem:[%s2328 + $0x18] sm:$0xff]
    %v2334 = vsel %vm381, %v2326, 0
    %v2337 = vsel %vm381, %v2327, 0
    %2339 = vmatprep.subr.mxu0 0.0
    %2340 = vmatpush1.msra.mxu0 0.0
    %2341 = vmatprep.subr.mxu0 0.0
    %2342 = vmatpush1.msra.mxu0 0.0
    %2343 = vmatprep.subr.mxu0 0.0
    %2344 = vmatpush1.msra.mxu0 0.0
    %2345 = vmatprep.subr.mxu0 0.0
    %2346 = vmatpush1.msra.mxu0 0.0
    %2347 = vmatprep.subr.mxu0 0.0
    %2348 = vmatpush1.msra.mxu0 0.0
    %2349 = vmatprep.subr.mxu0 0.0
    %2350 = vmatpush1.msra.mxu0 0.0
    %2351 = vmatprep.subr.mxu0 0.0
    %2352 = vmatpush1.msra.mxu0 0.0
    %2353 = vmatprep.subr.mxu0 0.0
    %2354 = vmatpush1.msra.mxu0 0.0
    %2355 = vmatprep.subr.mxu0 0.0
    %2356 = vmatpush1.msra.mxu0 0.0
    %2357 = vmatprep.subr.mxu0 0.0
    %2358 = vmatpush1.msra.mxu0 0.0
    %2359 = vmatprep.subr.mxu0 0.0
    %2360 = vmatpush1.msra.mxu0 0.0
    %2361 = vmatprep.subr.mxu0 0.0
    %2362 = vmatpush1.msra.mxu0 0.0
    %2363 = vmatprep.subr.mxu0 0.0
    %2364 = vmatpush1.msra.mxu0 %v2332
    %2365 = vmatprep.subr.mxu0 0.0
    %2366 = vmatpush1.msra.mxu0 %v2331
    %2367 = vmatprep.subr.mxu0 0.0
    %2368 = vmatpush1.msra.mxu0 %v2330
    %2369 = vmatprep.subr.mxu0 0.0
    %2370 = vmatpush1.msra.mxu0 %v2329
    %2371 = vmatprep.subr.mxu0 0.0
    %2372 = vmatpush2.msra.mxu0 0.0
    %2373 = vmatprep.subr.mxu0 0.0
    %2374 = vmatpush2.msra.mxu0 0.0
    %2375 = vmatprep.subr.mxu0 0.0
    %2376 = vmatpush2.msra.mxu0 0.0
    %2377 = vmatprep.subr.mxu0 0.0
    %2378 = vmatpush2.msra.mxu0 0.0
    %2379 = vmatprep.subr.mxu0 0.0
    %2380 = vmatpush2.msra.mxu0 0.0
    %2381 = vmatprep.subr.mxu0 0.0
    %2382 = vmatpush2.msra.mxu0 0.0
    %2383 = vmatprep.subr.mxu0 0.0
    %2384 = vmatpush2.msra.mxu0 0.0
    %2385 = vmatprep.subr.mxu0 0.0
    %2386 = vmatpush2.msra.mxu0 0.0
    %2387 = vmatprep.subr.mxu0 0.0
    %2388 = vmatpush2.msra.mxu0 0.0
    %2389 = vmatprep.subr.mxu0 0.0
    %2390 = vmatpush2.msra.mxu0 0.0
    %2391 = vmatprep.subr.mxu0 0.0
    %2392 = vmatpush2.msra.mxu0 0.0
    %2393 = vmatprep.subr.mxu0 0.0
    %2394 = vmatpush2.msra.mxu0 0.0
    %2395 = vmatprep.subr.mxu0 0.0
    %2396 = vmatpush2.msra.mxu0 0.0
    %2397 = vmatprep.subr.mxu0 0.0
    %2398 = vmatpush2.msra.mxu0 0.0
    %2399 = vmatprep.subr.mxu0 0.0
    %2400 = vmatpush2.msra.mxu0 0.0
    %2401 = vmatprep.subr.mxu0 0.0
    %2402 = vmatpush2.msra.mxu0 0.0
    %2403 = vmatprep.mubr.f32.mxu0 0.0
    %2404 = vmatmul.mubr.f32.gmra.mxu0 %v2334
    %v2405 = vpop.f32.mrf.mxu0
    %v2406 = vadd.f32 0.0, %v2405
    %v2407 = vpop.f32.mrf.mxu0
    %2408 = vmatprep.mubr.f32.mxu0 0.0
    %2409 = vmatmul.mubr.f32.gmra.mxu0 %v2337
    %v2410 = vpop.f32.mrf.mxu0
    %v2411 = vadd.f32 0.0, %v2410
    %v2412 = vpop.f32.mrf.mxu0
    %2413 = vdwg.mxu0
    %v2414 = vadd.f32 %v1526, %v2406
    %v2415 = vadd.f32 %v1527, %v2411
    %v2416 = vadd.f32 %v2414, %v1531
    %v2417 = vadd.f32 %v2415, %v1531
    %v2418 = vsel %vm381, %v2416, 0.0
    %2419 = vadd.xlane.f32.xlu0 %v2418
    %v2420 = vpop.xlane.xlu0 %2419
    %v2421 = vsel %vm381, %v2417, 0.0
    %2422 = vadd.xlane.f32.xlu0 %v2421
    %v2423 = vpop.xlane.xlu0 %2422
    %v2424 = vmul.f32 %v2420, %v388
    %v2425 = vmul.f32 %v2423, %v388
    %v2426 = vsub.f32 %v2416, %v2424
    %v2427 = vsub.f32 %v2417, %v2425
    %v2428 = vmul.f32 %v2426, %v2426
    %v2429 = vmul.f32 %v2427, %v2427
    %v2430 = vsel %vm381, %v2428, 0.0
    %2431 = vadd.xlane.f32.xlu0 %v2430
    %v2432 = vpop.xlane.xlu0 %2431
    %v2433 = vsel %vm381, %v2429, 0.0
    %2434 = vadd.xlane.f32.xlu0 %v2433
    %v2435 = vpop.xlane.xlu0 %2434
    %v2436 = vmul.f32 %v2432, %v388
    %v2437 = vmul.f32 %v2435, %v388
    %v2438 = vadd.f32 %v2436, 1e-06
    %v2439 = vadd.f32 %v2437, 1e-06
    %v2440 = vrsqrt.pop %v2438
    %v2441 = vrsqrt.pop %v2439
    %v2442 = vmul.f32 %v2426, %v2440
    %v2443 = vmul.f32 %v2427, %v2441
    %v2444 = vmul.f32 %v2442, %v1532
    %v2445 = vmul.f32 %v2443, %v1532
    %v2446 = vadd.f32 %v2444, %v1533
    %v2447 = vadd.f32 %v2445, %v1533
    %s2448 = scalar_lea.vmem %s5, 32
    %v2449 = vld [vmem:[%s2448] sm:$0xff]
    %v2450 = vld [vmem:[%s2448 + $0x8] sm:$0xff]
    %v2451 = vld [vmem:[%s2448 + $0x10] sm:$0xff]
    %v2452 = vld [vmem:[%s2448 + $0x18] sm:$0xff]
    %v2454 = vsel %vm381, %v2446, 0
    %v2457 = vsel %vm381, %v2447, 0
    %2459 = vmatprep.subr.mxu0 0.0
    %2460 = vmatpush1.msra.mxu0 0.0
    %2461 = vmatprep.subr.mxu0 0.0
    %2462 = vmatpush1.msra.mxu0 0.0
    %2463 = vmatprep.subr.mxu0 0.0
    %2464 = vmatpush1.msra.mxu0 0.0
    %2465 = vmatprep.subr.mxu0 0.0
    %2466 = vmatpush1.msra.mxu0 0.0
    %2467 = vmatprep.subr.mxu0 0.0
    %2468 = vmatpush1.msra.mxu0 0.0
    %2469 = vmatprep.subr.mxu0 0.0
    %2470 = vmatpush1.msra.mxu0 0.0
    %2471 = vmatprep.subr.mxu0 0.0
    %2472 = vmatpush1.msra.mxu0 0.0
    %2473 = vmatprep.subr.mxu0 0.0
    %2474 = vmatpush1.msra.mxu0 0.0
    %2475 = vmatprep.subr.mxu0 0.0
    %2476 = vmatpush1.msra.mxu0 0.0
    %2477 = vmatprep.subr.mxu0 0.0
    %2478 = vmatpush1.msra.mxu0 0.0
    %2479 = vmatprep.subr.mxu0 0.0
    %2480 = vmatpush1.msra.mxu0 0.0
    %2481 = vmatprep.subr.mxu0 0.0
    %2482 = vmatpush1.msra.mxu0 0.0
    %2483 = vmatprep.subr.mxu0 0.0
    %2484 = vmatpush1.msra.mxu0 %v2452
    %2485 = vmatprep.subr.mxu0 0.0
    %2486 = vmatpush1.msra.mxu0 %v2451
    %2487 = vmatprep.subr.mxu0 0.0
    %2488 = vmatpush1.msra.mxu0 %v2450
    %2489 = vmatprep.subr.mxu0 0.0
    %2490 = vmatpush1.msra.mxu0 %v2449
    %2491 = vmatprep.subr.mxu0 0.0
    %2492 = vmatpush2.msra.mxu0 0.0
    %2493 = vmatprep.subr.mxu0 0.0
    %2494 = vmatpush2.msra.mxu0 0.0
    %2495 = vmatprep.subr.mxu0 0.0
    %2496 = vmatpush2.msra.mxu0 0.0
    %2497 = vmatprep.subr.mxu0 0.0
    %2498 = vmatpush2.msra.mxu0 0.0
    %2499 = vmatprep.subr.mxu0 0.0
    %2500 = vmatpush2.msra.mxu0 0.0
    %2501 = vmatprep.subr.mxu0 0.0
    %2502 = vmatpush2.msra.mxu0 0.0
    %2503 = vmatprep.subr.mxu0 0.0
    %2504 = vmatpush2.msra.mxu0 0.0
    %2505 = vmatprep.subr.mxu0 0.0
    %2506 = vmatpush2.msra.mxu0 0.0
    %2507 = vmatprep.subr.mxu0 0.0
    %2508 = vmatpush2.msra.mxu0 0.0
    %2509 = vmatprep.subr.mxu0 0.0
    %2510 = vmatpush2.msra.mxu0 0.0
    %2511 = vmatprep.subr.mxu0 0.0
    %2512 = vmatpush2.msra.mxu0 0.0
    %2513 = vmatprep.subr.mxu0 0.0
    %2514 = vmatpush2.msra.mxu0 0.0
    %2515 = vmatprep.subr.mxu0 0.0
    %2516 = vmatpush2.msra.mxu0 0.0
    %2517 = vmatprep.subr.mxu0 0.0
    %2518 = vmatpush2.msra.mxu0 0.0
    %2519 = vmatprep.subr.mxu0 0.0
    %2520 = vmatpush2.msra.mxu0 0.0
    %2521 = vmatprep.subr.mxu0 0.0
    %2522 = vmatpush2.msra.mxu0 0.0
    %2523 = vmatprep.mubr.f32.mxu0 0.0
    %2524 = vmatmul.mubr.f32.gmra.mxu0 %v2454
    %v2525 = vpop.f32.mrf.mxu0
    %v2526 = vadd.f32 %v1534, %v2525
    %v2527 = vpop.f32.mrf.mxu0
    %2528 = vmatprep.mubr.f32.mxu0 0.0
    %2529 = vmatmul.mubr.f32.gmra.mxu0 %v2457
    %v2530 = vpop.f32.mrf.mxu0
    %v2531 = vadd.f32 %v1534, %v2530
    %v2532 = vpop.f32.mrf.mxu0
    %2533 = vdwg.mxu0
    %v2534 = vmul.f32 %v2526, 0.70710677
    %v2535 = vmul.f32 %v2531, 0.70710677
    %v2536 = vand.u32 2147483647, %v2534
    %v2537 = vand.u32 2147483647, %v2535
    %v2538 = vmul.f32 %v2536, 0.3275911
    %v2539 = vmul.f32 %v2537, 0.3275911
    %v2540 = vadd.f32 %v2538, 1.0
    %v2541 = vadd.f32 %v2539, 1.0
    %v2542 = vrcp.pop %v2540
    %v2543 = vmul.f32 1.0, %v2542
    %v2544 = vrcp.pop %v2541
    %v2545 = vmul.f32 1.0, %v2544
    %v2546 = vmul.f32 %v2543, 1.0614054
    %v2547 = vmul.f32 %v2545, 1.0614054
    %v2548 = vsub.f32 %v2546, 1.4531521
    %v2549 = vsub.f32 %v2547, 1.4531521
    %v2550 = vmul.f32 %v2548, %v2543
    %v2551 = vmul.f32 %v2549, %v2545
    %v2552 = vadd.f32 %v2550, 1.4214138
    %v2553 = vadd.f32 %v2551, 1.4214138
    %v2554 = vmul.f32 %v2552, %v2543
    %v2555 = vmul.f32 %v2553, %v2545
    %v2556 = vsub.f32 %v2554, 0.28449672
    %v2557 = vsub.f32 %v2555, 0.28449672
    %v2558 = vmul.f32 %v2556, %v2543
    %v2559 = vmul.f32 %v2557, %v2545
    %v2560 = vadd.f32 %v2558, 0.2548296
    %v2561 = vadd.f32 %v2559, 0.2548296
    %v2562 = vmul.f32 %v2560, %v2543
    %v2563 = vmul.f32 %v2561, %v2545
    %v2564 = vsub.f32 0.0, %v2536
    %v2565 = vsub.f32 0.0, %v2537
    %v2566 = vmul.f32 %v2564, %v2536
    %v2567 = vmul.f32 %v2565, %v2537
    %v2568 = vmul.f32 %v2566, 1.442695
    %v2569 = vpow.pop %v2568
    %v2570 = vmul.f32 %v2567, 1.442695
    %v2571 = vpow.pop %v2570
    %v2572 = vmul.f32 %v2562, %v2569
    %v2573 = vmul.f32 %v2563, %v2571
    %v2574 = vsub.f32 1.0, %v2572
    %v2575 = vsub.f32 1.0, %v2573
    %vm2576 = vcmp.ge.f32.partialorder %v2534, 0.0
    %vm2577 = vcmp.ge.f32.partialorder %v2535, 0.0
    %v2578 = vsub.f32 0.0, %v2574
    %v2579 = vsub.f32 0.0, %v2575
    %v2580 = vsel %vm2576, %v2574, %v2578
    %v2581 = vsel %vm2577, %v2575, %v2579
    %v2582 = vmul.f32 %v2526, 0.5
    %v2583 = vmul.f32 %v2531, 0.5
    %v2584 = vadd.f32 %v2580, 1.0
    %v2585 = vadd.f32 %v2581, 1.0
    %v2586 = vmul.f32 %v2582, %v2584
    %v2587 = vmul.f32 %v2583, %v2585
    %s2588 = scalar_lea.vmem %s6, 64
    %v2589 = vld [vmem:[%s2588] sm:$0xff]
    %v2590 = vld [vmem:[%s2588 + $0x8] sm:$0xff]
    %v2591 = vld [vmem:[%s2588 + $0x10] sm:$0xff]
    %v2592 = vld [vmem:[%s2588 + $0x18] sm:$0xff]
    %v2593 = vld [vmem:[%s2588 + $0x20] sm:$0xff]
    %v2594 = vld [vmem:[%s2588 + $0x28] sm:$0xff]
    %v2595 = vld [vmem:[%s2588 + $0x30] sm:$0xff]
    %v2596 = vld [vmem:[%s2588 + $0x38] sm:$0xff]
    %v2598 = vsel %vm1442, %v2586, 0
    %v2601 = vsel %vm1442, %v2587, 0
    %2603 = vmatprep.subr.mxu0 0.0
    %2604 = vmatpush1.msra.mxu0 0.0
    %2605 = vmatprep.subr.mxu0 0.0
    %2606 = vmatpush1.msra.mxu0 0.0
    %2607 = vmatprep.subr.mxu0 0.0
    %2608 = vmatpush1.msra.mxu0 0.0
    %2609 = vmatprep.subr.mxu0 0.0
    %2610 = vmatpush1.msra.mxu0 0.0
    %2611 = vmatprep.subr.mxu0 0.0
    %2612 = vmatpush1.msra.mxu0 0.0
    %2613 = vmatprep.subr.mxu0 0.0
    %2614 = vmatpush1.msra.mxu0 0.0
    %2615 = vmatprep.subr.mxu0 0.0
    %2616 = vmatpush1.msra.mxu0 0.0
    %2617 = vmatprep.subr.mxu0 0.0
    %2618 = vmatpush1.msra.mxu0 0.0
    %2619 = vmatprep.subr.mxu0 0.0
    %2620 = vmatpush1.msra.mxu0 %v2596
    %2621 = vmatprep.subr.mxu0 0.0
    %2622 = vmatpush1.msra.mxu0 %v2595
    %2623 = vmatprep.subr.mxu0 0.0
    %2624 = vmatpush1.msra.mxu0 %v2594
    %2625 = vmatprep.subr.mxu0 0.0
    %2626 = vmatpush1.msra.mxu0 %v2593
    %2627 = vmatprep.subr.mxu0 0.0
    %2628 = vmatpush1.msra.mxu0 %v2592
    %2629 = vmatprep.subr.mxu0 0.0
    %2630 = vmatpush1.msra.mxu0 %v2591
    %2631 = vmatprep.subr.mxu0 0.0
    %2632 = vmatpush1.msra.mxu0 %v2590
    %2633 = vmatprep.subr.mxu0 0.0
    %2634 = vmatpush1.msra.mxu0 %v2589
    %2635 = vmatprep.subr.mxu0 0.0
    %2636 = vmatpush2.msra.mxu0 0.0
    %2637 = vmatprep.subr.mxu0 0.0
    %2638 = vmatpush2.msra.mxu0 0.0
    %2639 = vmatprep.subr.mxu0 0.0
    %2640 = vmatpush2.msra.mxu0 0.0
    %2641 = vmatprep.subr.mxu0 0.0
    %2642 = vmatpush2.msra.mxu0 0.0
    %2643 = vmatprep.subr.mxu0 0.0
    %2644 = vmatpush2.msra.mxu0 0.0
    %2645 = vmatprep.subr.mxu0 0.0
    %2646 = vmatpush2.msra.mxu0 0.0
    %2647 = vmatprep.subr.mxu0 0.0
    %2648 = vmatpush2.msra.mxu0 0.0
    %2649 = vmatprep.subr.mxu0 0.0
    %2650 = vmatpush2.msra.mxu0 0.0
    %2651 = vmatprep.subr.mxu0 0.0
    %2652 = vmatpush2.msra.mxu0 0.0
    %2653 = vmatprep.subr.mxu0 0.0
    %2654 = vmatpush2.msra.mxu0 0.0
    %2655 = vmatprep.subr.mxu0 0.0
    %2656 = vmatpush2.msra.mxu0 0.0
    %2657 = vmatprep.subr.mxu0 0.0
    %2658 = vmatpush2.msra.mxu0 0.0
    %2659 = vmatprep.subr.mxu0 0.0
    %2660 = vmatpush2.msra.mxu0 0.0
    %2661 = vmatprep.subr.mxu0 0.0
    %2662 = vmatpush2.msra.mxu0 0.0
    %2663 = vmatprep.subr.mxu0 0.0
    %2664 = vmatpush2.msra.mxu0 0.0
    %2665 = vmatprep.subr.mxu0 0.0
    %2666 = vmatpush2.msra.mxu0 0.0
    %2667 = vmatprep.mubr.f32.mxu0 0.0
    %2668 = vmatmul.mubr.f32.gmra.mxu0 %v2598
    %v2669 = vpop.f32.mrf.mxu0
    %v2670 = vadd.f32 0.0, %v2669
    %v2671 = vpop.f32.mrf.mxu0
    %2672 = vmatprep.mubr.f32.mxu0 0.0
    %2673 = vmatmul.mubr.f32.gmra.mxu0 %v2601
    %v2674 = vpop.f32.mrf.mxu0
    %v2675 = vadd.f32 0.0, %v2674
    %v2676 = vpop.f32.mrf.mxu0
    %2677 = vdwg.mxu0
    %v2678 = vadd.f32 %v2416, %v2670
    %v2679 = vadd.f32 %v2417, %v2675
    %v2680 = vadd.f32 %v2678, %v1535
    %v2681 = vadd.f32 %v2679, %v1535
    %v2683 = vrot.slane %v2681, 7
    %v2685 = vsel %vm363, %v2680, %v2683
    %vm2686 = vcmask 254976
    %v2687 = vsel %vm2686, %v2685, 0.0
    %2688 = vadd.xlane.f32.xlu0 %v2687
    %v2689 = vpop.xlane.xlu0 %2688
    %v2690 = vmul.f32 %v2689, %v388
    %v2691 = vsub.f32 %v2685, %v2690
    %v2692 = vmul.f32 %v2691, %v2691
    %v2693 = vsel %vm2686, %v2692, 0.0
    %2694 = vadd.xlane.f32.xlu0 %v2693
    %v2695 = vpop.xlane.xlu0 %2694
    %v2696 = vmul.f32 %v2695, %v388
    %v2697 = vadd.f32 %v2696, 1e-06
    %v2698 = vrsqrt.pop %v2697
    %v2699 = vmul.f32 %v2691, %v2698
    %v2700 = vmul.f32 %v2699, %v32
    %v2701 = vadd.f32 %v2700, %v33
    %v2702 = vld [vmem:[%s7] sm:$0xff]
    %v2703 = vld [vmem:[%s7 + $0x8] sm:$0xff]
    %v2704 = vld [vmem:[%s7 + $0x10] sm:$0xff]
    %v2705 = vld [vmem:[%s7 + $0x18] sm:$0xff]
    %v2706 = vld [vmem:[%s7 + $0x20] sm:$0xff]
    %v2707 = vld [vmem:[%s7 + $0x28] sm:$0xff]
    %v2708 = vld [vmem:[%s7 + $0x30] sm:$0xff]
    %v2709 = vld [vmem:[%s7 + $0x38] sm:$0xff]
    %v2711 = vlaneseq
    %v2712 = vshrl.u32 %v2711, 7
    %v2713 = vsub.s32 0, %v2712
    %v2714 = vrot.slane %v35, %v2713
    %v2715 = vlaneseq
    %v2716 = vshrl.u32 %v2715, 7
    %v2717 = vsub.s32 1, %v2716
    %v2718 = vrot.slane %v35, %v2717
    %v2722 = vsel %vm381, %v2701, 0
    %2724 = vmatprep.subr.mxu0 0.0
    %2725 = vmatpush1.msra.mxu0 0.0
    %2726 = vmatprep.subr.mxu0 0.0
    %2727 = vmatpush1.msra.mxu0 0.0
    %2728 = vmatprep.subr.mxu0 0.0
    %2729 = vmatpush1.msra.mxu0 0.0
    %2730 = vmatprep.subr.mxu0 0.0
    %2731 = vmatpush1.msra.mxu0 0.0
    %2732 = vmatprep.subr.mxu0 0.0
    %2733 = vmatpush1.msra.mxu0 0.0
    %2734 = vmatprep.subr.mxu0 0.0
    %2735 = vmatpush1.msra.mxu0 0.0
    %2736 = vmatprep.subr.mxu0 0.0
    %2737 = vmatpush1.msra.mxu0 0.0
    %2738 = vmatprep.subr.mxu0 0.0
    %2739 = vmatpush1.msra.mxu0 0.0
    %2740 = vmatprep.subr.mxu0 0.0
    %2741 = vmatpush1.msra.mxu0 0.0
    %2742 = vmatprep.subr.mxu0 0.0
    %2743 = vmatpush1.msra.mxu0 0.0
    %2744 = vmatprep.subr.mxu0 0.0
    %2745 = vmatpush1.msra.mxu0 0.0
    %2746 = vmatprep.subr.mxu0 0.0
    %2747 = vmatpush1.msra.mxu0 0.0
    %2748 = vmatprep.subr.mxu0 %v2709
    %2749 = vmatpush1.msra.mxu0 %v2708
    %2750 = vmatprep.subr.mxu0 %v2707
    %2751 = vmatpush1.msra.mxu0 %v2706
    %2752 = vmatprep.subr.mxu0 %v2705
    %2753 = vmatpush1.msra.mxu0 %v2704
    %2754 = vmatprep.subr.mxu0 %v2703
    %2755 = vmatpush1.msra.mxu0 %v2702
    %2756 = vmatprep.subr.mxu0 0.0
    %2757 = vmatpush2.msra.mxu0 0.0
    %2758 = vmatprep.subr.mxu0 0.0
    %2759 = vmatpush2.msra.mxu0 0.0
    %2760 = vmatprep.subr.mxu0 0.0
    %2761 = vmatpush2.msra.mxu0 0.0
    %2762 = vmatprep.subr.mxu0 0.0
    %2763 = vmatpush2.msra.mxu0 0.0
    %2764 = vmatprep.subr.mxu0 0.0
    %2765 = vmatpush2.msra.mxu0 0.0
    %2766 = vmatprep.subr.mxu0 0.0
    %2767 = vmatpush2.msra.mxu0 0.0
    %2768 = vmatprep.subr.mxu0 0.0
    %2769 = vmatpush2.msra.mxu0 0.0
    %2770 = vmatprep.subr.mxu0 0.0
    %2771 = vmatpush2.msra.mxu0 0.0
    %2772 = vmatprep.subr.mxu0 0.0
    %2773 = vmatpush2.msra.mxu0 0.0
    %2774 = vmatprep.subr.mxu0 0.0
    %2775 = vmatpush2.msra.mxu0 0.0
    %2776 = vmatprep.subr.mxu0 0.0
    %2777 = vmatpush2.msra.mxu0 0.0
    %2778 = vmatprep.subr.mxu0 0.0
    %2779 = vmatpush2.msra.mxu0 0.0
    %2780 = vmatprep.subr.mxu0 0.0
    %2781 = vmatpush2.msra.mxu0 0.0
    %2782 = vmatprep.subr.mxu0 0.0
    %2783 = vmatpush2.msra.mxu0 0.0
    %2784 = vmatprep.subr.mxu0 0.0
    %2785 = vmatpush2.msra.mxu0 0.0
    %2786 = vmatprep.subr.mxu0 0.0
    %2787 = vmatpush2.msra.mxu0 0.0
    %2788 = vmatprep.mubr.f32.mxu0 0.0
    %2789 = vmatmul.mubr.f32.gmra.mxu0 %v2722
    %v2790 = vpop.f32.mrf.mxu0
    %v2791 = vadd.f32 %v2714, %v2790
    %v2792 = vpop.f32.mrf.mxu0
    %v2793 = vadd.f32 %v2718, %v2792
    %2794 = vdwg.mxu0
    %v2797 = vcombine.low %v2791, %v2793
    %v2799 = vunpack.c.l.s4 1983009808
    %v2800 = vunpack.c.0.s8 %v2799
    %v2801 = vlaneseq
    %v2802 = vshrl.u32 %v2801, 7
    %v2803 = vsub.s32 %v2800, %v2802
    %v2804 = vrot.slane %v2797, %v2803
    %2806 = vst [vmem:[#allocation2] sm:$0xf] %v2804
    // Predicated region
    $region34: #{only_vit_forward.1} parent=1 // pred_check
      _
    $region35: #{only_vit_forward.1} parent=1 // pred_check_branch
      %2808 = sbr.rel (0) target = $region37
    $region36: #{only_vit_forward.1} parent=1 // pred_region
      %s2810 = ssub.s32 64, 64
      %2811 = vsyncadd [#allocation3], %s2810
      %s2813 = sshll.u32 [#allocation2], 4
      %s2814 = int_to_ptr.vmem [resolvable:$true] %s2813
      %2816 = dma.vmem_to_hbm [thread:$0]  %s2814, 64, %s8, [#allocation3]
    $region37: #{only_vit_forward.1} parent=1 // pred_fallthru
      _
    // Predicated region
    $region38: #{only_vit_forward.1} parent=1 // pred_check
      _
    $region39: #{only_vit_forward.1} parent=1 // pred_check_branch
      %2818 = sbr.rel (0) target = $region41
    $region40: #{only_vit_forward.1} parent=1 // pred_region
      %2819 = dma.done [#allocation3], 64
    $region41: #{only_vit_forward.1} parent=1 // pred_fallthru
      _
    %2820 = vsyncpa [#allocation3], 1

</llo_original>
